<compile_context>
chip_gen: v5e
topology: v5e:2x2
jax: 0.10.0
libtpu: 0.0.40
codegen_flags: <defaults>
</compile_context>

<pallas_src>
import functools

import jax
import jax.numpy as jnp
import numpy as np
from jax import lax
from jax.experimental import pallas as pl
from jax.experimental.pallas import tpu as pltpu


# ----------------------------------------------------------------------------
# Pallas kernel: recurrence only (input projections + biases hoisted to wrapper)
# ----------------------------------------------------------------------------
def _lstm_recurrent_kernel(xproj_ref, u_ref, h0_ref, c0_ref, out_ref,
                           h_scr, c_scr, *, d_out, chunk):
    """One grid step == `chunk` time steps of the LSTM.

    xproj_ref : (Tc, B, 4*D_out)  time-major pre-activations [xi | xi | xc | xo] + bU
    u_ref     : (D_out, 4*D_out)  fused recurrent weights    [U_i | U_f | U_c | U_o]
    h0_ref, c0_ref : (B, D_out)   initial state (used only at grid step 0)
    out_ref   : (B, Tc*2*D_out)   per-chunk [h_t | c_t] pairs, lane-packed
    h_scr, c_scr : (B, D_out)     VMEM carry across grid steps
    """
    @pl.when(pl.program_id(0) == 0)
    def _():
        h_scr[...] = h0_ref[...]
        c_scr[...] = c0_ref[...]

    u_all = u_ref[...]          # (D_out, 4*D_out), resident (bf16 or f32)
    h = h_scr[...]              # (B, D_out) f32
    c = c_scr[...]              # (B, D_out) f32
    two_d = 2 * d_out

    hc_prev = None
    for s in range(chunk):      # static unroll over the chunk
        # Single fused recurrent matmul, f32 accumulation; one lane-aligned full-vreg add.
        pre = xproj_ref[s] + jnp.dot(h.astype(u_all.dtype), u_all,
                                     preferred_element_type=jnp.float32)
        # Two full-width EUP pushes instead of 4-5 sub-vreg calls.
        sg = jax.nn.sigmoid(pre)
        th = jnp.tanh(pre)

        i_g = sg[:, 0 * d_out:1 * d_out]
        f_g = sg[:, 1 * d_out:2 * d_out]   # <- driven by xi, as in forward_node (reference bug)
        g_c = th[:, 2 * d_out:3 * d_out]
        o_g = sg[:, 3 * d_out:4 * d_out]

        c = f_g * c + i_g * g_c
        h = o_g * jnp.tanh(c)

        # Output packing is off the h->h critical path; store two steps at a time so
        # every vst is a dense 4*D_out(=128)-lane write at a 128-aligned offset.
        hc = jnp.concatenate([h, c], axis=-1)              # (B, 2*D_out)
        if s % 2 == 1:
            out_ref[:, (s - 1) * two_d:(s + 1) * two_d] = (
                jnp.concatenate([hc_prev, hc], axis=-1))
        else:
            hc_prev = hc
    if chunk % 2 == 1:                                     # chunk is normally a multiple of 8
        out_ref[:, (chunk - 1) * two_d:chunk * two_d] = hc_prev

    h_scr[...] = h
    c_scr[...] = c


def _pick_time_chunk(T, max_chunk=32):
    """Pad T up to a multiple of 8, then pick the largest multiple-of-8 chunk <= max_chunk
    that divides the padded length.  Returns (chunk, T_padded)."""
    t8 = ((T + 7) // 8) * 8
    tc = 8
    for cand in range(8, min(t8, max_chunk) + 1, 8):
        if t8 % cand == 0:
            tc = cand
    return tc, t8


# ----------------------------------------------------------------------------
# Wrapper
# ----------------------------------------------------------------------------
@jax.jit
def lstm_pallas(X_btd, W_pack, b_pack, U_pack, h0, c0):
    """X_btd: (B, T, D_in) f32.  W_pack: (D_in, 4*D_out) = [W_i|W_i|W_c|W_o],
    b_pack: (4*D_out,) folded biases, U_pack: (D_out, 4*D_out) = [U_i|U_f|U_c|U_o]
    (f32 or bf16).  Returns (h_hist, c_hist), each (B, T, D_out) f32."""
    B, T, D_in = X_btd.shape
    D_out = U_pack.shape[0]

    # --- pad batch up to the f32 sublane tile (multiple of 8) ------------------
    B_pad = max(8, ((B + 7) // 8) * 8)
    padB = B_pad - B
    if padB:
        X_btd = jnp.pad(X_btd, ((0, padB), (0, 0), (0, 0)))
        h0 = jnp.pad(h0, ((0, padB), (0, 0)))
        c0 = jnp.pad(c0, ((0, padB), (0, 0)))

    # --- hoisted input projections + folded recurrent biases (one big f32 matmul)
    Xproj = jnp.einsum('btd,de->bte', X_btd, W_pack) + b_pack   # (B_pad, T, 4*D_out)

    Tc, T_pad = _pick_time_chunk(T)
    if T_pad != T:
        Xproj = jnp.pad(Xproj, ((0, 0), (0, T_pad - T), (0, 0)))

    # Time-major so each in-kernel step reads one contiguous (B_pad, 4*D_out) tile.
    Xproj_tm = jnp.transpose(Xproj, (1, 0, 2))                  # (T_pad, B_pad, 4*D_out)

    grid = (T_pad // Tc,)
    kernel = functools.partial(_lstm_recurrent_kernel, d_out=D_out, chunk=Tc)

    out = pl.pallas_call(
        kernel,
        out_shape=jax.ShapeDtypeStruct((B_pad, T_pad * 2 * D_out), jnp.float32),
        grid_spec=pltpu.PrefetchScalarGridSpec(
            num_scalar_prefetch=0,
            grid=grid,
            in_specs=[
                pl.BlockSpec((Tc, B_pad, 4 * D_out), lambda t: (t, 0, 0)),  # Xproj chunk
                pl.BlockSpec((D_out, 4 * D_out), lambda t: (0, 0)),         # U (resident)
                pl.BlockSpec((B_pad, D_out), lambda t: (0, 0)),             # h0 (resident)
                pl.BlockSpec((B_pad, D_out), lambda t: (0, 0)),             # c0 (resident)
            ],
            out_specs=pl.BlockSpec((B_pad, Tc * 2 * D_out), lambda t: (0, t)),
            scratch_shapes=[
                pltpu.VMEM((B_pad, D_out), jnp.float32),                    # h carry
                pltpu.VMEM((B_pad, D_out), jnp.float32),                    # c carry
            ],
        ),
        compiler_params=pltpu.CompilerParams(
            dimension_semantics=("arbitrary",),                             # time is sequential
        ),
    )(Xproj_tm, U_pack, h0, c0)

    hc = out.reshape(B_pad, T_pad, 2 * D_out)
    h_hist = hc[:B, :T, :D_out]
    c_hist = hc[:B, :T, D_out:]
    return h_hist, c_hist


# ----------------------------------------------------------------------------
# Pure-JAX reference (mirrors the PyTorch forward, eval mode, per-gate weights)
# ----------------------------------------------------------------------------
def lstm_reference(X_btd, W, bW, U, bU, h0, c0):
    Xi = X_btd @ W[0] + bW[0]
    Xf = X_btd @ W[1] + bW[1]
    Xc = X_btd @ W[2] + bW[2]
    Xo = X_btd @ W[3] + bW[3]
    del Xf  # forget gate uses xi in the reference implementation

    def step(carry, inputs):
        h, c = carry
        xi, xc, xo = inputs
        i_g = jax.nn.sigmoid(xi + h @ U[0] + bU[0])
        f_g = jax.nn.sigmoid(xi + h @ U[1] + bU[1])
        c_new = f_g * c + i_g * jnp.tanh(xc + h @ U[2] + bU[2])
        o_g = jax.nn.sigmoid(xo + h @ U[3] + bU[3])
        h_new = o_g * jnp.tanh(c_new)
        return (h_new, c_new), (h_new, c_new)

    xs = (jnp.transpose(Xi, (1, 0, 2)),
          jnp.transpose(Xc, (1, 0, 2)),
          jnp.transpose(Xo, (1, 0, 2)))
    _, (h_hist, c_hist) = lax.scan(step, (h0, c0), xs)
    return jnp.transpose(h_hist, (1, 0, 2)), jnp.transpose(c_hist, (1, 0, 2))


# ----------------------------------------------------------------------------
# Deterministic parameter construction (shapes from LSTM.__init__)
# ----------------------------------------------------------------------------
def make_params(key, in_dim, out_dim):
    keys = jax.random.split(key, 12)

    def xavier_uniform(k, fan_in, fan_out):
        limit = float(np.sqrt(6.0 / (fan_in + fan_out)))
        # stored as (in, out) so that x @ W == torch Linear(x)
        return jax.random.uniform(k, (fan_in, fan_out), jnp.float32, -limit, limit)

    def orthogonal(k, n):
        a = jax.random.normal(k, (n, n), jnp.float32)
        q, r = jnp.linalg.qr(a)
        q = q * jnp.sign(jnp.diag(r))[None, :]
        return q

    def default_bias(k, fan_in, n):
        bound = 1.0 / float(np.sqrt(fan_in))
        return jax.random.uniform(k, (n,), jnp.float32, -bound, bound)

    # gate order: i, f, c, o
    W = jnp.stack([xavier_uniform(keys[0], in_dim, out_dim),
                   xavier_uniform(keys[1], in_dim, out_dim),
                   xavier_uniform(keys[2], in_dim, out_dim),
                   xavier_uniform(keys[3], in_dim, out_dim)], axis=0)
    bW = jnp.stack([jnp.zeros((out_dim,), jnp.float32),        # W_i.bias = 0
                    jnp.ones((out_dim,), jnp.float32),         # W_f.bias = 1 (dead in forward)
                    jnp.zeros((out_dim,), jnp.float32),        # W_c.bias = 0
                    jnp.zeros((out_dim,), jnp.float32)],       # W_o.bias = 0
                   axis=0)                                     # (4, out)

    U = jnp.stack([orthogonal(keys[4], out_dim),
                   orthogonal(keys[5], out_dim),
                   orthogonal(keys[6], out_dim),
                   orthogonal(keys[7], out_dim)], axis=0)
    bU = jnp.stack([jnp.zeros((out_dim,), jnp.float32),        # U_i has no bias
                    default_bias(keys[8], out_dim, out_dim),   # U_f default Linear bias
                    default_bias(keys[9], out_dim, out_dim),   # U_c
                    default_bias(keys[10], out_dim, out_dim)], # U_o
                   axis=0)                                     # (4, out)
    return W, bW, U, bU


def pack_params(W, bW, U, bU, u_dtype=jnp.bfloat16):
    """Pack per-gate params into the fused, lane-aligned kernel layout.

    W_pack : (D_in, 4*D_out)  [W_i | W_i | W_c | W_o]   (W_i duplicated into the forget
                               slot; W_f dropped, dead in the reference forward_node)
    b_pack : (4*D_out,)       [bW_i | bW_i + bU_f | bW_c + bU_c | bW_o + bU_o]
                               (recurrent biases folded into the x-projection)
    U_pack : (D_out, 4*D_out) [U_i | U_f | U_c | U_o]   (bf16 by default; f32 accumulation)
    """
    W_pack = jnp.concatenate([W[0], W[0], W[2], W[3]], axis=1)
    b_pack = jnp.concatenate([bW[0],
                              bW[0] + bU[1],
                              bW[2] + bU[2],
                              bW[3] + bU[3]], axis=0)
    U_pack = jnp.concatenate([U[0], U[1], U[2], U[3]], axis=1).astype(u_dtype)
    return W_pack, b_pack, U_pack


# ----------------------------------------------------------------------------
# Main
# ----------------------------------------------------------------------------
if __name__ == "__main__":
    # T=64 -> two time-chunks of 32 (exercises the VMEM h/c carry across grid steps).
    B, T, IN_DIM, OUT_DIM = 2, 64, 16, 32

    root = jax.random.PRNGKey(0)
    k_x, k_p = jax.random.split(root)

    X = jax.random.normal(k_x, (B, T, IN_DIM), jnp.float32)
    W, bW, U, bU = make_params(k_p, IN_DIM, OUT_DIM)
    W_pack, b_pack, U_f32 = pack_params(W, bW, U, bU, u_dtype=jnp.float32)
    _, _, U_bf16 = pack_params(W, bW, U, bU, u_dtype=jnp.bfloat16)

    # eval-mode init_var -> zeros
    h0 = jnp.zeros((B, OUT_DIM), jnp.float32)
    c0 = jnp.zeros((B, OUT_DIM), jnp.float32)

    h_ref, c_ref = lstm_reference(X, W, bW, U, bU, h0, c0)

    # 1) f32 recurrent weights: tight numerical check of the kernel structure.
    h32, c32 = lstm_pallas(X, W_pack, b_pack, U_f32, h0, c0)
    jax.block_until_ready((h32, c32))
    np.testing.assert_allclose(np.asarray(h32), np.asarray(h_ref), rtol=3e-5, atol=3e-5)
    np.testing.assert_allclose(np.asarray(c32), np.asarray(c_ref), rtol=3e-5, atol=3e-5)

    # 2) bf16 recurrent weights (perf configuration): f32 accumulation + f32 gate math,
    #    so only the recurrent matmul operands are rounded -> looser tolerance.
    h16, c16 = lstm_pallas(X, W_pack, b_pack, U_bf16, h0, c0)
    jax.block_until_ready((h16, c16))
    np.testing.assert_allclose(np.asarray(h16), np.asarray(h_ref), rtol=3e-2, atol=3e-2)
    np.testing.assert_allclose(np.asarray(c16), np.asarray(c_ref), rtol=3e-2, atol=3e-2)

    assert h32.shape == (B, T, OUT_DIM) and c32.shape == (B, T, OUT_DIM)
    print("KERNEL_OK")
</pallas_src>

<mosaic_0001>
module attributes {stable_mosaic.version = 11 : i64} {
  func.func @_lstm_recurrent_kernel(%arg0: i32, %arg1: memref<32x8x128xf32, #tpu.memory_space<vmem>>, %arg2: memref<32x128xf32, #tpu.memory_space<vmem>>, %arg3: memref<8x32xf32, #tpu.memory_space<vmem>>, %arg4: memref<8x32xf32, #tpu.memory_space<vmem>>, %arg5: memref<8x2048xf32, #tpu.memory_space<vmem>>, %arg6: memref<8x32xf32, #tpu.memory_space<vmem>>, %arg7: memref<8x32xf32, #tpu.memory_space<vmem>>) attributes {dimension_semantics = [#tpu.dimension_semantics<arbitrary>], iteration_bounds = array<i64: 2>, scalar_prefetch = 0 : i64, scratch_operands = 2 : i64, tpu.core_type = #tpu.core_type<tc>, window_params = [{transform_indices = @transform_0, window_bounds = array<i64: 32, 8, 128>}, {pipeline_mode = #tpu.pipeline_mode<synchronous>, transform_indices = @transform_1, window_bounds = array<i64: 32, 128>}, {pipeline_mode = #tpu.pipeline_mode<synchronous>, transform_indices = @transform_2, window_bounds = array<i64: 8, 32>}, {pipeline_mode = #tpu.pipeline_mode<synchronous>, transform_indices = @transform_3, window_bounds = array<i64: 8, 32>}, {transform_indices = @transform_4, window_bounds = array<i64: 8, 2048>}]} {
    %c0_i32 = arith.constant 0 : i32
    %0 = arith.cmpi eq, %arg0, %c0_i32 : i32
    %1 = arith.extui %0 : i1 to i32
    %c0_i32_0 = arith.constant 0 : i32
    %2 = arith.cmpi ne, %1, %c0_i32_0 : i32
    scf.if %2 {
      %c0_155 = arith.constant 0 : index
      %c0_156 = arith.constant 0 : index
      %680 = vector.load %arg3[%c0_155, %c0_156] : memref<8x32xf32, #tpu.memory_space<vmem>>, vector<8x32xf32>
      %c0_157 = arith.constant 0 : index
      %c0_158 = arith.constant 0 : index
      %681 = vector.load %arg6[%c0_157, %c0_158] : memref<8x32xf32, #tpu.memory_space<vmem>>, vector<8x32xf32>
      tpu.vector_store %arg6[%c0_157, %c0_158], %680 {strides = array<i32>} : memref<8x32xf32, #tpu.memory_space<vmem>>, vector<8x32xf32>,
      %c0_159 = arith.constant 0 : index
      %c0_160 = arith.constant 0 : index
      %682 = vector.load %arg4[%c0_159, %c0_160] : memref<8x32xf32, #tpu.memory_space<vmem>>, vector<8x32xf32>
      %c0_161 = arith.constant 0 : index
      %c0_162 = arith.constant 0 : index
      %683 = vector.load %arg7[%c0_161, %c0_162] : memref<8x32xf32, #tpu.memory_space<vmem>>, vector<8x32xf32>
      tpu.vector_store %arg7[%c0_161, %c0_162], %682 {strides = array<i32>} : memref<8x32xf32, #tpu.memory_space<vmem>>, vector<8x32xf32>,
    } else {
    }
    %c0 = arith.constant 0 : index
    %c0_1 = arith.constant 0 : index
    %3 = vector.load %arg2[%c0, %c0_1] : memref<32x128xf32, #tpu.memory_space<vmem>>, vector<32x128xf32>
    %c0_2 = arith.constant 0 : index
    %c0_3 = arith.constant 0 : index
    %4 = vector.load %arg6[%c0_2, %c0_3] : memref<8x32xf32, #tpu.memory_space<vmem>>, vector<8x32xf32>
    %c0_4 = arith.constant 0 : index
    %c0_5 = arith.constant 0 : index
    %5 = vector.load %arg7[%c0_4, %c0_5] : memref<8x32xf32, #tpu.memory_space<vmem>>, vector<8x32xf32>
    %c0_6 = arith.constant 0 : index
    %c0_7 = arith.constant 0 : index
    %c0_8 = arith.constant 0 : index
    %6 = vector.load %arg1[%c0_6, %c0_7, %c0_8] : memref<32x8x128xf32, #tpu.memory_space<vmem>>, vector<1x8x128xf32>
    %7 = vector.shape_cast %6 : vector<1x8x128xf32> to vector<8x128xf32>
    %cst = arith.constant dense<0.000000e+00> : vector<8x128xf32>
    %8 = tpu.matmul %4, %3, %cst {dimension_numbers = #tpu.dot_dimension_numbers<[1], [0], [0], [1], [0, 0, 1, 1], [], []>} : vector<8x32xf32>, vector<32x128xf32>, vector<8x128xf32> -> vector<8x128xf32>
    %9 = arith.addf %7, %8 : vector<8x128xf32>
    %10 = arith.negf %9 : vector<8x128xf32>
    %11 = math.exp %10 : vector<8x128xf32>
    %cst_9 = arith.constant 1.000000e+00 : f32
    %12 = vector.broadcast %cst_9 : f32 to vector<8x128xf32>
    %13 = arith.addf %12, %11 : vector<8x128xf32>
    %14 = arith.divf %12, %13 : vector<8x128xf32>
    %15 = math.tanh %9 : vector<8x128xf32>
    %16 = vector.extract_strided_slice %14 {offsets = [0, 0], sizes = [8, 32], strides = [1, 1]} : vector<8x128xf32> to vector<8x32xf32>
    %17 = vector.extract_strided_slice %14 {offsets = [0, 32], sizes = [8, 32], strides = [1, 1]} : vector<8x128xf32> to vector<8x32xf32>
    %18 = vector.extract_strided_slice %15 {offsets = [0, 64], sizes = [8, 32], strides = [1, 1]} : vector<8x128xf32> to vector<8x32xf32>
    %19 = vector.extract_strided_slice %14 {offsets = [0, 96], sizes = [8, 32], strides = [1, 1]} : vector<8x128xf32> to vector<8x32xf32>
    %20 = arith.mulf %17, %5 : vector<8x32xf32>
    %21 = arith.mulf %16, %18 : vector<8x32xf32>
    %22 = arith.addf %20, %21 : vector<8x32xf32>
    %23 = math.tanh %22 : vector<8x32xf32>
    %24 = arith.mulf %19, %23 : vector<8x32xf32>
    %25 = tpu.concatenate %24, %22 in 1 : vector<8x32xf32>, vector<8x32xf32> -> vector<8x64xf32>
    %c1 = arith.constant 1 : index
    %c0_10 = arith.constant 0 : index
    %c0_11 = arith.constant 0 : index
    %26 = vector.load %arg1[%c1, %c0_10, %c0_11] : memref<32x8x128xf32, #tpu.memory_space<vmem>>, vector<1x8x128xf32>
    %27 = vector.shape_cast %26 : vector<1x8x128xf32> to vector<8x128xf32>
    %cst_12 = arith.constant dense<0.000000e+00> : vector<8x128xf32>
    %28 = tpu.matmul %24, %3, %cst_12 {dimension_numbers = #tpu.dot_dimension_numbers<[1], [0], [0], [1], [0, 0, 1, 1], [], []>} : vector<8x32xf32>, vector<32x128xf32>, vector<8x128xf32> -> vector<8x128xf32>
    %29 = arith.addf %27, %28 : vector<8x128xf32>
    %30 = arith.negf %29 : vector<8x128xf32>
    %31 = math.exp %30 : vector<8x128xf32>
    %cst_13 = arith.constant 1.000000e+00 : f32
    %32 = vector.broadcast %cst_13 : f32 to vector<8x128xf32>
    %33 = arith.addf %32, %31 : vector<8x128xf32>
    %34 = arith.divf %32, %33 : vector<8x128xf32>
    %35 = math.tanh %29 : vector<8x128xf32>
    %36 = vector.extract_strided_slice %34 {offsets = [0, 0], sizes = [8, 32], strides = [1, 1]} : vector<8x128xf32> to vector<8x32xf32>
    %37 = vector.extract_strided_slice %34 {offsets = [0, 32], sizes = [8, 32], strides = [1, 1]} : vector<8x128xf32> to vector<8x32xf32>
    %38 = vector.extract_strided_slice %35 {offsets = [0, 64], sizes = [8, 32], strides = [1, 1]} : vector<8x128xf32> to vector<8x32xf32>
    %39 = vector.extract_strided_slice %34 {offsets = [0, 96], sizes = [8, 32], strides = [1, 1]} : vector<8x128xf32> to vector<8x32xf32>
    %40 = arith.mulf %37, %22 : vector<8x32xf32>
    %41 = arith.mulf %36, %38 : vector<8x32xf32>
    %42 = arith.addf %40, %41 : vector<8x32xf32>
    %43 = math.tanh %42 : vector<8x32xf32>
    %44 = arith.mulf %39, %43 : vector<8x32xf32>
    %45 = tpu.concatenate %44, %42 in 1 : vector<8x32xf32>, vector<8x32xf32> -> vector<8x64xf32>
    %46 = tpu.concatenate %25, %45 in 1 : vector<8x64xf32>, vector<8x64xf32> -> vector<8x128xf32>
    %c0_14 = arith.constant 0 : index
    %c0_15 = arith.constant 0 : index
    %47 = vector.load %arg5[%c0_14, %c0_15] : memref<8x2048xf32, #tpu.memory_space<vmem>>, vector<8x128xf32>
    tpu.vector_store %arg5[%c0_14, %c0_15], %46 {strides = array<i32>} : memref<8x2048xf32, #tpu.memory_space<vmem>>, vector<8x128xf32>,
    %c2 = arith.constant 2 : index
    %c0_16 = arith.constant 0 : index
    %c0_17 = arith.constant 0 : index
    %48 = vector.load %arg1[%c2, %c0_16, %c0_17] : memref<32x8x128xf32, #tpu.memory_space<vmem>>, vector<1x8x128xf32>
    %49 = vector.shape_cast %48 : vector<1x8x128xf32> to vector<8x128xf32>
    %cst_18 = arith.constant dense<0.000000e+00> : vector<8x128xf32>
    %50 = tpu.matmul %44, %3, %cst_18 {dimension_numbers = #tpu.dot_dimension_numbers<[1], [0], [0], [1], [0, 0, 1, 1], [], []>} : vector<8x32xf32>, vector<32x128xf32>, vector<8x128xf32> -> vector<8x128xf32>
    %51 = arith.addf %49, %50 : vector<8x128xf32>
    %52 = arith.negf %51 : vector<8x128xf32>
    %53 = math.exp %52 : vector<8x128xf32>
    %cst_19 = arith.constant 1.000000e+00 : f32
    %54 = vector.broadcast %cst_19 : f32 to vector<8x128xf32>
    %55 = arith.addf %54, %53 : vector<8x128xf32>
    %56 = arith.divf %54, %55 : vector<8x128xf32>
    %57 = math.tanh %51 : vector<8x128xf32>
    %58 = vector.extract_strided_slice %56 {offsets = [0, 0], sizes = [8, 32], strides = [1, 1]} : vector<8x128xf32> to vector<8x32xf32>
    %59 = vector.extract_strided_slice %56 {offsets = [0, 32], sizes = [8, 32], strides = [1, 1]} : vector<8x128xf32> to vector<8x32xf32>
    %60 = vector.extract_strided_slice %57 {offsets = [0, 64], sizes = [8, 32], strides = [1, 1]} : vector<8x128xf32> to vector<8x32xf32>
    %61 = vector.extract_strided_slice %56 {offsets = [0, 96], sizes = [8, 32], strides = [1, 1]} : vector<8x128xf32> to vector<8x32xf32>
    %62 = arith.mulf %59, %42 : vector<8x32xf32>
    %63 = arith.mulf %58, %60 : vector<8x32xf32>
    %64 = arith.addf %62, %63 : vector<8x32xf32>
    %65 = math.tanh %64 : vector<8x32xf32>
    %66 = arith.mulf %61, %65 : vector<8x32xf32>
    %67 = tpu.concatenate %66, %64 in 1 : vector<8x32xf32>, vector<8x32xf32> -> vector<8x64xf32>
    %c3 = arith.constant 3 : index
    %c0_20 = arith.constant 0 : index
    %c0_21 = arith.constant 0 : index
    %68 = vector.load %arg1[%c3, %c0_20, %c0_21] : memref<32x8x128xf32, #tpu.memory_space<vmem>>, vector<1x8x128xf32>
    %69 = vector.shape_cast %68 : vector<1x8x128xf32> to vector<8x128xf32>
    %cst_22 = arith.constant dense<0.000000e+00> : vector<8x128xf32>
    %70 = tpu.matmul %66, %3, %cst_22 {dimension_numbers = #tpu.dot_dimension_numbers<[1], [0], [0], [1], [0, 0, 1, 1], [], []>} : vector<8x32xf32>, vector<32x128xf32>, vector<8x128xf32> -> vector<8x128xf32>
    %71 = arith.addf %69, %70 : vector<8x128xf32>
    %72 = arith.negf %71 : vector<8x128xf32>
    %73 = math.exp %72 : vector<8x128xf32>
    %cst_23 = arith.constant 1.000000e+00 : f32
    %74 = vector.broadcast %cst_23 : f32 to vector<8x128xf32>
    %75 = arith.addf %74, %73 : vector<8x128xf32>
    %76 = arith.divf %74, %75 : vector<8x128xf32>
    %77 = math.tanh %71 : vector<8x128xf32>
    %78 = vector.extract_strided_slice %76 {offsets = [0, 0], sizes = [8, 32], strides = [1, 1]} : vector<8x128xf32> to vector<8x32xf32>
    %79 = vector.extract_strided_slice %76 {offsets = [0, 32], sizes = [8, 32], strides = [1, 1]} : vector<8x128xf32> to vector<8x32xf32>
    %80 = vector.extract_strided_slice %77 {offsets = [0, 64], sizes = [8, 32], strides = [1, 1]} : vector<8x128xf32> to vector<8x32xf32>
    %81 = vector.extract_strided_slice %76 {offsets = [0, 96], sizes = [8, 32], strides = [1, 1]} : vector<8x128xf32> to vector<8x32xf32>
    %82 = arith.mulf %79, %64 : vector<8x32xf32>
    %83 = arith.mulf %78, %80 : vector<8x32xf32>
    %84 = arith.addf %82, %83 : vector<8x32xf32>
    %85 = math.tanh %84 : vector<8x32xf32>
    %86 = arith.mulf %81, %85 : vector<8x32xf32>
    %87 = tpu.concatenate %86, %84 in 1 : vector<8x32xf32>, vector<8x32xf32> -> vector<8x64xf32>
    %88 = tpu.concatenate %67, %87 in 1 : vector<8x64xf32>, vector<8x64xf32> -> vector<8x128xf32>
    %c0_24 = arith.constant 0 : index
    %c128 = arith.constant 128 : index
    %89 = vector.load %arg5[%c0_24, %c128] : memref<8x2048xf32, #tpu.memory_space<vmem>>, vector<8x128xf32>
    tpu.vector_store %arg5[%c0_24, %c128], %88 {strides = array<i32>} : memref<8x2048xf32, #tpu.memory_space<vmem>>, vector<8x128xf32>,
    %c4 = arith.constant 4 : index
    %c0_25 = arith.constant 0 : index
    %c0_26 = arith.constant 0 : index
    %90 = vector.load %arg1[%c4, %c0_25, %c0_26] : memref<32x8x128xf32, #tpu.memory_space<vmem>>, vector<1x8x128xf32>
    %91 = vector.shape_cast %90 : vector<1x8x128xf32> to vector<8x128xf32>
    %cst_27 = arith.constant dense<0.000000e+00> : vector<8x128xf32>
    %92 = tpu.matmul %86, %3, %cst_27 {dimension_numbers = #tpu.dot_dimension_numbers<[1], [0], [0], [1], [0, 0, 1, 1], [], []>} : vector<8x32xf32>, vector<32x128xf32>, vector<8x128xf32> -> vector<8x128xf32>
    %93 = arith.addf %91, %92 : vector<8x128xf32>
    %94 = arith.negf %93 : vector<8x128xf32>
    %95 = math.exp %94 : vector<8x128xf32>
    %cst_28 = arith.constant 1.000000e+00 : f32
    %96 = vector.broadcast %cst_28 : f32 to vector<8x128xf32>
    %97 = arith.addf %96, %95 : vector<8x128xf32>
    %98 = arith.divf %96, %97 : vector<8x128xf32>
    %99 = math.tanh %93 : vector<8x128xf32>
    %100 = vector.extract_strided_slice %98 {offsets = [0, 0], sizes = [8, 32], strides = [1, 1]} : vector<8x128xf32> to vector<8x32xf32>
    %101 = vector.extract_strided_slice %98 {offsets = [0, 32], sizes = [8, 32], strides = [1, 1]} : vector<8x128xf32> to vector<8x32xf32>
    %102 = vector.extract_strided_slice %99 {offsets = [0, 64], sizes = [8, 32], strides = [1, 1]} : vector<8x128xf32> to vector<8x32xf32>
    %103 = vector.extract_strided_slice %98 {offsets = [0, 96], sizes = [8, 32], strides = [1, 1]} : vector<8x128xf32> to vector<8x32xf32>
    %104 = arith.mulf %101, %84 : vector<8x32xf32>
    %105 = arith.mulf %100, %102 : vector<8x32xf32>
    %106 = arith.addf %104, %105 : vector<8x32xf32>
    %107 = math.tanh %106 : vector<8x32xf32>
    %108 = arith.mulf %103, %107 : vector<8x32xf32>
    %109 = tpu.concatenate %108, %106 in 1 : vector<8x32xf32>, vector<8x32xf32> -> vector<8x64xf32>
    %c5 = arith.constant 5 : index
    %c0_29 = arith.constant 0 : index
    %c0_30 = arith.constant 0 : index
    %110 = vector.load %arg1[%c5, %c0_29, %c0_30] : memref<32x8x128xf32, #tpu.memory_space<vmem>>, vector<1x8x128xf32>
    %111 = vector.shape_cast %110 : vector<1x8x128xf32> to vector<8x128xf32>
    %cst_31 = arith.constant dense<0.000000e+00> : vector<8x128xf32>
    %112 = tpu.matmul %108, %3, %cst_31 {dimension_numbers = #tpu.dot_dimension_numbers<[1], [0], [0], [1], [0, 0, 1, 1], [], []>} : vector<8x32xf32>, vector<32x128xf32>, vector<8x128xf32> -> vector<8x128xf32>
    %113 = arith.addf %111, %112 : vector<8x128xf32>
    %114 = arith.negf %113 : vector<8x128xf32>
    %115 = math.exp %114 : vector<8x128xf32>
    %cst_32 = arith.constant 1.000000e+00 : f32
    %116 = vector.broadcast %cst_32 : f32 to vector<8x128xf32>
    %117 = arith.addf %116, %115 : vector<8x128xf32>
    %118 = arith.divf %116, %117 : vector<8x128xf32>
    %119 = math.tanh %113 : vector<8x128xf32>
    %120 = vector.extract_strided_slice %118 {offsets = [0, 0], sizes = [8, 32], strides = [1, 1]} : vector<8x128xf32> to vector<8x32xf32>
    %121 = vector.extract_strided_slice %118 {offsets = [0, 32], sizes = [8, 32], strides = [1, 1]} : vector<8x128xf32> to vector<8x32xf32>
    %122 = vector.extract_strided_slice %119 {offsets = [0, 64], sizes = [8, 32], strides = [1, 1]} : vector<8x128xf32> to vector<8x32xf32>
    %123 = vector.extract_strided_slice %118 {offsets = [0, 96], sizes = [8, 32], strides = [1, 1]} : vector<8x128xf32> to vector<8x32xf32>
    %124 = arith.mulf %121, %106 : vector<8x32xf32>
    %125 = arith.mulf %120, %122 : vector<8x32xf32>
    %126 = arith.addf %124, %125 : vector<8x32xf32>
    %127 = math.tanh %126 : vector<8x32xf32>
    %128 = arith.mulf %123, %127 : vector<8x32xf32>
    %129 = tpu.concatenate %128, %126 in 1 : vector<8x32xf32>, vector<8x32xf32> -> vector<8x64xf32>
    %130 = tpu.concatenate %109, %129 in 1 : vector<8x64xf32>, vector<8x64xf32> -> vector<8x128xf32>
    %c0_33 = arith.constant 0 : index
    %c256 = arith.constant 256 : index
    %131 = vector.load %arg5[%c0_33, %c256] : memref<8x2048xf32, #tpu.memory_space<vmem>>, vector<8x128xf32>
    tpu.vector_store %arg5[%c0_33, %c256], %130 {strides = array<i32>} : memref<8x2048xf32, #tpu.memory_space<vmem>>, vector<8x128xf32>,
    %c6 = arith.constant 6 : index
    %c0_34 = arith.constant 0 : index
    %c0_35 = arith.constant 0 : index
    %132 = vector.load %arg1[%c6, %c0_34, %c0_35] : memref<32x8x128xf32, #tpu.memory_space<vmem>>, vector<1x8x128xf32>
    %133 = vector.shape_cast %132 : vector<1x8x128xf32> to vector<8x128xf32>
    %cst_36 = arith.constant dense<0.000000e+00> : vector<8x128xf32>
    %134 = tpu.matmul %128, %3, %cst_36 {dimension_numbers = #tpu.dot_dimension_numbers<[1], [0], [0], [1], [0, 0, 1, 1], [], []>} : vector<8x32xf32>, vector<32x128xf32>, vector<8x128xf32> -> vector<8x128xf32>
    %135 = arith.addf %133, %134 : vector<8x128xf32>
    %136 = arith.negf %135 : vector<8x128xf32>
    %137 = math.exp %136 : vector<8x128xf32>
    %cst_37 = arith.constant 1.000000e+00 : f32
    %138 = vector.broadcast %cst_37 : f32 to vector<8x128xf32>
    %139 = arith.addf %138, %137 : vector<8x128xf32>
    %140 = arith.divf %138, %139 : vector<8x128xf32>
    %141 = math.tanh %135 : vector<8x128xf32>
    %142 = vector.extract_strided_slice %140 {offsets = [0, 0], sizes = [8, 32], strides = [1, 1]} : vector<8x128xf32> to vector<8x32xf32>
    %143 = vector.extract_strided_slice %140 {offsets = [0, 32], sizes = [8, 32], strides = [1, 1]} : vector<8x128xf32> to vector<8x32xf32>
    %144 = vector.extract_strided_slice %141 {offsets = [0, 64], sizes = [8, 32], strides = [1, 1]} : vector<8x128xf32> to vector<8x32xf32>
    %145 = vector.extract_strided_slice %140 {offsets = [0, 96], sizes = [8, 32], strides = [1, 1]} : vector<8x128xf32> to vector<8x32xf32>
    %146 = arith.mulf %143, %126 : vector<8x32xf32>
    %147 = arith.mulf %142, %144 : vector<8x32xf32>
    %148 = arith.addf %146, %147 : vector<8x32xf32>
    %149 = math.tanh %148 : vector<8x32xf32>
    %150 = arith.mulf %145, %149 : vector<8x32xf32>
    %151 = tpu.concatenate %150, %148 in 1 : vector<8x32xf32>, vector<8x32xf32> -> vector<8x64xf32>
    %c7 = arith.constant 7 : index
    %c0_38 = arith.constant 0 : index
    %c0_39 = arith.constant 0 : index
    %152 = vector.load %arg1[%c7, %c0_38, %c0_39] : memref<32x8x128xf32, #tpu.memory_space<vmem>>, vector<1x8x128xf32>
    %153 = vector.shape_cast %152 : vector<1x8x128xf32> to vector<8x128xf32>
    %cst_40 = arith.constant dense<0.000000e+00> : vector<8x128xf32>
    %154 = tpu.matmul %150, %3, %cst_40 {dimension_numbers = #tpu.dot_dimension_numbers<[1], [0], [0], [1], [0, 0, 1, 1], [], []>} : vector<8x32xf32>, vector<32x128xf32>, vector<8x128xf32> -> vector<8x128xf32>
    %155 = arith.addf %153, %154 : vector<8x128xf32>
    %156 = arith.negf %155 : vector<8x128xf32>
    %157 = math.exp %156 : vector<8x128xf32>
    %cst_41 = arith.constant 1.000000e+00 : f32
    %158 = vector.broadcast %cst_41 : f32 to vector<8x128xf32>
    %159 = arith.addf %158, %157 : vector<8x128xf32>
    %160 = arith.divf %158, %159 : vector<8x128xf32>
    %161 = math.tanh %155 : vector<8x128xf32>
    %162 = vector.extract_strided_slice %160 {offsets = [0, 0], sizes = [8, 32], strides = [1, 1]} : vector<8x128xf32> to vector<8x32xf32>
    %163 = vector.extract_strided_slice %160 {offsets = [0, 32], sizes = [8, 32], strides = [1, 1]} : vector<8x128xf32> to vector<8x32xf32>
    %164 = vector.extract_strided_slice %161 {offsets = [0, 64], sizes = [8, 32], strides = [1, 1]} : vector<8x128xf32> to vector<8x32xf32>
    %165 = vector.extract_strided_slice %160 {offsets = [0, 96], sizes = [8, 32], strides = [1, 1]} : vector<8x128xf32> to vector<8x32xf32>
    %166 = arith.mulf %163, %148 : vector<8x32xf32>
    %167 = arith.mulf %162, %164 : vector<8x32xf32>
    %168 = arith.addf %166, %167 : vector<8x32xf32>
    %169 = math.tanh %168 : vector<8x32xf32>
    %170 = arith.mulf %165, %169 : vector<8x32xf32>
    %171 = tpu.concatenate %170, %168 in 1 : vector<8x32xf32>, vector<8x32xf32> -> vector<8x64xf32>
    %172 = tpu.concatenate %151, %171 in 1 : vector<8x64xf32>, vector<8x64xf32> -> vector<8x128xf32>
    %c0_42 = arith.constant 0 : index
    %c384 = arith.constant 384 : index
    %173 = vector.load %arg5[%c0_42, %c384] : memref<8x2048xf32, #tpu.memory_space<vmem>>, vector<8x128xf32>
    tpu.vector_store %arg5[%c0_42, %c384], %172 {strides = array<i32>} : memref<8x2048xf32, #tpu.memory_space<vmem>>, vector<8x128xf32>,
    %c8 = arith.constant 8 : index
    %c0_43 = arith.constant 0 : index
    %c0_44 = arith.constant 0 : index
    %174 = vector.load %arg1[%c8, %c0_43, %c0_44] : memref<32x8x128xf32, #tpu.memory_space<vmem>>, vector<1x8x128xf32>
    %175 = vector.shape_cast %174 : vector<1x8x128xf32> to vector<8x128xf32>
    %cst_45 = arith.constant dense<0.000000e+00> : vector<8x128xf32>
    %176 = tpu.matmul %170, %3, %cst_45 {dimension_numbers = #tpu.dot_dimension_numbers<[1], [0], [0], [1], [0, 0, 1, 1], [], []>} : vector<8x32xf32>, vector<32x128xf32>, vector<8x128xf32> -> vector<8x128xf32>
    %177 = arith.addf %175, %176 : vector<8x128xf32>
    %178 = arith.negf %177 : vector<8x128xf32>
    %179 = math.exp %178 : vector<8x128xf32>
    %cst_46 = arith.constant 1.000000e+00 : f32
    %180 = vector.broadcast %cst_46 : f32 to vector<8x128xf32>
    %181 = arith.addf %180, %179 : vector<8x128xf32>
    %182 = arith.divf %180, %181 : vector<8x128xf32>
    %183 = math.tanh %177 : vector<8x128xf32>
    %184 = vector.extract_strided_slice %182 {offsets = [0, 0], sizes = [8, 32], strides = [1, 1]} : vector<8x128xf32> to vector<8x32xf32>
    %185 = vector.extract_strided_slice %182 {offsets = [0, 32], sizes = [8, 32], strides = [1, 1]} : vector<8x128xf32> to vector<8x32xf32>
    %186 = vector.extract_strided_slice %183 {offsets = [0, 64], sizes = [8, 32], strides = [1, 1]} : vector<8x128xf32> to vector<8x32xf32>
    %187 = vector.extract_strided_slice %182 {offsets = [0, 96], sizes = [8, 32], strides = [1, 1]} : vector<8x128xf32> to vector<8x32xf32>
    %188 = arith.mulf %185, %168 : vector<8x32xf32>
    %189 = arith.mulf %184, %186 : vector<8x32xf32>
    %190 = arith.addf %188, %189 : vector<8x32xf32>
    %191 = math.tanh %190 : vector<8x32xf32>
    %192 = arith.mulf %187, %191 : vector<8x32xf32>
    %193 = tpu.concatenate %192, %190 in 1 : vector<8x32xf32>, vector<8x32xf32> -> vector<8x64xf32>
    %c9 = arith.constant 9 : index
    %c0_47 = arith.constant 0 : index
    %c0_48 = arith.constant 0 : index
    %194 = vector.load %arg1[%c9, %c0_47, %c0_48] : memref<32x8x128xf32, #tpu.memory_space<vmem>>, vector<1x8x128xf32>
    %195 = vector.shape_cast %194 : vector<1x8x128xf32> to vector<8x128xf32>
    %cst_49 = arith.constant dense<0.000000e+00> : vector<8x128xf32>
    %196 = tpu.matmul %192, %3, %cst_49 {dimension_numbers = #tpu.dot_dimension_numbers<[1], [0], [0], [1], [0, 0, 1, 1], [], []>} : vector<8x32xf32>, vector<32x128xf32>, vector<8x128xf32> -> vector<8x128xf32>
    %197 = arith.addf %195, %196 : vector<8x128xf32>
    %198 = arith.negf %197 : vector<8x128xf32>
    %199 = math.exp %198 : vector<8x128xf32>
    %cst_50 = arith.constant 1.000000e+00 : f32
    %200 = vector.broadcast %cst_50 : f32 to vector<8x128xf32>
    %201 = arith.addf %200, %199 : vector<8x128xf32>
    %202 = arith.divf %200, %201 : vector<8x128xf32>
    %203 = math.tanh %197 : vector<8x128xf32>
    %204 = vector.extract_strided_slice %202 {offsets = [0, 0], sizes = [8, 32], strides = [1, 1]} : vector<8x128xf32> to vector<8x32xf32>
    %205 = vector.extract_strided_slice %202 {offsets = [0, 32], sizes = [8, 32], strides = [1, 1]} : vector<8x128xf32> to vector<8x32xf32>
    %206 = vector.extract_strided_slice %203 {offsets = [0, 64], sizes = [8, 32], strides = [1, 1]} : vector<8x128xf32> to vector<8x32xf32>
    %207 = vector.extract_strided_slice %202 {offsets = [0, 96], sizes = [8, 32], strides = [1, 1]} : vector<8x128xf32> to vector<8x32xf32>
    %208 = arith.mulf %205, %190 : vector<8x32xf32>
    %209 = arith.mulf %204, %206 : vector<8x32xf32>
    %210 = arith.addf %208, %209 : vector<8x32xf32>
    %211 = math.tanh %210 : vector<8x32xf32>
    %212 = arith.mulf %207, %211 : vector<8x32xf32>
    %213 = tpu.concatenate %212, %210 in 1 : vector<8x32xf32>, vector<8x32xf32> -> vector<8x64xf32>
    %214 = tpu.concatenate %193, %213 in 1 : vector<8x64xf32>, vector<8x64xf32> -> vector<8x128xf32>
    %c0_51 = arith.constant 0 : index
    %c512 = arith.constant 512 : index
    %215 = vector.load %arg5[%c0_51, %c512] : memref<8x2048xf32, #tpu.memory_space<vmem>>, vector<8x128xf32>
    tpu.vector_store %arg5[%c0_51, %c512], %214 {strides = array<i32>} : memref<8x2048xf32, #tpu.memory_space<vmem>>, vector<8x128xf32>,
    %c10 = arith.constant 10 : index
    %c0_52 = arith.constant 0 : index
    %c0_53 = arith.constant 0 : index
    %216 = vector.load %arg1[%c10, %c0_52, %c0_53] : memref<32x8x128xf32, #tpu.memory_space<vmem>>, vector<1x8x128xf32>
    %217 = vector.shape_cast %216 : vector<1x8x128xf32> to vector<8x128xf32>
    %cst_54 = arith.constant dense<0.000000e+00> : vector<8x128xf32>
    %218 = tpu.matmul %212, %3, %cst_54 {dimension_numbers = #tpu.dot_dimension_numbers<[1], [0], [0], [1], [0, 0, 1, 1], [], []>} : vector<8x32xf32>, vector<32x128xf32>, vector<8x128xf32> -> vector<8x128xf32>
    %219 = arith.addf %217, %218 : vector<8x128xf32>
    %220 = arith.negf %219 : vector<8x128xf32>
    %221 = math.exp %220 : vector<8x128xf32>
    %cst_55 = arith.constant 1.000000e+00 : f32
    %222 = vector.broadcast %cst_55 : f32 to vector<8x128xf32>
    %223 = arith.addf %222, %221 : vector<8x128xf32>
    %224 = arith.divf %222, %223 : vector<8x128xf32>
    %225 = math.tanh %219 : vector<8x128xf32>
    %226 = vector.extract_strided_slice %224 {offsets = [0, 0], sizes = [8, 32], strides = [1, 1]} : vector<8x128xf32> to vector<8x32xf32>
    %227 = vector.extract_strided_slice %224 {offsets = [0, 32], sizes = [8, 32], strides = [1, 1]} : vector<8x128xf32> to vector<8x32xf32>
    %228 = vector.extract_strided_slice %225 {offsets = [0, 64], sizes = [8, 32], strides = [1, 1]} : vector<8x128xf32> to vector<8x32xf32>
    %229 = vector.extract_strided_slice %224 {offsets = [0, 96], sizes = [8, 32], strides = [1, 1]} : vector<8x128xf32> to vector<8x32xf32>
    %230 = arith.mulf %227, %210 : vector<8x32xf32>
    %231 = arith.mulf %226, %228 : vector<8x32xf32>
    %232 = arith.addf %230, %231 : vector<8x32xf32>
    %233 = math.tanh %232 : vector<8x32xf32>
    %234 = arith.mulf %229, %233 : vector<8x32xf32>
    %235 = tpu.concatenate %234, %232 in 1 : vector<8x32xf32>, vector<8x32xf32> -> vector<8x64xf32>
    %c11 = arith.constant 11 : index
    %c0_56 = arith.constant 0 : index
    %c0_57 = arith.constant 0 : index
    %236 = vector.load %arg1[%c11, %c0_56, %c0_57] : memref<32x8x128xf32, #tpu.memory_space<vmem>>, vector<1x8x128xf32>
    %237 = vector.shape_cast %236 : vector<1x8x128xf32> to vector<8x128xf32>
    %cst_58 = arith.constant dense<0.000000e+00> : vector<8x128xf32>
    %238 = tpu.matmul %234, %3, %cst_58 {dimension_numbers = #tpu.dot_dimension_numbers<[1], [0], [0], [1], [0, 0, 1, 1], [], []>} : vector<8x32xf32>, vector<32x128xf32>, vector<8x128xf32> -> vector<8x128xf32>
    %239 = arith.addf %237, %238 : vector<8x128xf32>
    %240 = arith.negf %239 : vector<8x128xf32>
    %241 = math.exp %240 : vector<8x128xf32>
    %cst_59 = arith.constant 1.000000e+00 : f32
    %242 = vector.broadcast %cst_59 : f32 to vector<8x128xf32>
    %243 = arith.addf %242, %241 : vector<8x128xf32>
    %244 = arith.divf %242, %243 : vector<8x128xf32>
    %245 = math.tanh %239 : vector<8x128xf32>
    %246 = vector.extract_strided_slice %244 {offsets = [0, 0], sizes = [8, 32], strides = [1, 1]} : vector<8x128xf32> to vector<8x32xf32>
    %247 = vector.extract_strided_slice %244 {offsets = [0, 32], sizes = [8, 32], strides = [1, 1]} : vector<8x128xf32> to vector<8x32xf32>
    %248 = vector.extract_strided_slice %245 {offsets = [0, 64], sizes = [8, 32], strides = [1, 1]} : vector<8x128xf32> to vector<8x32xf32>
    %249 = vector.extract_strided_slice %244 {offsets = [0, 96], sizes = [8, 32], strides = [1, 1]} : vector<8x128xf32> to vector<8x32xf32>
    %250 = arith.mulf %247, %232 : vector<8x32xf32>
    %251 = arith.mulf %246, %248 : vector<8x32xf32>
    %252 = arith.addf %250, %251 : vector<8x32xf32>
    %253 = math.tanh %252 : vector<8x32xf32>
    %254 = arith.mulf %249, %253 : vector<8x32xf32>
    %255 = tpu.concatenate %254, %252 in 1 : vector<8x32xf32>, vector<8x32xf32> -> vector<8x64xf32>
    %256 = tpu.concatenate %235, %255 in 1 : vector<8x64xf32>, vector<8x64xf32> -> vector<8x128xf32>
    %c0_60 = arith.constant 0 : index
    %c640 = arith.constant 640 : index
    %257 = vector.load %arg5[%c0_60, %c640] : memref<8x2048xf32, #tpu.memory_space<vmem>>, vector<8x128xf32>
    tpu.vector_store %arg5[%c0_60, %c640], %256 {strides = array<i32>} : memref<8x2048xf32, #tpu.memory_space<vmem>>, vector<8x128xf32>,
    %c12 = arith.constant 12 : index
    %c0_61 = arith.constant 0 : index
    %c0_62 = arith.constant 0 : index
    %258 = vector.load %arg1[%c12, %c0_61, %c0_62] : memref<32x8x128xf32, #tpu.memory_space<vmem>>, vector<1x8x128xf32>
    %259 = vector.shape_cast %258 : vector<1x8x128xf32> to vector<8x128xf32>
    %cst_63 = arith.constant dense<0.000000e+00> : vector<8x128xf32>
    %260 = tpu.matmul %254, %3, %cst_63 {dimension_numbers = #tpu.dot_dimension_numbers<[1], [0], [0], [1], [0, 0, 1, 1], [], []>} : vector<8x32xf32>, vector<32x128xf32>, vector<8x128xf32> -> vector<8x128xf32>
    %261 = arith.addf %259, %260 : vector<8x128xf32>
    %262 = arith.negf %261 : vector<8x128xf32>
    %263 = math.exp %262 : vector<8x128xf32>
    %cst_64 = arith.constant 1.000000e+00 : f32
    %264 = vector.broadcast %cst_64 : f32 to vector<8x128xf32>
    %265 = arith.addf %264, %263 : vector<8x128xf32>
    %266 = arith.divf %264, %265 : vector<8x128xf32>
    %267 = math.tanh %261 : vector<8x128xf32>
    %268 = vector.extract_strided_slice %266 {offsets = [0, 0], sizes = [8, 32], strides = [1, 1]} : vector<8x128xf32> to vector<8x32xf32>
    %269 = vector.extract_strided_slice %266 {offsets = [0, 32], sizes = [8, 32], strides = [1, 1]} : vector<8x128xf32> to vector<8x32xf32>
    %270 = vector.extract_strided_slice %267 {offsets = [0, 64], sizes = [8, 32], strides = [1, 1]} : vector<8x128xf32> to vector<8x32xf32>
    %271 = vector.extract_strided_slice %266 {offsets = [0, 96], sizes = [8, 32], strides = [1, 1]} : vector<8x128xf32> to vector<8x32xf32>
    %272 = arith.mulf %269, %252 : vector<8x32xf32>
    %273 = arith.mulf %268, %270 : vector<8x32xf32>
    %274 = arith.addf %272, %273 : vector<8x32xf32>
    %275 = math.tanh %274 : vector<8x32xf32>
    %276 = arith.mulf %271, %275 : vector<8x32xf32>
    %277 = tpu.concatenate %276, %274 in 1 : vector<8x32xf32>, vector<8x32xf32> -> vector<8x64xf32>
    %c13 = arith.constant 13 : index
    %c0_65 = arith.constant 0 : index
    %c0_66 = arith.constant 0 : index
    %278 = vector.load %arg1[%c13, %c0_65, %c0_66] : memref<32x8x128xf32, #tpu.memory_space<vmem>>, vector<1x8x128xf32>
    %279 = vector.shape_cast %278 : vector<1x8x128xf32> to vector<8x128xf32>
    %cst_67 = arith.constant dense<0.000000e+00> : vector<8x128xf32>
    %280 = tpu.matmul %276, %3, %cst_67 {dimension_numbers = #tpu.dot_dimension_numbers<[1], [0], [0], [1], [0, 0, 1, 1], [], []>} : vector<8x32xf32>, vector<32x128xf32>, vector<8x128xf32> -> vector<8x128xf32>
    %281 = arith.addf %279, %280 : vector<8x128xf32>
    %282 = arith.negf %281 : vector<8x128xf32>
    %283 = math.exp %282 : vector<8x128xf32>
    %cst_68 = arith.constant 1.000000e+00 : f32
    %284 = vector.broadcast %cst_68 : f32 to vector<8x128xf32>
    %285 = arith.addf %284, %283 : vector<8x128xf32>
    %286 = arith.divf %284, %285 : vector<8x128xf32>
    %287 = math.tanh %281 : vector<8x128xf32>
    %288 = vector.extract_strided_slice %286 {offsets = [0, 0], sizes = [8, 32], strides = [1, 1]} : vector<8x128xf32> to vector<8x32xf32>
    %289 = vector.extract_strided_slice %286 {offsets = [0, 32], sizes = [8, 32], strides = [1, 1]} : vector<8x128xf32> to vector<8x32xf32>
    %290 = vector.extract_strided_slice %287 {offsets = [0, 64], sizes = [8, 32], strides = [1, 1]} : vector<8x128xf32> to vector<8x32xf32>
    %291 = vector.extract_strided_slice %286 {offsets = [0, 96], sizes = [8, 32], strides = [1, 1]} : vector<8x128xf32> to vector<8x32xf32>
    %292 = arith.mulf %289, %274 : vector<8x32xf32>
    %293 = arith.mulf %288, %290 : vector<8x32xf32>
    %294 = arith.addf %292, %293 : vector<8x32xf32>
    %295 = math.tanh %294 : vector<8x32xf32>
    %296 = arith.mulf %291, %295 : vector<8x32xf32>
    %297 = tpu.concatenate %296, %294 in 1 : vector<8x32xf32>, vector<8x32xf32> -> vector<8x64xf32>
    %298 = tpu.concatenate %277, %297 in 1 : vector<8x64xf32>, vector<8x64xf32> -> vector<8x128xf32>
    %c0_69 = arith.constant 0 : index
    %c768 = arith.constant 768 : index
    %299 = vector.load %arg5[%c0_69, %c768] : memref<8x2048xf32, #tpu.memory_space<vmem>>, vector<8x128xf32>
    tpu.vector_store %arg5[%c0_69, %c768], %298 {strides = array<i32>} : memref<8x2048xf32, #tpu.memory_space<vmem>>, vector<8x128xf32>,
    %c14 = arith.constant 14 : index
    %c0_70 = arith.constant 0 : index
    %c0_71 = arith.constant 0 : index
    %300 = vector.load %arg1[%c14, %c0_70, %c0_71] : memref<32x8x128xf32, #tpu.memory_space<vmem>>, vector<1x8x128xf32>
    %301 = vector.shape_cast %300 : vector<1x8x128xf32> to vector<8x128xf32>
    %cst_72 = arith.constant dense<0.000000e+00> : vector<8x128xf32>
    %302 = tpu.matmul %296, %3, %cst_72 {dimension_numbers = #tpu.dot_dimension_numbers<[1], [0], [0], [1], [0, 0, 1, 1], [], []>} : vector<8x32xf32>, vector<32x128xf32>, vector<8x128xf32> -> vector<8x128xf32>
    %303 = arith.addf %301, %302 : vector<8x128xf32>
    %304 = arith.negf %303 : vector<8x128xf32>
    %305 = math.exp %304 : vector<8x128xf32>
    %cst_73 = arith.constant 1.000000e+00 : f32
    %306 = vector.broadcast %cst_73 : f32 to vector<8x128xf32>
    %307 = arith.addf %306, %305 : vector<8x128xf32>
    %308 = arith.divf %306, %307 : vector<8x128xf32>
    %309 = math.tanh %303 : vector<8x128xf32>
    %310 = vector.extract_strided_slice %308 {offsets = [0, 0], sizes = [8, 32], strides = [1, 1]} : vector<8x128xf32> to vector<8x32xf32>
    %311 = vector.extract_strided_slice %308 {offsets = [0, 32], sizes = [8, 32], strides = [1, 1]} : vector<8x128xf32> to vector<8x32xf32>
    %312 = vector.extract_strided_slice %309 {offsets = [0, 64], sizes = [8, 32], strides = [1, 1]} : vector<8x128xf32> to vector<8x32xf32>
    %313 = vector.extract_strided_slice %308 {offsets = [0, 96], sizes = [8, 32], strides = [1, 1]} : vector<8x128xf32> to vector<8x32xf32>
    %314 = arith.mulf %311, %294 : vector<8x32xf32>
    %315 = arith.mulf %310, %312 : vector<8x32xf32>
    %316 = arith.addf %314, %315 : vector<8x32xf32>
    %317 = math.tanh %316 : vector<8x32xf32>
    %318 = arith.mulf %313, %317 : vector<8x32xf32>
    %319 = tpu.concatenate %318, %316 in 1 : vector<8x32xf32>, vector<8x32xf32> -> vector<8x64xf32>
    %c15 = arith.constant 15 : index
    %c0_74 = arith.constant 0 : index
    %c0_75 = arith.constant 0 : index
    %320 = vector.load %arg1[%c15, %c0_74, %c0_75] : memref<32x8x128xf32, #tpu.memory_space<vmem>>, vector<1x8x128xf32>
    %321 = vector.shape_cast %320 : vector<1x8x128xf32> to vector<8x128xf32>
    %cst_76 = arith.constant dense<0.000000e+00> : vector<8x128xf32>
    %322 = tpu.matmul %318, %3, %cst_76 {dimension_numbers = #tpu.dot_dimension_numbers<[1], [0], [0], [1], [0, 0, 1, 1], [], []>} : vector<8x32xf32>, vector<32x128xf32>, vector<8x128xf32> -> vector<8x128xf32>
    %323 = arith.addf %321, %322 : vector<8x128xf32>
    %324 = arith.negf %323 : vector<8x128xf32>
    %325 = math.exp %324 : vector<8x128xf32>
    %cst_77 = arith.constant 1.000000e+00 : f32
    %326 = vector.broadcast %cst_77 : f32 to vector<8x128xf32>
    %327 = arith.addf %326, %325 : vector<8x128xf32>
    %328 = arith.divf %326, %327 : vector<8x128xf32>
    %329 = math.tanh %323 : vector<8x128xf32>
    %330 = vector.extract_strided_slice %328 {offsets = [0, 0], sizes = [8, 32], strides = [1, 1]} : vector<8x128xf32> to vector<8x32xf32>
    %331 = vector.extract_strided_slice %328 {offsets = [0, 32], sizes = [8, 32], strides = [1, 1]} : vector<8x128xf32> to vector<8x32xf32>
    %332 = vector.extract_strided_slice %329 {offsets = [0, 64], sizes = [8, 32], strides = [1, 1]} : vector<8x128xf32> to vector<8x32xf32>
    %333 = vector.extract_strided_slice %328 {offsets = [0, 96], sizes = [8, 32], strides = [1, 1]} : vector<8x128xf32> to vector<8x32xf32>
    %334 = arith.mulf %331, %316 : vector<8x32xf32>
    %335 = arith.mulf %330, %332 : vector<8x32xf32>
    %336 = arith.addf %334, %335 : vector<8x32xf32>
    %337 = math.tanh %336 : vector<8x32xf32>
    %338 = arith.mulf %333, %337 : vector<8x32xf32>
    %339 = tpu.concatenate %338, %336 in 1 : vector<8x32xf32>, vector<8x32xf32> -> vector<8x64xf32>
    %340 = tpu.concatenate %319, %339 in 1 : vector<8x64xf32>, vector<8x64xf32> -> vector<8x128xf32>
    %c0_78 = arith.constant 0 : index
    %c896 = arith.constant 896 : index
    %341 = vector.load %arg5[%c0_78, %c896] : memref<8x2048xf32, #tpu.memory_space<vmem>>, vector<8x128xf32>
    tpu.vector_store %arg5[%c0_78, %c896], %340 {strides = array<i32>} : memref<8x2048xf32, #tpu.memory_space<vmem>>, vector<8x128xf32>,
    %c16 = arith.constant 16 : index
    %c0_79 = arith.constant 0 : index
    %c0_80 = arith.constant 0 : index
    %342 = vector.load %arg1[%c16, %c0_79, %c0_80] : memref<32x8x128xf32, #tpu.memory_space<vmem>>, vector<1x8x128xf32>
    %343 = vector.shape_cast %342 : vector<1x8x128xf32> to vector<8x128xf32>
    %cst_81 = arith.constant dense<0.000000e+00> : vector<8x128xf32>
    %344 = tpu.matmul %338, %3, %cst_81 {dimension_numbers = #tpu.dot_dimension_numbers<[1], [0], [0], [1], [0, 0, 1, 1], [], []>} : vector<8x32xf32>, vector<32x128xf32>, vector<8x128xf32> -> vector<8x128xf32>
    %345 = arith.addf %343, %344 : vector<8x128xf32>
    %346 = arith.negf %345 : vector<8x128xf32>
    %347 = math.exp %346 : vector<8x128xf32>
    %cst_82 = arith.constant 1.000000e+00 : f32
    %348 = vector.broadcast %cst_82 : f32 to vector<8x128xf32>
    %349 = arith.addf %348, %347 : vector<8x128xf32>
    %350 = arith.divf %348, %349 : vector<8x128xf32>
    %351 = math.tanh %345 : vector<8x128xf32>
    %352 = vector.extract_strided_slice %350 {offsets = [0, 0], sizes = [8, 32], strides = [1, 1]} : vector<8x128xf32> to vector<8x32xf32>
    %353 = vector.extract_strided_slice %350 {offsets = [0, 32], sizes = [8, 32], strides = [1, 1]} : vector<8x128xf32> to vector<8x32xf32>
    %354 = vector.extract_strided_slice %351 {offsets = [0, 64], sizes = [8, 32], strides = [1, 1]} : vector<8x128xf32> to vector<8x32xf32>
    %355 = vector.extract_strided_slice %350 {offsets = [0, 96], sizes = [8, 32], strides = [1, 1]} : vector<8x128xf32> to vector<8x32xf32>
    %356 = arith.mulf %353, %336 : vector<8x32xf32>
    %357 = arith.mulf %352, %354 : vector<8x32xf32>
    %358 = arith.addf %356, %357 : vector<8x32xf32>
    %359 = math.tanh %358 : vector<8x32xf32>
    %360 = arith.mulf %355, %359 : vector<8x32xf32>
    %361 = tpu.concatenate %360, %358 in 1 : vector<8x32xf32>, vector<8x32xf32> -> vector<8x64xf32>
    %c17 = arith.constant 17 : index
    %c0_83 = arith.constant 0 : index
    %c0_84 = arith.constant 0 : index
    %362 = vector.load %arg1[%c17, %c0_83, %c0_84] : memref<32x8x128xf32, #tpu.memory_space<vmem>>, vector<1x8x128xf32>
    %363 = vector.shape_cast %362 : vector<1x8x128xf32> to vector<8x128xf32>
    %cst_85 = arith.constant dense<0.000000e+00> : vector<8x128xf32>
    %364 = tpu.matmul %360, %3, %cst_85 {dimension_numbers = #tpu.dot_dimension_numbers<[1], [0], [0], [1], [0, 0, 1, 1], [], []>} : vector<8x32xf32>, vector<32x128xf32>, vector<8x128xf32> -> vector<8x128xf32>
    %365 = arith.addf %363, %364 : vector<8x128xf32>
    %366 = arith.negf %365 : vector<8x128xf32>
    %367 = math.exp %366 : vector<8x128xf32>
    %cst_86 = arith.constant 1.000000e+00 : f32
    %368 = vector.broadcast %cst_86 : f32 to vector<8x128xf32>
    %369 = arith.addf %368, %367 : vector<8x128xf32>
    %370 = arith.divf %368, %369 : vector<8x128xf32>
    %371 = math.tanh %365 : vector<8x128xf32>
    %372 = vector.extract_strided_slice %370 {offsets = [0, 0], sizes = [8, 32], strides = [1, 1]} : vector<8x128xf32> to vector<8x32xf32>
    %373 = vector.extract_strided_slice %370 {offsets = [0, 32], sizes = [8, 32], strides = [1, 1]} : vector<8x128xf32> to vector<8x32xf32>
    %374 = vector.extract_strided_slice %371 {offsets = [0, 64], sizes = [8, 32], strides = [1, 1]} : vector<8x128xf32> to vector<8x32xf32>
    %375 = vector.extract_strided_slice %370 {offsets = [0, 96], sizes = [8, 32], strides = [1, 1]} : vector<8x128xf32> to vector<8x32xf32>
    %376 = arith.mulf %373, %358 : vector<8x32xf32>
    %377 = arith.mulf %372, %374 : vector<8x32xf32>
    %378 = arith.addf %376, %377 : vector<8x32xf32>
    %379 = math.tanh %378 : vector<8x32xf32>
    %380 = arith.mulf %375, %379 : vector<8x32xf32>
    %381 = tpu.concatenate %380, %378 in 1 : vector<8x32xf32>, vector<8x32xf32> -> vector<8x64xf32>
    %382 = tpu.concatenate %361, %381 in 1 : vector<8x64xf32>, vector<8x64xf32> -> vector<8x128xf32>
    %c0_87 = arith.constant 0 : index
    %c1024 = arith.constant 1024 : index
    %383 = vector.load %arg5[%c0_87, %c1024] : memref<8x2048xf32, #tpu.memory_space<vmem>>, vector<8x128xf32>
    tpu.vector_store %arg5[%c0_87, %c1024], %382 {strides = array<i32>} : memref<8x2048xf32, #tpu.memory_space<vmem>>, vector<8x128xf32>,
    %c18 = arith.constant 18 : index
    %c0_88 = arith.constant 0 : index
    %c0_89 = arith.constant 0 : index
    %384 = vector.load %arg1[%c18, %c0_88, %c0_89] : memref<32x8x128xf32, #tpu.memory_space<vmem>>, vector<1x8x128xf32>
    %385 = vector.shape_cast %384 : vector<1x8x128xf32> to vector<8x128xf32>
    %cst_90 = arith.constant dense<0.000000e+00> : vector<8x128xf32>
    %386 = tpu.matmul %380, %3, %cst_90 {dimension_numbers = #tpu.dot_dimension_numbers<[1], [0], [0], [1], [0, 0, 1, 1], [], []>} : vector<8x32xf32>, vector<32x128xf32>, vector<8x128xf32> -> vector<8x128xf32>
    %387 = arith.addf %385, %386 : vector<8x128xf32>
    %388 = arith.negf %387 : vector<8x128xf32>
    %389 = math.exp %388 : vector<8x128xf32>
    %cst_91 = arith.constant 1.000000e+00 : f32
    %390 = vector.broadcast %cst_91 : f32 to vector<8x128xf32>
    %391 = arith.addf %390, %389 : vector<8x128xf32>
    %392 = arith.divf %390, %391 : vector<8x128xf32>
    %393 = math.tanh %387 : vector<8x128xf32>
    %394 = vector.extract_strided_slice %392 {offsets = [0, 0], sizes = [8, 32], strides = [1, 1]} : vector<8x128xf32> to vector<8x32xf32>
    %395 = vector.extract_strided_slice %392 {offsets = [0, 32], sizes = [8, 32], strides = [1, 1]} : vector<8x128xf32> to vector<8x32xf32>
    %396 = vector.extract_strided_slice %393 {offsets = [0, 64], sizes = [8, 32], strides = [1, 1]} : vector<8x128xf32> to vector<8x32xf32>
    %397 = vector.extract_strided_slice %392 {offsets = [0, 96], sizes = [8, 32], strides = [1, 1]} : vector<8x128xf32> to vector<8x32xf32>
    %398 = arith.mulf %395, %378 : vector<8x32xf32>
    %399 = arith.mulf %394, %396 : vector<8x32xf32>
    %400 = arith.addf %398, %399 : vector<8x32xf32>
    %401 = math.tanh %400 : vector<8x32xf32>
    %402 = arith.mulf %397, %401 : vector<8x32xf32>
    %403 = tpu.concatenate %402, %400 in 1 : vector<8x32xf32>, vector<8x32xf32> -> vector<8x64xf32>
    %c19 = arith.constant 19 : index
    %c0_92 = arith.constant 0 : index
    %c0_93 = arith.constant 0 : index
    %404 = vector.load %arg1[%c19, %c0_92, %c0_93] : memref<32x8x128xf32, #tpu.memory_space<vmem>>, vector<1x8x128xf32>
    %405 = vector.shape_cast %404 : vector<1x8x128xf32> to vector<8x128xf32>
    %cst_94 = arith.constant dense<0.000000e+00> : vector<8x128xf32>
    %406 = tpu.matmul %402, %3, %cst_94 {dimension_numbers = #tpu.dot_dimension_numbers<[1], [0], [0], [1], [0, 0, 1, 1], [], []>} : vector<8x32xf32>, vector<32x128xf32>, vector<8x128xf32> -> vector<8x128xf32>
    %407 = arith.addf %405, %406 : vector<8x128xf32>
    %408 = arith.negf %407 : vector<8x128xf32>
    %409 = math.exp %408 : vector<8x128xf32>
    %cst_95 = arith.constant 1.000000e+00 : f32
    %410 = vector.broadcast %cst_95 : f32 to vector<8x128xf32>
    %411 = arith.addf %410, %409 : vector<8x128xf32>
    %412 = arith.divf %410, %411 : vector<8x128xf32>
    %413 = math.tanh %407 : vector<8x128xf32>
    %414 = vector.extract_strided_slice %412 {offsets = [0, 0], sizes = [8, 32], strides = [1, 1]} : vector<8x128xf32> to vector<8x32xf32>
    %415 = vector.extract_strided_slice %412 {offsets = [0, 32], sizes = [8, 32], strides = [1, 1]} : vector<8x128xf32> to vector<8x32xf32>
    %416 = vector.extract_strided_slice %413 {offsets = [0, 64], sizes = [8, 32], strides = [1, 1]} : vector<8x128xf32> to vector<8x32xf32>
    %417 = vector.extract_strided_slice %412 {offsets = [0, 96], sizes = [8, 32], strides = [1, 1]} : vector<8x128xf32> to vector<8x32xf32>
    %418 = arith.mulf %415, %400 : vector<8x32xf32>
    %419 = arith.mulf %414, %416 : vector<8x32xf32>
    %420 = arith.addf %418, %419 : vector<8x32xf32>
    %421 = math.tanh %420 : vector<8x32xf32>
    %422 = arith.mulf %417, %421 : vector<8x32xf32>
    %423 = tpu.concatenate %422, %420 in 1 : vector<8x32xf32>, vector<8x32xf32> -> vector<8x64xf32>
    %424 = tpu.concatenate %403, %423 in 1 : vector<8x64xf32>, vector<8x64xf32> -> vector<8x128xf32>
    %c0_96 = arith.constant 0 : index
    %c1152 = arith.constant 1152 : index
    %425 = vector.load %arg5[%c0_96, %c1152] : memref<8x2048xf32, #tpu.memory_space<vmem>>, vector<8x128xf32>
    tpu.vector_store %arg5[%c0_96, %c1152], %424 {strides = array<i32>} : memref<8x2048xf32, #tpu.memory_space<vmem>>, vector<8x128xf32>,
    %c20 = arith.constant 20 : index
    %c0_97 = arith.constant 0 : index
    %c0_98 = arith.constant 0 : index
    %426 = vector.load %arg1[%c20, %c0_97, %c0_98] : memref<32x8x128xf32, #tpu.memory_space<vmem>>, vector<1x8x128xf32>
    %427 = vector.shape_cast %426 : vector<1x8x128xf32> to vector<8x128xf32>
    %cst_99 = arith.constant dense<0.000000e+00> : vector<8x128xf32>
    %428 = tpu.matmul %422, %3, %cst_99 {dimension_numbers = #tpu.dot_dimension_numbers<[1], [0], [0], [1], [0, 0, 1, 1], [], []>} : vector<8x32xf32>, vector<32x128xf32>, vector<8x128xf32> -> vector<8x128xf32>
    %429 = arith.addf %427, %428 : vector<8x128xf32>
    %430 = arith.negf %429 : vector<8x128xf32>
    %431 = math.exp %430 : vector<8x128xf32>
    %cst_100 = arith.constant 1.000000e+00 : f32
    %432 = vector.broadcast %cst_100 : f32 to vector<8x128xf32>
    %433 = arith.addf %432, %431 : vector<8x128xf32>
    %434 = arith.divf %432, %433 : vector<8x128xf32>
    %435 = math.tanh %429 : vector<8x128xf32>
    %436 = vector.extract_strided_slice %434 {offsets = [0, 0], sizes = [8, 32], strides = [1, 1]} : vector<8x128xf32> to vector<8x32xf32>
    %437 = vector.extract_strided_slice %434 {offsets = [0, 32], sizes = [8, 32], strides = [1, 1]} : vector<8x128xf32> to vector<8x32xf32>
    %438 = vector.extract_strided_slice %435 {offsets = [0, 64], sizes = [8, 32], strides = [1, 1]} : vector<8x128xf32> to vector<8x32xf32>
    %439 = vector.extract_strided_slice %434 {offsets = [0, 96], sizes = [8, 32], strides = [1, 1]} : vector<8x128xf32> to vector<8x32xf32>
    %440 = arith.mulf %437, %420 : vector<8x32xf32>
    %441 = arith.mulf %436, %438 : vector<8x32xf32>
    %442 = arith.addf %440, %441 : vector<8x32xf32>
    %443 = math.tanh %442 : vector<8x32xf32>
    %444 = arith.mulf %439, %443 : vector<8x32xf32>
    %445 = tpu.concatenate %444, %442 in 1 : vector<8x32xf32>, vector<8x32xf32> -> vector<8x64xf32>
    %c21 = arith.constant 21 : index
    %c0_101 = arith.constant 0 : index
    %c0_102 = arith.constant 0 : index
    %446 = vector.load %arg1[%c21, %c0_101, %c0_102] : memref<32x8x128xf32, #tpu.memory_space<vmem>>, vector<1x8x128xf32>
    %447 = vector.shape_cast %446 : vector<1x8x128xf32> to vector<8x128xf32>
    %cst_103 = arith.constant dense<0.000000e+00> : vector<8x128xf32>
    %448 = tpu.matmul %444, %3, %cst_103 {dimension_numbers = #tpu.dot_dimension_numbers<[1], [0], [0], [1], [0, 0, 1, 1], [], []>} : vector<8x32xf32>, vector<32x128xf32>, vector<8x128xf32> -> vector<8x128xf32>
    %449 = arith.addf %447, %448 : vector<8x128xf32>
    %450 = arith.negf %449 : vector<8x128xf32>
    %451 = math.exp %450 : vector<8x128xf32>
    %cst_104 = arith.constant 1.000000e+00 : f32
    %452 = vector.broadcast %cst_104 : f32 to vector<8x128xf32>
    %453 = arith.addf %452, %451 : vector<8x128xf32>
    %454 = arith.divf %452, %453 : vector<8x128xf32>
    %455 = math.tanh %449 : vector<8x128xf32>
    %456 = vector.extract_strided_slice %454 {offsets = [0, 0], sizes = [8, 32], strides = [1, 1]} : vector<8x128xf32> to vector<8x32xf32>
    %457 = vector.extract_strided_slice %454 {offsets = [0, 32], sizes = [8, 32], strides = [1, 1]} : vector<8x128xf32> to vector<8x32xf32>
    %458 = vector.extract_strided_slice %455 {offsets = [0, 64], sizes = [8, 32], strides = [1, 1]} : vector<8x128xf32> to vector<8x32xf32>
    %459 = vector.extract_strided_slice %454 {offsets = [0, 96], sizes = [8, 32], strides = [1, 1]} : vector<8x128xf32> to vector<8x32xf32>
    %460 = arith.mulf %457, %442 : vector<8x32xf32>
    %461 = arith.mulf %456, %458 : vector<8x32xf32>
    %462 = arith.addf %460, %461 : vector<8x32xf32>
    %463 = math.tanh %462 : vector<8x32xf32>
    %464 = arith.mulf %459, %463 : vector<8x32xf32>
    %465 = tpu.concatenate %464, %462 in 1 : vector<8x32xf32>, vector<8x32xf32> -> vector<8x64xf32>
    %466 = tpu.concatenate %445, %465 in 1 : vector<8x64xf32>, vector<8x64xf32> -> vector<8x128xf32>
    %c0_105 = arith.constant 0 : index
    %c1280 = arith.constant 1280 : index
    %467 = vector.load %arg5[%c0_105, %c1280] : memref<8x2048xf32, #tpu.memory_space<vmem>>, vector<8x128xf32>
    tpu.vector_store %arg5[%c0_105, %c1280], %466 {strides = array<i32>} : memref<8x2048xf32, #tpu.memory_space<vmem>>, vector<8x128xf32>,
    %c22 = arith.constant 22 : index
    %c0_106 = arith.constant 0 : index
    %c0_107 = arith.constant 0 : index
    %468 = vector.load %arg1[%c22, %c0_106, %c0_107] : memref<32x8x128xf32, #tpu.memory_space<vmem>>, vector<1x8x128xf32>
    %469 = vector.shape_cast %468 : vector<1x8x128xf32> to vector<8x128xf32>
    %cst_108 = arith.constant dense<0.000000e+00> : vector<8x128xf32>
    %470 = tpu.matmul %464, %3, %cst_108 {dimension_numbers = #tpu.dot_dimension_numbers<[1], [0], [0], [1], [0, 0, 1, 1], [], []>} : vector<8x32xf32>, vector<32x128xf32>, vector<8x128xf32> -> vector<8x128xf32>
    %471 = arith.addf %469, %470 : vector<8x128xf32>
    %472 = arith.negf %471 : vector<8x128xf32>
    %473 = math.exp %472 : vector<8x128xf32>
    %cst_109 = arith.constant 1.000000e+00 : f32
    %474 = vector.broadcast %cst_109 : f32 to vector<8x128xf32>
    %475 = arith.addf %474, %473 : vector<8x128xf32>
    %476 = arith.divf %474, %475 : vector<8x128xf32>
    %477 = math.tanh %471 : vector<8x128xf32>
    %478 = vector.extract_strided_slice %476 {offsets = [0, 0], sizes = [8, 32], strides = [1, 1]} : vector<8x128xf32> to vector<8x32xf32>
    %479 = vector.extract_strided_slice %476 {offsets = [0, 32], sizes = [8, 32], strides = [1, 1]} : vector<8x128xf32> to vector<8x32xf32>
    %480 = vector.extract_strided_slice %477 {offsets = [0, 64], sizes = [8, 32], strides = [1, 1]} : vector<8x128xf32> to vector<8x32xf32>
    %481 = vector.extract_strided_slice %476 {offsets = [0, 96], sizes = [8, 32], strides = [1, 1]} : vector<8x128xf32> to vector<8x32xf32>
    %482 = arith.mulf %479, %462 : vector<8x32xf32>
    %483 = arith.mulf %478, %480 : vector<8x32xf32>
    %484 = arith.addf %482, %483 : vector<8x32xf32>
    %485 = math.tanh %484 : vector<8x32xf32>
    %486 = arith.mulf %481, %485 : vector<8x32xf32>
    %487 = tpu.concatenate %486, %484 in 1 : vector<8x32xf32>, vector<8x32xf32> -> vector<8x64xf32>
    %c23 = arith.constant 23 : index
    %c0_110 = arith.constant 0 : index
    %c0_111 = arith.constant 0 : index
    %488 = vector.load %arg1[%c23, %c0_110, %c0_111] : memref<32x8x128xf32, #tpu.memory_space<vmem>>, vector<1x8x128xf32>
    %489 = vector.shape_cast %488 : vector<1x8x128xf32> to vector<8x128xf32>
    %cst_112 = arith.constant dense<0.000000e+00> : vector<8x128xf32>
    %490 = tpu.matmul %486, %3, %cst_112 {dimension_numbers = #tpu.dot_dimension_numbers<[1], [0], [0], [1], [0, 0, 1, 1], [], []>} : vector<8x32xf32>, vector<32x128xf32>, vector<8x128xf32> -> vector<8x128xf32>
    %491 = arith.addf %489, %490 : vector<8x128xf32>
    %492 = arith.negf %491 : vector<8x128xf32>
    %493 = math.exp %492 : vector<8x128xf32>
    %cst_113 = arith.constant 1.000000e+00 : f32
    %494 = vector.broadcast %cst_113 : f32 to vector<8x128xf32>
    %495 = arith.addf %494, %493 : vector<8x128xf32>
    %496 = arith.divf %494, %495 : vector<8x128xf32>
    %497 = math.tanh %491 : vector<8x128xf32>
    %498 = vector.extract_strided_slice %496 {offsets = [0, 0], sizes = [8, 32], strides = [1, 1]} : vector<8x128xf32> to vector<8x32xf32>
    %499 = vector.extract_strided_slice %496 {offsets = [0, 32], sizes = [8, 32], strides = [1, 1]} : vector<8x128xf32> to vector<8x32xf32>
    %500 = vector.extract_strided_slice %497 {offsets = [0, 64], sizes = [8, 32], strides = [1, 1]} : vector<8x128xf32> to vector<8x32xf32>
    %501 = vector.extract_strided_slice %496 {offsets = [0, 96], sizes = [8, 32], strides = [1, 1]} : vector<8x128xf32> to vector<8x32xf32>
    %502 = arith.mulf %499, %484 : vector<8x32xf32>
    %503 = arith.mulf %498, %500 : vector<8x32xf32>
    %504 = arith.addf %502, %503 : vector<8x32xf32>
    %505 = math.tanh %504 : vector<8x32xf32>
    %506 = arith.mulf %501, %505 : vector<8x32xf32>
    %507 = tpu.concatenate %506, %504 in 1 : vector<8x32xf32>, vector<8x32xf32> -> vector<8x64xf32>
    %508 = tpu.concatenate %487, %507 in 1 : vector<8x64xf32>, vector<8x64xf32> -> vector<8x128xf32>
    %c0_114 = arith.constant 0 : index
    %c1408 = arith.constant 1408 : index
    %509 = vector.load %arg5[%c0_114, %c1408] : memref<8x2048xf32, #tpu.memory_space<vmem>>, vector<8x128xf32>
    tpu.vector_store %arg5[%c0_114, %c1408], %508 {strides = array<i32>} : memref<8x2048xf32, #tpu.memory_space<vmem>>, vector<8x128xf32>,
    %c24 = arith.constant 24 : index
    %c0_115 = arith.constant 0 : index
    %c0_116 = arith.constant 0 : index
    %510 = vector.load %arg1[%c24, %c0_115, %c0_116] : memref<32x8x128xf32, #tpu.memory_space<vmem>>, vector<1x8x128xf32>
    %511 = vector.shape_cast %510 : vector<1x8x128xf32> to vector<8x128xf32>
    %cst_117 = arith.constant dense<0.000000e+00> : vector<8x128xf32>
    %512 = tpu.matmul %506, %3, %cst_117 {dimension_numbers = #tpu.dot_dimension_numbers<[1], [0], [0], [1], [0, 0, 1, 1], [], []>} : vector<8x32xf32>, vector<32x128xf32>, vector<8x128xf32> -> vector<8x128xf32>
    %513 = arith.addf %511, %512 : vector<8x128xf32>
    %514 = arith.negf %513 : vector<8x128xf32>
    %515 = math.exp %514 : vector<8x128xf32>
    %cst_118 = arith.constant 1.000000e+00 : f32
    %516 = vector.broadcast %cst_118 : f32 to vector<8x128xf32>
    %517 = arith.addf %516, %515 : vector<8x128xf32>
    %518 = arith.divf %516, %517 : vector<8x128xf32>
    %519 = math.tanh %513 : vector<8x128xf32>
    %520 = vector.extract_strided_slice %518 {offsets = [0, 0], sizes = [8, 32], strides = [1, 1]} : vector<8x128xf32> to vector<8x32xf32>
    %521 = vector.extract_strided_slice %518 {offsets = [0, 32], sizes = [8, 32], strides = [1, 1]} : vector<8x128xf32> to vector<8x32xf32>
    %522 = vector.extract_strided_slice %519 {offsets = [0, 64], sizes = [8, 32], strides = [1, 1]} : vector<8x128xf32> to vector<8x32xf32>
    %523 = vector.extract_strided_slice %518 {offsets = [0, 96], sizes = [8, 32], strides = [1, 1]} : vector<8x128xf32> to vector<8x32xf32>
    %524 = arith.mulf %521, %504 : vector<8x32xf32>
    %525 = arith.mulf %520, %522 : vector<8x32xf32>
    %526 = arith.addf %524, %525 : vector<8x32xf32>
    %527 = math.tanh %526 : vector<8x32xf32>
    %528 = arith.mulf %523, %527 : vector<8x32xf32>
    %529 = tpu.concatenate %528, %526 in 1 : vector<8x32xf32>, vector<8x32xf32> -> vector<8x64xf32>
    %c25 = arith.constant 25 : index
    %c0_119 = arith.constant 0 : index
    %c0_120 = arith.constant 0 : index
    %530 = vector.load %arg1[%c25, %c0_119, %c0_120] : memref<32x8x128xf32, #tpu.memory_space<vmem>>, vector<1x8x128xf32>
    %531 = vector.shape_cast %530 : vector<1x8x128xf32> to vector<8x128xf32>
    %cst_121 = arith.constant dense<0.000000e+00> : vector<8x128xf32>
    %532 = tpu.matmul %528, %3, %cst_121 {dimension_numbers = #tpu.dot_dimension_numbers<[1], [0], [0], [1], [0, 0, 1, 1], [], []>} : vector<8x32xf32>, vector<32x128xf32>, vector<8x128xf32> -> vector<8x128xf32>
    %533 = arith.addf %531, %532 : vector<8x128xf32>
    %534 = arith.negf %533 : vector<8x128xf32>
    %535 = math.exp %534 : vector<8x128xf32>
    %cst_122 = arith.constant 1.000000e+00 : f32
    %536 = vector.broadcast %cst_122 : f32 to vector<8x128xf32>
    %537 = arith.addf %536, %535 : vector<8x128xf32>
    %538 = arith.divf %536, %537 : vector<8x128xf32>
    %539 = math.tanh %533 : vector<8x128xf32>
    %540 = vector.extract_strided_slice %538 {offsets = [0, 0], sizes = [8, 32], strides = [1, 1]} : vector<8x128xf32> to vector<8x32xf32>
    %541 = vector.extract_strided_slice %538 {offsets = [0, 32], sizes = [8, 32], strides = [1, 1]} : vector<8x128xf32> to vector<8x32xf32>
    %542 = vector.extract_strided_slice %539 {offsets = [0, 64], sizes = [8, 32], strides = [1, 1]} : vector<8x128xf32> to vector<8x32xf32>
    %543 = vector.extract_strided_slice %538 {offsets = [0, 96], sizes = [8, 32], strides = [1, 1]} : vector<8x128xf32> to vector<8x32xf32>
    %544 = arith.mulf %541, %526 : vector<8x32xf32>
    %545 = arith.mulf %540, %542 : vector<8x32xf32>
    %546 = arith.addf %544, %545 : vector<8x32xf32>
    %547 = math.tanh %546 : vector<8x32xf32>
    %548 = arith.mulf %543, %547 : vector<8x32xf32>
    %549 = tpu.concatenate %548, %546 in 1 : vector<8x32xf32>, vector<8x32xf32> -> vector<8x64xf32>
    %550 = tpu.concatenate %529, %549 in 1 : vector<8x64xf32>, vector<8x64xf32> -> vector<8x128xf32>
    %c0_123 = arith.constant 0 : index
    %c1536 = arith.constant 1536 : index
    %551 = vector.load %arg5[%c0_123, %c1536] : memref<8x2048xf32, #tpu.memory_space<vmem>>, vector<8x128xf32>
    tpu.vector_store %arg5[%c0_123, %c1536], %550 {strides = array<i32>} : memref<8x2048xf32, #tpu.memory_space<vmem>>, vector<8x128xf32>,
    %c26 = arith.constant 26 : index
    %c0_124 = arith.constant 0 : index
    %c0_125 = arith.constant 0 : index
    %552 = vector.load %arg1[%c26, %c0_124, %c0_125] : memref<32x8x128xf32, #tpu.memory_space<vmem>>, vector<1x8x128xf32>
    %553 = vector.shape_cast %552 : vector<1x8x128xf32> to vector<8x128xf32>
    %cst_126 = arith.constant dense<0.000000e+00> : vector<8x128xf32>
    %554 = tpu.matmul %548, %3, %cst_126 {dimension_numbers = #tpu.dot_dimension_numbers<[1], [0], [0], [1], [0, 0, 1, 1], [], []>} : vector<8x32xf32>, vector<32x128xf32>, vector<8x128xf32> -> vector<8x128xf32>
    %555 = arith.addf %553, %554 : vector<8x128xf32>
    %556 = arith.negf %555 : vector<8x128xf32>
    %557 = math.exp %556 : vector<8x128xf32>
    %cst_127 = arith.constant 1.000000e+00 : f32
    %558 = vector.broadcast %cst_127 : f32 to vector<8x128xf32>
    %559 = arith.addf %558, %557 : vector<8x128xf32>
    %560 = arith.divf %558, %559 : vector<8x128xf32>
    %561 = math.tanh %555 : vector<8x128xf32>
    %562 = vector.extract_strided_slice %560 {offsets = [0, 0], sizes = [8, 32], strides = [1, 1]} : vector<8x128xf32> to vector<8x32xf32>
    %563 = vector.extract_strided_slice %560 {offsets = [0, 32], sizes = [8, 32], strides = [1, 1]} : vector<8x128xf32> to vector<8x32xf32>
    %564 = vector.extract_strided_slice %561 {offsets = [0, 64], sizes = [8, 32], strides = [1, 1]} : vector<8x128xf32> to vector<8x32xf32>
    %565 = vector.extract_strided_slice %560 {offsets = [0, 96], sizes = [8, 32], strides = [1, 1]} : vector<8x128xf32> to vector<8x32xf32>
    %566 = arith.mulf %563, %546 : vector<8x32xf32>
    %567 = arith.mulf %562, %564 : vector<8x32xf32>
    %568 = arith.addf %566, %567 : vector<8x32xf32>
    %569 = math.tanh %568 : vector<8x32xf32>
    %570 = arith.mulf %565, %569 : vector<8x32xf32>
    %571 = tpu.concatenate %570, %568 in 1 : vector<8x32xf32>, vector<8x32xf32> -> vector<8x64xf32>
    %c27 = arith.constant 27 : index
    %c0_128 = arith.constant 0 : index
    %c0_129 = arith.constant 0 : index
    %572 = vector.load %arg1[%c27, %c0_128, %c0_129] : memref<32x8x128xf32, #tpu.memory_space<vmem>>, vector<1x8x128xf32>
    %573 = vector.shape_cast %572 : vector<1x8x128xf32> to vector<8x128xf32>
    %cst_130 = arith.constant dense<0.000000e+00> : vector<8x128xf32>
    %574 = tpu.matmul %570, %3, %cst_130 {dimension_numbers = #tpu.dot_dimension_numbers<[1], [0], [0], [1], [0, 0, 1, 1], [], []>} : vector<8x32xf32>, vector<32x128xf32>, vector<8x128xf32> -> vector<8x128xf32>
    %575 = arith.addf %573, %574 : vector<8x128xf32>
    %576 = arith.negf %575 : vector<8x128xf32>
    %577 = math.exp %576 : vector<8x128xf32>
    %cst_131 = arith.constant 1.000000e+00 : f32
    %578 = vector.broadcast %cst_131 : f32 to vector<8x128xf32>
    %579 = arith.addf %578, %577 : vector<8x128xf32>
    %580 = arith.divf %578, %579 : vector<8x128xf32>
    %581 = math.tanh %575 : vector<8x128xf32>
    %582 = vector.extract_strided_slice %580 {offsets = [0, 0], sizes = [8, 32], strides = [1, 1]} : vector<8x128xf32> to vector<8x32xf32>
    %583 = vector.extract_strided_slice %580 {offsets = [0, 32], sizes = [8, 32], strides = [1, 1]} : vector<8x128xf32> to vector<8x32xf32>
    %584 = vector.extract_strided_slice %581 {offsets = [0, 64], sizes = [8, 32], strides = [1, 1]} : vector<8x128xf32> to vector<8x32xf32>
    %585 = vector.extract_strided_slice %580 {offsets = [0, 96], sizes = [8, 32], strides = [1, 1]} : vector<8x128xf32> to vector<8x32xf32>
    %586 = arith.mulf %583, %568 : vector<8x32xf32>
    %587 = arith.mulf %582, %584 : vector<8x32xf32>
    %588 = arith.addf %586, %587 : vector<8x32xf32>
    %589 = math.tanh %588 : vector<8x32xf32>
    %590 = arith.mulf %585, %589 : vector<8x32xf32>
    %591 = tpu.concatenate %590, %588 in 1 : vector<8x32xf32>, vector<8x32xf32> -> vector<8x64xf32>
    %592 = tpu.concatenate %571, %591 in 1 : vector<8x64xf32>, vector<8x64xf32> -> vector<8x128xf32>
    %c0_132 = arith.constant 0 : index
    %c1664 = arith.constant 1664 : index
    %593 = vector.load %arg5[%c0_132, %c1664] : memref<8x2048xf32, #tpu.memory_space<vmem>>, vector<8x128xf32>
    tpu.vector_store %arg5[%c0_132, %c1664], %592 {strides = array<i32>} : memref<8x2048xf32, #tpu.memory_space<vmem>>, vector<8x128xf32>,
    %c28 = arith.constant 28 : index
    %c0_133 = arith.constant 0 : index
    %c0_134 = arith.constant 0 : index
    %594 = vector.load %arg1[%c28, %c0_133, %c0_134] : memref<32x8x128xf32, #tpu.memory_space<vmem>>, vector<1x8x128xf32>
    %595 = vector.shape_cast %594 : vector<1x8x128xf32> to vector<8x128xf32>
    %cst_135 = arith.constant dense<0.000000e+00> : vector<8x128xf32>
    %596 = tpu.matmul %590, %3, %cst_135 {dimension_numbers = #tpu.dot_dimension_numbers<[1], [0], [0], [1], [0, 0, 1, 1], [], []>} : vector<8x32xf32>, vector<32x128xf32>, vector<8x128xf32> -> vector<8x128xf32>
    %597 = arith.addf %595, %596 : vector<8x128xf32>
    %598 = arith.negf %597 : vector<8x128xf32>
    %599 = math.exp %598 : vector<8x128xf32>
    %cst_136 = arith.constant 1.000000e+00 : f32
    %600 = vector.broadcast %cst_136 : f32 to vector<8x128xf32>
    %601 = arith.addf %600, %599 : vector<8x128xf32>
    %602 = arith.divf %600, %601 : vector<8x128xf32>
    %603 = math.tanh %597 : vector<8x128xf32>
    %604 = vector.extract_strided_slice %602 {offsets = [0, 0], sizes = [8, 32], strides = [1, 1]} : vector<8x128xf32> to vector<8x32xf32>
    %605 = vector.extract_strided_slice %602 {offsets = [0, 32], sizes = [8, 32], strides = [1, 1]} : vector<8x128xf32> to vector<8x32xf32>
    %606 = vector.extract_strided_slice %603 {offsets = [0, 64], sizes = [8, 32], strides = [1, 1]} : vector<8x128xf32> to vector<8x32xf32>
    %607 = vector.extract_strided_slice %602 {offsets = [0, 96], sizes = [8, 32], strides = [1, 1]} : vector<8x128xf32> to vector<8x32xf32>
    %608 = arith.mulf %605, %588 : vector<8x32xf32>
    %609 = arith.mulf %604, %606 : vector<8x32xf32>
    %610 = arith.addf %608, %609 : vector<8x32xf32>
    %611 = math.tanh %610 : vector<8x32xf32>
    %612 = arith.mulf %607, %611 : vector<8x32xf32>
    %613 = tpu.concatenate %612, %610 in 1 : vector<8x32xf32>, vector<8x32xf32> -> vector<8x64xf32>
    %c29 = arith.constant 29 : index
    %c0_137 = arith.constant 0 : index
    %c0_138 = arith.constant 0 : index
    %614 = vector.load %arg1[%c29, %c0_137, %c0_138] : memref<32x8x128xf32, #tpu.memory_space<vmem>>, vector<1x8x128xf32>
    %615 = vector.shape_cast %614 : vector<1x8x128xf32> to vector<8x128xf32>
    %cst_139 = arith.constant dense<0.000000e+00> : vector<8x128xf32>
    %616 = tpu.matmul %612, %3, %cst_139 {dimension_numbers = #tpu.dot_dimension_numbers<[1], [0], [0], [1], [0, 0, 1, 1], [], []>} : vector<8x32xf32>, vector<32x128xf32>, vector<8x128xf32> -> vector<8x128xf32>
    %617 = arith.addf %615, %616 : vector<8x128xf32>
    %618 = arith.negf %617 : vector<8x128xf32>
    %619 = math.exp %618 : vector<8x128xf32>
    %cst_140 = arith.constant 1.000000e+00 : f32
    %620 = vector.broadcast %cst_140 : f32 to vector<8x128xf32>
    %621 = arith.addf %620, %619 : vector<8x128xf32>
    %622 = arith.divf %620, %621 : vector<8x128xf32>
    %623 = math.tanh %617 : vector<8x128xf32>
    %624 = vector.extract_strided_slice %622 {offsets = [0, 0], sizes = [8, 32], strides = [1, 1]} : vector<8x128xf32> to vector<8x32xf32>
    %625 = vector.extract_strided_slice %622 {offsets = [0, 32], sizes = [8, 32], strides = [1, 1]} : vector<8x128xf32> to vector<8x32xf32>
    %626 = vector.extract_strided_slice %623 {offsets = [0, 64], sizes = [8, 32], strides = [1, 1]} : vector<8x128xf32> to vector<8x32xf32>
    %627 = vector.extract_strided_slice %622 {offsets = [0, 96], sizes = [8, 32], strides = [1, 1]} : vector<8x128xf32> to vector<8x32xf32>
    %628 = arith.mulf %625, %610 : vector<8x32xf32>
    %629 = arith.mulf %624, %626 : vector<8x32xf32>
    %630 = arith.addf %628, %629 : vector<8x32xf32>
    %631 = math.tanh %630 : vector<8x32xf32>
    %632 = arith.mulf %627, %631 : vector<8x32xf32>
    %633 = tpu.concatenate %632, %630 in 1 : vector<8x32xf32>, vector<8x32xf32> -> vector<8x64xf32>
    %634 = tpu.concatenate %613, %633 in 1 : vector<8x64xf32>, vector<8x64xf32> -> vector<8x128xf32>
    %c0_141 = arith.constant 0 : index
    %c1792 = arith.constant 1792 : index
    %635 = vector.load %arg5[%c0_141, %c1792] : memref<8x2048xf32, #tpu.memory_space<vmem>>, vector<8x128xf32>
    tpu.vector_store %arg5[%c0_141, %c1792], %634 {strides = array<i32>} : memref<8x2048xf32, #tpu.memory_space<vmem>>, vector<8x128xf32>,
    %c30 = arith.constant 30 : index
    %c0_142 = arith.constant 0 : index
    %c0_143 = arith.constant 0 : index
    %636 = vector.load %arg1[%c30, %c0_142, %c0_143] : memref<32x8x128xf32, #tpu.memory_space<vmem>>, vector<1x8x128xf32>
    %637 = vector.shape_cast %636 : vector<1x8x128xf32> to vector<8x128xf32>
    %cst_144 = arith.constant dense<0.000000e+00> : vector<8x128xf32>
    %638 = tpu.matmul %632, %3, %cst_144 {dimension_numbers = #tpu.dot_dimension_numbers<[1], [0], [0], [1], [0, 0, 1, 1], [], []>} : vector<8x32xf32>, vector<32x128xf32>, vector<8x128xf32> -> vector<8x128xf32>
    %639 = arith.addf %637, %638 : vector<8x128xf32>
    %640 = arith.negf %639 : vector<8x128xf32>
    %641 = math.exp %640 : vector<8x128xf32>
    %cst_145 = arith.constant 1.000000e+00 : f32
    %642 = vector.broadcast %cst_145 : f32 to vector<8x128xf32>
    %643 = arith.addf %642, %641 : vector<8x128xf32>
    %644 = arith.divf %642, %643 : vector<8x128xf32>
    %645 = math.tanh %639 : vector<8x128xf32>
    %646 = vector.extract_strided_slice %644 {offsets = [0, 0], sizes = [8, 32], strides = [1, 1]} : vector<8x128xf32> to vector<8x32xf32>
    %647 = vector.extract_strided_slice %644 {offsets = [0, 32], sizes = [8, 32], strides = [1, 1]} : vector<8x128xf32> to vector<8x32xf32>
    %648 = vector.extract_strided_slice %645 {offsets = [0, 64], sizes = [8, 32], strides = [1, 1]} : vector<8x128xf32> to vector<8x32xf32>
    %649 = vector.extract_strided_slice %644 {offsets = [0, 96], sizes = [8, 32], strides = [1, 1]} : vector<8x128xf32> to vector<8x32xf32>
    %650 = arith.mulf %647, %630 : vector<8x32xf32>
    %651 = arith.mulf %646, %648 : vector<8x32xf32>
    %652 = arith.addf %650, %651 : vector<8x32xf32>
    %653 = math.tanh %652 : vector<8x32xf32>
    %654 = arith.mulf %649, %653 : vector<8x32xf32>
    %655 = tpu.concatenate %654, %652 in 1 : vector<8x32xf32>, vector<8x32xf32> -> vector<8x64xf32>
    %c31 = arith.constant 31 : index
    %c0_146 = arith.constant 0 : index
    %c0_147 = arith.constant 0 : index
    %656 = vector.load %arg1[%c31, %c0_146, %c0_147] : memref<32x8x128xf32, #tpu.memory_space<vmem>>, vector<1x8x128xf32>
    %657 = vector.shape_cast %656 : vector<1x8x128xf32> to vector<8x128xf32>
    %cst_148 = arith.constant dense<0.000000e+00> : vector<8x128xf32>
    %658 = tpu.matmul %654, %3, %cst_148 {dimension_numbers = #tpu.dot_dimension_numbers<[1], [0], [0], [1], [0, 0, 1, 1], [], []>} : vector<8x32xf32>, vector<32x128xf32>, vector<8x128xf32> -> vector<8x128xf32>
    %659 = arith.addf %657, %658 : vector<8x128xf32>
    %660 = arith.negf %659 : vector<8x128xf32>
    %661 = math.exp %660 : vector<8x128xf32>
    %cst_149 = arith.constant 1.000000e+00 : f32
    %662 = vector.broadcast %cst_149 : f32 to vector<8x128xf32>
    %663 = arith.addf %662, %661 : vector<8x128xf32>
    %664 = arith.divf %662, %663 : vector<8x128xf32>
    %665 = math.tanh %659 : vector<8x128xf32>
    %666 = vector.extract_strided_slice %664 {offsets = [0, 0], sizes = [8, 32], strides = [1, 1]} : vector<8x128xf32> to vector<8x32xf32>
    %667 = vector.extract_strided_slice %664 {offsets = [0, 32], sizes = [8, 32], strides = [1, 1]} : vector<8x128xf32> to vector<8x32xf32>
    %668 = vector.extract_strided_slice %665 {offsets = [0, 64], sizes = [8, 32], strides = [1, 1]} : vector<8x128xf32> to vector<8x32xf32>
    %669 = vector.extract_strided_slice %664 {offsets = [0, 96], sizes = [8, 32], strides = [1, 1]} : vector<8x128xf32> to vector<8x32xf32>
    %670 = arith.mulf %667, %652 : vector<8x32xf32>
    %671 = arith.mulf %666, %668 : vector<8x32xf32>
    %672 = arith.addf %670, %671 : vector<8x32xf32>
    %673 = math.tanh %672 : vector<8x32xf32>
    %674 = arith.mulf %669, %673 : vector<8x32xf32>
    %675 = tpu.concatenate %674, %672 in 1 : vector<8x32xf32>, vector<8x32xf32> -> vector<8x64xf32>
    %676 = tpu.concatenate %655, %675 in 1 : vector<8x64xf32>, vector<8x64xf32> -> vector<8x128xf32>
    %c0_150 = arith.constant 0 : index
    %c1920 = arith.constant 1920 : index
    %677 = vector.load %arg5[%c0_150, %c1920] : memref<8x2048xf32, #tpu.memory_space<vmem>>, vector<8x128xf32>
    tpu.vector_store %arg5[%c0_150, %c1920], %676 {strides = array<i32>} : memref<8x2048xf32, #tpu.memory_space<vmem>>, vector<8x128xf32>,
    %c0_151 = arith.constant 0 : index
    %c0_152 = arith.constant 0 : index
    %678 = vector.load %arg6[%c0_151, %c0_152] : memref<8x32xf32, #tpu.memory_space<vmem>>, vector<8x32xf32>
    tpu.vector_store %arg6[%c0_151, %c0_152], %674 {strides = array<i32>} : memref<8x32xf32, #tpu.memory_space<vmem>>, vector<8x32xf32>,
    %c0_153 = arith.constant 0 : index
    %c0_154 = arith.constant 0 : index
    %679 = vector.load %arg7[%c0_153, %c0_154] : memref<8x32xf32, #tpu.memory_space<vmem>>, vector<8x32xf32>
    tpu.vector_store %arg7[%c0_153, %c0_154], %672 {strides = array<i32>} : memref<8x32xf32, #tpu.memory_space<vmem>>, vector<8x32xf32>,
    return
  }
  func.func @transform_0(%arg0: i32) -> (i32, i32, i32) {
    %c0_i32 = arith.constant 0 : i32
    %c0_i32_0 = arith.constant 0 : i32
    %c0_i32_1 = arith.constant 0 : i32
    return %arg0, %c0_i32, %c0_i32_0 : i32, i32, i32
  }
  func.func @transform_1(%arg0: i32) -> (i32, i32) {
    %c0_i32 = arith.constant 0 : i32
    %c0_i32_0 = arith.constant 0 : i32
    %c0_i32_1 = arith.constant 0 : i32
    return %c0_i32, %c0_i32_0 : i32, i32
  }
  func.func @transform_2(%arg0: i32) -> (i32, i32) {
    %c0_i32 = arith.constant 0 : i32
    %c0_i32_0 = arith.constant 0 : i32
    %c0_i32_1 = arith.constant 0 : i32
    return %c0_i32, %c0_i32_0 : i32, i32
  }
  func.func @transform_3(%arg0: i32) -> (i32, i32) {
    %c0_i32 = arith.constant 0 : i32
    %c0_i32_0 = arith.constant 0 : i32
    %c0_i32_1 = arith.constant 0 : i32
    return %c0_i32, %c0_i32_0 : i32, i32
  }
  func.func @transform_4(%arg0: i32) -> (i32, i32) {
    %c0_i32 = arith.constant 0 : i32
    %c0_i32_0 = arith.constant 0 : i32
    return %c0_i32, %arg0 : i32, i32
  }
}

</mosaic_0001>

<llo_original>
// kernel: lstm_pallas.1
$region0: #{lstm_pallas.1}
  #allocation0 [shape = 'u32[]', space=smem, size = 0x4, offset = 0x4, fixed_abs, tag = 'smem constant byte address 0x4 - core index']
  #allocation1 [shape = 'u32[72,128]{1,0:T(1,128)}', space=vmem, size = 0x9000, scoped, tag = 'internal scratch']
  #allocation2 [shape = 'f32[8,32]{1,0:T(8,128)}', space=vmem, size = 0x1000, scoped, tag = 'scratch operand']
  #allocation3 [shape = 'f32[8,32]{1,0:T(8,128)}', space=vmem, size = 0x1000, scoped, tag = 'scratch operand']
  %s0 = inlined_call_operand.vmem [shape: f32[64,8,128], index: 0, kind: input, shape index: {}]
  %s1 = inlined_call_operand.vmem [shape: f32[32,128], index: 1, kind: input, shape index: {}]
  %s2 = inlined_call_operand.vmem [shape: f32[8,32], index: 2, kind: input, shape index: {}]
  %s3 = inlined_call_operand.vmem [shape: f32[8,32], index: 3, kind: input, shape index: {}]
  %s4 = inlined_call_operand.vmem [shape: f32[8,4096], index: 4, kind: output, shape index: {}]
  %s5 = sld [smem:[#allocation0]]
  $region53: #{lstm_pallas.1} parent=0
    _
  %s7 = ssub.s32 1, %s5
  %s8 = scalar_select 0, %s7, %s5
  loop: start=0, step=1, limit=4
  $region2: #{lstm_pallas.1} parent=0 // loop_pre_header
    _
  $region3: #{lstm_pallas.1} parent=0 // loop_header
    %s10 = sphi 0, %s14
    %p11 = scmp.ge.s32.totalorder %s10, 4
    %s20 = sphi 0, %s22
    %s23 = sphi 0, %s20
    %s24 = sphi 0, %s23
    %s40 = sphi 0, %s24
    %s44 = sphi 0, %s44
    %s46 = sphi 0, %s44
    %s47 = sphi 0, %s46
    %s61 = sphi 0, %s47
    %s65 = sphi 0, %s65
    %s67 = sphi 0, %s65
    %s68 = sphi 0, %s67
    %s82 = sphi 0, %s68
    %s86 = sphi 0, %s86
    %s88 = sphi 0, %s86
    %s89 = sphi 0, %s88
    %s103 = sphi 0, %s89
    %s109 = sphi 0, %s111
    %s112 = sphi 0, %s109
    %s113 = sphi 0, %s112
    %s129 = sphi 0, %s113
  $region4: #{lstm_pallas.1} parent=0 // loop_header_branch
    %13 = sbr.rel (%p11) target = $region8
  $region5: #{lstm_pallas.1} parent=0 // loop_body
    %s15 = ssub.s32 %s10, 1
    %s16 = ssub.s32 %s10, 2
    %s17 = sadd.s32 %s10, 1
    %s18 = ssub.s32 %s10, %s17
    %p19 = scmp.eq.s32.totalorder %s18, 0
    %s21 = sadd.s32 %s20, 1
    %s22 = scalar_select %p19, %s20, %s21
    %p25 = pneg %p19
    %p26 = scmp.eq.s32.totalorder %s10, 1
    %p27 = por %p25, %p26
    %p28 = scmp.ne.s32.totalorder %s20, %s23
    %p29 = scmp.eq.s32.totalorder %s10, 0
    %p30 = por %p28, %p29
    %p31 = scmp.ne.s32.totalorder %s20, %s23
    %p32 = scmp.eq.s32.totalorder %s15, 1
    %p33 = por %p31, %p32
    %p34 = scmp.ne.s32.totalorder %s23, %s24
    %p35 = scmp.eq.s32.totalorder %s15, 0
    %p36 = por %p34, %p35
    %p37 = scmp.ne.s32.totalorder %s23, %s24
    %p38 = scmp.eq.s32.totalorder %s16, 1
    %p39 = por %p37, %p38
    %p41 = scmp.ne.s32.totalorder %s24, %s40
    %p42 = scmp.eq.s32.totalorder %s16, 0
    %p43 = por %p41, %p42
    %s45 = sadd.s32 %s44, 1
    %p48 = scmp.eq.s32.totalorder %s10, 1
    %p49 = scmp.ne.s32.totalorder %s44, %s46
    %p50 = scmp.eq.s32.totalorder %s10, 0
    %p51 = por %p49, %p50
    %p52 = scmp.ne.s32.totalorder %s44, %s46
    %p53 = scmp.eq.s32.totalorder %s15, 1
    %p54 = por %p52, %p53
    %p55 = scmp.ne.s32.totalorder %s46, %s47
    %p56 = scmp.eq.s32.totalorder %s15, 0
    %p57 = por %p55, %p56
    %p58 = scmp.ne.s32.totalorder %s46, %s47
    %p59 = scmp.eq.s32.totalorder %s16, 1
    %p60 = por %p58, %p59
    %p62 = scmp.ne.s32.totalorder %s47, %s61
    %p63 = scmp.eq.s32.totalorder %s16, 0
    %p64 = por %p62, %p63
    %s66 = sadd.s32 %s65, 1
    %p69 = scmp.eq.s32.totalorder %s10, 1
    %p70 = scmp.ne.s32.totalorder %s65, %s67
    %p71 = scmp.eq.s32.totalorder %s10, 0
    %p72 = por %p70, %p71
    %p73 = scmp.ne.s32.totalorder %s65, %s67
    %p74 = scmp.eq.s32.totalorder %s15, 1
    %p75 = por %p73, %p74
    %p76 = scmp.ne.s32.totalorder %s67, %s68
    %p77 = scmp.eq.s32.totalorder %s15, 0
    %p78 = por %p76, %p77
    %p79 = scmp.ne.s32.totalorder %s67, %s68
    %p80 = scmp.eq.s32.totalorder %s16, 1
    %p81 = por %p79, %p80
    %p83 = scmp.ne.s32.totalorder %s68, %s82
    %p84 = scmp.eq.s32.totalorder %s16, 0
    %p85 = por %p83, %p84
    %s87 = sadd.s32 %s86, 1
    %p90 = scmp.eq.s32.totalorder %s10, 1
    %p91 = scmp.ne.s32.totalorder %s86, %s88
    %p92 = scmp.eq.s32.totalorder %s10, 0
    %p93 = por %p91, %p92
    %p94 = scmp.ne.s32.totalorder %s86, %s88
    %p95 = scmp.eq.s32.totalorder %s15, 1
    %p96 = por %p94, %p95
    %p97 = scmp.ne.s32.totalorder %s88, %s89
    %p98 = scmp.eq.s32.totalorder %s15, 0
    %p99 = por %p97, %p98
    %p100 = scmp.ne.s32.totalorder %s88, %s89
    %p101 = scmp.eq.s32.totalorder %s16, 1
    %p102 = por %p100, %p101
    %p104 = scmp.ne.s32.totalorder %s89, %s103
    %p105 = scmp.eq.s32.totalorder %s16, 0
    %p106 = por %p104, %p105
    %s107 = ssub.s32 %s10, %s17
    %p108 = scmp.eq.s32.totalorder %s107, 0
    %s110 = sadd.s32 %s109, 1
    %s111 = scalar_select %p108, %s109, %s110
    %p114 = pneg %p108
    %p115 = scmp.eq.s32.totalorder %s10, 1
    %p116 = por %p114, %p115
    %p117 = scmp.ne.s32.totalorder %s109, %s112
    %p118 = scmp.eq.s32.totalorder %s10, 0
    %p119 = por %p117, %p118
    %p120 = scmp.ne.s32.totalorder %s109, %s112
    %p121 = scmp.eq.s32.totalorder %s15, 1
    %p122 = por %p120, %p121
    %p123 = scmp.ne.s32.totalorder %s112, %s113
    %p124 = scmp.eq.s32.totalorder %s15, 0
    %p125 = por %p123, %p124
    %p126 = scmp.ne.s32.totalorder %s112, %s113
    %p127 = scmp.eq.s32.totalorder %s16, 1
    %p128 = por %p126, %p127
    %p130 = scmp.ne.s32.totalorder %s113, %s129
    %p131 = scmp.eq.s32.totalorder %s16, 0
    %p132 = por %p130, %p131
    %p133 = scmp.le.s32.totalorder 1, %s10
    %p134 = scmp.lt.s32.totalorder %s10, 3
    %p135 = pnand %p133, %p134
    %p136 = pneg %p135
    // Predicated region
    $region9: #{lstm_pallas.1} parent=5 // pred_check
      _
    $region10: #{lstm_pallas.1} parent=5 // pred_check_branch
      %138 = sbr.rel (%p135) target = $region12
    $region11: #{lstm_pallas.1} parent=5 // pred_region
      %s139 = ssub.s32 %s10, 1
      // Predicated region
      $region13: #{lstm_pallas.1} parent=11 // pred_check
        %p140 = pneg %p57
      $region14: #{lstm_pallas.1} parent=11 // pred_check_branch
        %142 = sbr.rel (%p140) target = $region16
      $region15: #{lstm_pallas.1} parent=11 // pred_region
        _
      $region16: #{lstm_pallas.1} parent=11 // pred_fallthru
        _
      // Predicated region
      $region17: #{lstm_pallas.1} parent=11 // pred_check
        %p143 = pneg %p78
      $region18: #{lstm_pallas.1} parent=11 // pred_check_branch
        %145 = sbr.rel (%p143) target = $region20
      $region19: #{lstm_pallas.1} parent=11 // pred_region
        _
      $region20: #{lstm_pallas.1} parent=11 // pred_fallthru
        _
      // Predicated region
      $region21: #{lstm_pallas.1} parent=11 // pred_check
        %p146 = pneg %p99
      $region22: #{lstm_pallas.1} parent=11 // pred_check_branch
        %148 = sbr.rel (%p146) target = $region24
      $region23: #{lstm_pallas.1} parent=11 // pred_region
        _
      $region24: #{lstm_pallas.1} parent=11 // pred_fallthru
        _
    $region12: #{lstm_pallas.1} parent=5 // pred_fallthru
      _
    %p149 = scmp.lt.s32.totalorder %s10, 2
    // Predicated region
    $region25: #{lstm_pallas.1} parent=5 // pred_check
      %p150 = pneg %p149
    $region26: #{lstm_pallas.1} parent=5 // pred_check_branch
      %152 = sbr.rel (%p150) target = $region28
    $region27: #{lstm_pallas.1} parent=5 // pred_region
      // Predicated region
      $region29: #{lstm_pallas.1} parent=27 // pred_check
        %p153 = pneg %p30
      $region30: #{lstm_pallas.1} parent=27 // pred_check_branch
        %155 = sbr.rel (%p153) target = $region32
      $region31: #{lstm_pallas.1} parent=27 // pred_region
        %s156 = smul.u32 32, %s10
        %p157 = scmp.lt.s32.totalorder %s156, 63
        %s158 = scalar_select %p157, %s156, 63
        %s159 = smul.addr %s158, 8
        %s160 = scalar_lea.vmem %s0, %s159
        %s161 = smul.u32 32, %s10
      $region32: #{lstm_pallas.1} parent=27 // pred_fallthru
        _
    $region28: #{lstm_pallas.1} parent=5 // pred_fallthru
      _
    %p162 = scmp.le.s32.totalorder 1, %s10
    %p163 = scmp.lt.s32.totalorder %s10, 3
    %p164 = pnand %p162, %p163
    %p165 = pneg %p164
    // Predicated region
    $region33: #{lstm_pallas.1} parent=5 // pred_check
      _
    $region34: #{lstm_pallas.1} parent=5 // pred_check_branch
      %167 = sbr.rel (%p164) target = $region36
    $region35: #{lstm_pallas.1} parent=5 // pred_region
      %s168 = ssub.s32 %s10, 1
      %s169 = smul.u32 32, %s15
      %p170 = scmp.lt.s32.totalorder %s169, 63
      %s171 = scalar_select %p170, %s169, 63
      %s172 = smul.addr %s171, 8
      %s173 = scalar_lea.vmem %s0, %s172
      %p174 = pneg %p36
      %p175 = pneg %p33
      %p176 = pneg %p57
      %p177 = pneg %p54
      %p178 = pneg %p78
      %p179 = pneg %p75
      %p180 = pneg %p99
      %p181 = pneg %p96
      %p182 = pneg %p125
      %p183 = pneg %p122
      %s184 = smul.u32 16, %s15
      %p185 = scmp.lt.s32.totalorder %s184, 31
      %s186 = scalar_select %p185, %s184, 31
      %s187 = smul.addr %s186, 8
      %s188 = scalar_lea.vmem %s4, %s187
      %s189 = smul.u32 32, %s15
      %p190 = scmp.lt.s32.totalorder %s189, 63
      %s191 = scalar_select %p190, %s189, 63
      %s192 = smul.addr %s191, 8
      %s193 = scalar_lea.vmem %s0, %s192
      %s194 = smul.u32 32, %s15
      %s195 = smul.u32 16, %s15
      %p196 = scmp.lt.s32.totalorder %s195, 31
      %s197 = scalar_select %p196, %s195, 31
      %s198 = smul.addr %s197, 8
      %s199 = scalar_lea.vmem %s4, %s198
      %s200 = smul.u32 16, %s15
      %p201 = scmp.eq.s32.totalorder %s15, 0
      // Predicated region
      $region37: #{lstm_pallas.1} parent=35 // pred_check
        %p202 = pneg %p201
      $region38: #{lstm_pallas.1} parent=35 // pred_check_branch
        %204 = sbr.rel (%p202) target = $region40
      $region39: #{lstm_pallas.1} parent=35 // pred_region
        %v205 = vld [vmem:[%s2] sm:$0xff]
        %vm206 = vcmask 261120
        %207 = vst.msk [vmem:[#allocation2] sm:$0xff] %vm206, %v205
        %v208 = vld [vmem:[%s3] sm:$0xff]
        %209 = vst.msk [vmem:[#allocation3] sm:$0xff] %vm206, %v208
      $region40: #{lstm_pallas.1} parent=35 // pred_fallthru
        _
      %v210 = vld [vmem:[%s1] sm:$0xff]
      %v211 = vld [vmem:[%s1 + $0x8] sm:$0xff]
      %v212 = vld [vmem:[%s1 + $0x10] sm:$0xff]
      %v213 = vld [vmem:[%s1 + $0x18] sm:$0xff]
      %v214 = vld [vmem:[#allocation2] sm:$0xff]
      %v215 = vld [vmem:[#allocation3] sm:$0xff]
      %v216 = vld [vmem:[%s193] sm:$0xff]
      %vm217 = vcmask 261120
      %v219 = vsel %vm217, %v214, 0
      %221 = vmatpush.msra.mxu0 0.0
      %222 = vmatpush.msra.mxu0 0.0
      %223 = vmatpush.msra.mxu0 0.0
      %224 = vmatpush.msra.mxu0 0.0
      %225 = vmatpush.msra.mxu0 0.0
      %226 = vmatpush.msra.mxu0 0.0
      %227 = vmatpush.msra.mxu0 0.0
      %228 = vmatpush.msra.mxu0 0.0
      %229 = vmatpush.msra.mxu0 0.0
      %230 = vmatpush.msra.mxu0 0.0
      %231 = vmatpush.msra.mxu0 0.0
      %232 = vmatpush.msra.mxu0 0.0
      %233 = vmatpush.msra.mxu0 %v213
      %234 = vmatpush.msra.mxu0 %v212
      %235 = vmatpush.msra.mxu0 %v211
      %236 = vmatpush.msra.mxu0 %v210
      %237 = vmatmul.f32.gmra.mxu0 %v219
      %v238 = vpop.f32.mrf.mxu0
      %v239 = vadd.f32 0.0, %v238
      %240 = vdwg.mxu0
      %v241 = vadd.f32 %v216, %v239
      %v242 = vxor.u32 %v241, 2147483648
      %v243 = vmul.f32 %v242, 1.442695
      %v244 = vpow.pop %v243
      %v245 = vadd.f32 %v244, 1.0
      %v246 = vrcp.pop %v245
      %v247 = vmul.f32 %v245, %v246
      %v248 = vsub.f32 1.0, %v247
      %v249 = vmul.f32 %v246, %v248
      %v250 = vadd.f32 %v246, %v249
      %vm251 = vweird.f32 %v245
      %vm252 = vweird.f32 %v246
      %vm253 = vmor %vm251, %vm252
      %v254 = vsel %vm253, %v246, %v250
      %v255 = vand.u32 2147483647, %v245
      %vm256 = vcmp.eq.f32.partialorder %v255, 8.507059e+37
      %v257 = vand.u32 %v245, 2147483648
      %v258 = vor.u32 1.1754944e-38, %v257
      %v259 = vsel %vm256, %v258, %v254
      %v260 = vmul.f32 1.0, %v259
      %v261 = vtanh.pop %v241
      %263 = vrot.lane.b32.xlu0 %v215, 32
      %v264 = vpop.permute.xlu0 %263
      %v266 = vmul.f32 %v260, %v264
      %268 = vrot.lane.b32.xlu0 %v261, 64
      %v269 = vpop.permute.xlu0 %268
      %v271 = vmul.f32 %v260, %v269
      %273 = vrot.lane.b32.xlu0 %v271, 32
      %v274 = vpop.permute.xlu0 %273
      %v276 = vadd.f32 %v266, %v274
      %v277 = vtanh.pop %v276
      %279 = vrot.lane.b32.xlu0 %v277, 64
      %v280 = vpop.permute.xlu0 %279
      %v282 = vmul.f32 %v260, %v280
      %284 = vrot.lane.b32.xlu0 %v282, 32
      %v285 = vpop.permute.xlu0 %284
      %v287 = vsel %vm217, %v285, %v276
      %s288 = scalar_lea.vmem %s193, 8
      %v289 = vld [vmem:[%s288] sm:$0xff]
      %v290 = vsel %vm217, %v285, 0
      %292 = vmatpush.msra.mxu0 0.0
      %293 = vmatpush.msra.mxu0 0.0
      %294 = vmatpush.msra.mxu0 0.0
      %295 = vmatpush.msra.mxu0 0.0
      %296 = vmatpush.msra.mxu0 0.0
      %297 = vmatpush.msra.mxu0 0.0
      %298 = vmatpush.msra.mxu0 0.0
      %299 = vmatpush.msra.mxu0 0.0
      %300 = vmatpush.msra.mxu0 0.0
      %301 = vmatpush.msra.mxu0 0.0
      %302 = vmatpush.msra.mxu0 0.0
      %303 = vmatpush.msra.mxu0 0.0
      %304 = vmatpush.msra.mxu0 %v213
      %305 = vmatpush.msra.mxu0 %v212
      %306 = vmatpush.msra.mxu0 %v211
      %307 = vmatpush.msra.mxu0 %v210
      %308 = vmatmul.f32.gmra.mxu0 %v290
      %v309 = vpop.f32.mrf.mxu0
      %v310 = vadd.f32 0.0, %v309
      %311 = vdwg.mxu0
      %v312 = vadd.f32 %v289, %v310
      %v313 = vxor.u32 %v312, 2147483648
      %v314 = vmul.f32 %v313, 1.442695
      %v315 = vpow.pop %v314
      %v316 = vadd.f32 %v315, 1.0
      %v317 = vrcp.pop %v316
      %v318 = vmul.f32 %v316, %v317
      %v319 = vsub.f32 1.0, %v318
      %v320 = vmul.f32 %v317, %v319
      %v321 = vadd.f32 %v317, %v320
      %vm322 = vweird.f32 %v316
      %vm323 = vweird.f32 %v317
      %vm324 = vmor %vm322, %vm323
      %v325 = vsel %vm324, %v317, %v321
      %v326 = vand.u32 2147483647, %v316
      %vm327 = vcmp.eq.f32.partialorder %v326, 8.507059e+37
      %v328 = vand.u32 %v316, 2147483648
      %v329 = vor.u32 1.1754944e-38, %v328
      %v330 = vsel %vm327, %v329, %v325
      %v331 = vmul.f32 1.0, %v330
      %v332 = vtanh.pop %v312
      %v333 = vmul.f32 %v331, %v276
      %335 = vrot.lane.b32.xlu0 %v332, 64
      %v336 = vpop.permute.xlu0 %335
      %v338 = vmul.f32 %v331, %v336
      %340 = vrot.lane.b32.xlu0 %v338, 32
      %v341 = vpop.permute.xlu0 %340
      %v343 = vadd.f32 %v333, %v341
      %v344 = vtanh.pop %v343
      %346 = vrot.lane.b32.xlu0 %v344, 64
      %v347 = vpop.permute.xlu0 %346
      %v349 = vmul.f32 %v331, %v347
      %351 = vrot.lane.b32.xlu0 %v349, 32
      %v352 = vpop.permute.xlu0 %351
      %v354 = vsel %vm217, %v352, %v343
      %356 = vrot.lane.b32.xlu0 %v354, 64
      %v357 = vpop.permute.xlu0 %356
      %vm359 = vcmask 523264
      %v360 = vsel %vm359, %v287, %v357
      %361 = vst [vmem:[%s199] sm:$0xff] %v360
      %s362 = scalar_lea.vmem %s193, 16
      %v363 = vld [vmem:[%s362] sm:$0xff]
      %v364 = vsel %vm217, %v352, 0
      %366 = vmatpush.msra.mxu0 0.0
      %367 = vmatpush.msra.mxu0 0.0
      %368 = vmatpush.msra.mxu0 0.0
      %369 = vmatpush.msra.mxu0 0.0
      %370 = vmatpush.msra.mxu0 0.0
      %371 = vmatpush.msra.mxu0 0.0
      %372 = vmatpush.msra.mxu0 0.0
      %373 = vmatpush.msra.mxu0 0.0
      %374 = vmatpush.msra.mxu0 0.0
      %375 = vmatpush.msra.mxu0 0.0
      %376 = vmatpush.msra.mxu0 0.0
      %377 = vmatpush.msra.mxu0 0.0
      %378 = vmatpush.msra.mxu0 %v213
      %379 = vmatpush.msra.mxu0 %v212
      %380 = vmatpush.msra.mxu0 %v211
      %381 = vmatpush.msra.mxu0 %v210
      %382 = vmatmul.f32.gmra.mxu0 %v364
      %v383 = vpop.f32.mrf.mxu0
      %v384 = vadd.f32 0.0, %v383
      %385 = vdwg.mxu0
      %v386 = vadd.f32 %v363, %v384
      %v387 = vxor.u32 %v386, 2147483648
      %v388 = vmul.f32 %v387, 1.442695
      %v389 = vpow.pop %v388
      %v390 = vadd.f32 %v389, 1.0
      %v391 = vrcp.pop %v390
      %v392 = vmul.f32 %v390, %v391
      %v393 = vsub.f32 1.0, %v392
      %v394 = vmul.f32 %v391, %v393
      %v395 = vadd.f32 %v391, %v394
      %vm396 = vweird.f32 %v390
      %vm397 = vweird.f32 %v391
      %vm398 = vmor %vm396, %vm397
      %v399 = vsel %vm398, %v391, %v395
      %v400 = vand.u32 2147483647, %v390
      %vm401 = vcmp.eq.f32.partialorder %v400, 8.507059e+37
      %v402 = vand.u32 %v390, 2147483648
      %v403 = vor.u32 1.1754944e-38, %v402
      %v404 = vsel %vm401, %v403, %v399
      %v405 = vmul.f32 1.0, %v404
      %v406 = vtanh.pop %v386
      %v407 = vmul.f32 %v405, %v343
      %409 = vrot.lane.b32.xlu0 %v406, 64
      %v410 = vpop.permute.xlu0 %409
      %v412 = vmul.f32 %v405, %v410
      %414 = vrot.lane.b32.xlu0 %v412, 32
      %v415 = vpop.permute.xlu0 %414
      %v417 = vadd.f32 %v407, %v415
      %v418 = vtanh.pop %v417
      %420 = vrot.lane.b32.xlu0 %v418, 64
      %v421 = vpop.permute.xlu0 %420
      %v423 = vmul.f32 %v405, %v421
      %425 = vrot.lane.b32.xlu0 %v423, 32
      %v426 = vpop.permute.xlu0 %425
      %v428 = vsel %vm217, %v426, %v417
      %s429 = scalar_lea.vmem %s193, 24
      %v430 = vld [vmem:[%s429] sm:$0xff]
      %v431 = vsel %vm217, %v426, 0
      %433 = vmatpush.msra.mxu0 0.0
      %434 = vmatpush.msra.mxu0 0.0
      %435 = vmatpush.msra.mxu0 0.0
      %436 = vmatpush.msra.mxu0 0.0
      %437 = vmatpush.msra.mxu0 0.0
      %438 = vmatpush.msra.mxu0 0.0
      %439 = vmatpush.msra.mxu0 0.0
      %440 = vmatpush.msra.mxu0 0.0
      %441 = vmatpush.msra.mxu0 0.0
      %442 = vmatpush.msra.mxu0 0.0
      %443 = vmatpush.msra.mxu0 0.0
      %444 = vmatpush.msra.mxu0 0.0
      %445 = vmatpush.msra.mxu0 %v213
      %446 = vmatpush.msra.mxu0 %v212
      %447 = vmatpush.msra.mxu0 %v211
      %448 = vmatpush.msra.mxu0 %v210
      %449 = vmatmul.f32.gmra.mxu0 %v431
      %v450 = vpop.f32.mrf.mxu0
      %v451 = vadd.f32 0.0, %v450
      %452 = vdwg.mxu0
      %v453 = vadd.f32 %v430, %v451
      %v454 = vxor.u32 %v453, 2147483648
      %v455 = vmul.f32 %v454, 1.442695
      %v456 = vpow.pop %v455
      %v457 = vadd.f32 %v456, 1.0
      %v458 = vrcp.pop %v457
      %v459 = vmul.f32 %v457, %v458
      %v460 = vsub.f32 1.0, %v459
      %v461 = vmul.f32 %v458, %v460
      %v462 = vadd.f32 %v458, %v461
      %vm463 = vweird.f32 %v457
      %vm464 = vweird.f32 %v458
      %vm465 = vmor %vm463, %vm464
      %v466 = vsel %vm465, %v458, %v462
      %v467 = vand.u32 2147483647, %v457
      %vm468 = vcmp.eq.f32.partialorder %v467, 8.507059e+37
      %v469 = vand.u32 %v457, 2147483648
      %v470 = vor.u32 1.1754944e-38, %v469
      %v471 = vsel %vm468, %v470, %v466
      %v472 = vmul.f32 1.0, %v471
      %v473 = vtanh.pop %v453
      %v474 = vmul.f32 %v472, %v417
      %476 = vrot.lane.b32.xlu0 %v473, 64
      %v477 = vpop.permute.xlu0 %476
      %v479 = vmul.f32 %v472, %v477
      %481 = vrot.lane.b32.xlu0 %v479, 32
      %v482 = vpop.permute.xlu0 %481
      %v484 = vadd.f32 %v474, %v482
      %v485 = vtanh.pop %v484
      %487 = vrot.lane.b32.xlu0 %v485, 64
      %v488 = vpop.permute.xlu0 %487
      %v490 = vmul.f32 %v472, %v488
      %492 = vrot.lane.b32.xlu0 %v490, 32
      %v493 = vpop.permute.xlu0 %492
      %v495 = vsel %vm217, %v493, %v484
      %497 = vrot.lane.b32.xlu0 %v495, 64
      %v498 = vpop.permute.xlu0 %497
      %v500 = vsel %vm359, %v428, %v498
      %501 = vst [vmem:[%s199 + $0x8] sm:$0xff] %v500
      %s502 = scalar_lea.vmem %s193, 32
      %v503 = vld [vmem:[%s502] sm:$0xff]
      %v504 = vsel %vm217, %v493, 0
      %506 = vmatpush.msra.mxu0 0.0
      %507 = vmatpush.msra.mxu0 0.0
      %508 = vmatpush.msra.mxu0 0.0
      %509 = vmatpush.msra.mxu0 0.0
      %510 = vmatpush.msra.mxu0 0.0
      %511 = vmatpush.msra.mxu0 0.0
      %512 = vmatpush.msra.mxu0 0.0
      %513 = vmatpush.msra.mxu0 0.0
      %514 = vmatpush.msra.mxu0 0.0
      %515 = vmatpush.msra.mxu0 0.0
      %516 = vmatpush.msra.mxu0 0.0
      %517 = vmatpush.msra.mxu0 0.0
      %518 = vmatpush.msra.mxu0 %v213
      %519 = vmatpush.msra.mxu0 %v212
      %520 = vmatpush.msra.mxu0 %v211
      %521 = vmatpush.msra.mxu0 %v210
      %522 = vmatmul.f32.gmra.mxu0 %v504
      %v523 = vpop.f32.mrf.mxu0
      %v524 = vadd.f32 0.0, %v523
      %525 = vdwg.mxu0
      %v526 = vadd.f32 %v503, %v524
      %v527 = vxor.u32 %v526, 2147483648
      %v528 = vmul.f32 %v527, 1.442695
      %v529 = vpow.pop %v528
      %v530 = vadd.f32 %v529, 1.0
      %v531 = vrcp.pop %v530
      %v532 = vmul.f32 %v530, %v531
      %v533 = vsub.f32 1.0, %v532
      %v534 = vmul.f32 %v531, %v533
      %v535 = vadd.f32 %v531, %v534
      %vm536 = vweird.f32 %v530
      %vm537 = vweird.f32 %v531
      %vm538 = vmor %vm536, %vm537
      %v539 = vsel %vm538, %v531, %v535
      %v540 = vand.u32 2147483647, %v530
      %vm541 = vcmp.eq.f32.partialorder %v540, 8.507059e+37
      %v542 = vand.u32 %v530, 2147483648
      %v543 = vor.u32 1.1754944e-38, %v542
      %v544 = vsel %vm541, %v543, %v539
      %v545 = vmul.f32 1.0, %v544
      %v546 = vtanh.pop %v526
      %v547 = vmul.f32 %v545, %v484
      %549 = vrot.lane.b32.xlu0 %v546, 64
      %v550 = vpop.permute.xlu0 %549
      %v552 = vmul.f32 %v545, %v550
      %554 = vrot.lane.b32.xlu0 %v552, 32
      %v555 = vpop.permute.xlu0 %554
      %v557 = vadd.f32 %v547, %v555
      %v558 = vtanh.pop %v557
      %560 = vrot.lane.b32.xlu0 %v558, 64
      %v561 = vpop.permute.xlu0 %560
      %v563 = vmul.f32 %v545, %v561
      %565 = vrot.lane.b32.xlu0 %v563, 32
      %v566 = vpop.permute.xlu0 %565
      %v568 = vsel %vm217, %v566, %v557
      %s569 = scalar_lea.vmem %s193, 40
      %v570 = vld [vmem:[%s569] sm:$0xff]
      %v571 = vsel %vm217, %v566, 0
      %573 = vmatpush.msra.mxu0 0.0
      %574 = vmatpush.msra.mxu0 0.0
      %575 = vmatpush.msra.mxu0 0.0
      %576 = vmatpush.msra.mxu0 0.0
      %577 = vmatpush.msra.mxu0 0.0
      %578 = vmatpush.msra.mxu0 0.0
      %579 = vmatpush.msra.mxu0 0.0
      %580 = vmatpush.msra.mxu0 0.0
      %581 = vmatpush.msra.mxu0 0.0
      %582 = vmatpush.msra.mxu0 0.0
      %583 = vmatpush.msra.mxu0 0.0
      %584 = vmatpush.msra.mxu0 0.0
      %585 = vmatpush.msra.mxu0 %v213
      %586 = vmatpush.msra.mxu0 %v212
      %587 = vmatpush.msra.mxu0 %v211
      %588 = vmatpush.msra.mxu0 %v210
      %589 = vmatmul.f32.gmra.mxu0 %v571
      %v590 = vpop.f32.mrf.mxu0
      %v591 = vadd.f32 0.0, %v590
      %592 = vdwg.mxu0
      %v593 = vadd.f32 %v570, %v591
      %v594 = vxor.u32 %v593, 2147483648
      %v595 = vmul.f32 %v594, 1.442695
      %v596 = vpow.pop %v595
      %v597 = vadd.f32 %v596, 1.0
      %v598 = vrcp.pop %v597
      %v599 = vmul.f32 %v597, %v598
      %v600 = vsub.f32 1.0, %v599
      %v601 = vmul.f32 %v598, %v600
      %v602 = vadd.f32 %v598, %v601
      %vm603 = vweird.f32 %v597
      %vm604 = vweird.f32 %v598
      %vm605 = vmor %vm603, %vm604
      %v606 = vsel %vm605, %v598, %v602
      %v607 = vand.u32 2147483647, %v597
      %vm608 = vcmp.eq.f32.partialorder %v607, 8.507059e+37
      %v609 = vand.u32 %v597, 2147483648
      %v610 = vor.u32 1.1754944e-38, %v609
      %v611 = vsel %vm608, %v610, %v606
      %v612 = vmul.f32 1.0, %v611
      %v613 = vtanh.pop %v593
      %v614 = vmul.f32 %v612, %v557
      %616 = vrot.lane.b32.xlu0 %v613, 64
      %v617 = vpop.permute.xlu0 %616
      %v619 = vmul.f32 %v612, %v617
      %621 = vrot.lane.b32.xlu0 %v619, 32
      %v622 = vpop.permute.xlu0 %621
      %v624 = vadd.f32 %v614, %v622
      %v625 = vtanh.pop %v624
      %627 = vrot.lane.b32.xlu0 %v625, 64
      %v628 = vpop.permute.xlu0 %627
      %v630 = vmul.f32 %v612, %v628
      %632 = vrot.lane.b32.xlu0 %v630, 32
      %v633 = vpop.permute.xlu0 %632
      %v635 = vsel %vm217, %v633, %v624
      %637 = vrot.lane.b32.xlu0 %v635, 64
      %v638 = vpop.permute.xlu0 %637
      %v640 = vsel %vm359, %v568, %v638
      %641 = vst [vmem:[%s199 + $0x10] sm:$0xff] %v640
      %s642 = scalar_lea.vmem %s193, 48
      %v643 = vld [vmem:[%s642] sm:$0xff]
      %v644 = vsel %vm217, %v633, 0
      %646 = vmatpush.msra.mxu0 0.0
      %647 = vmatpush.msra.mxu0 0.0
      %648 = vmatpush.msra.mxu0 0.0
      %649 = vmatpush.msra.mxu0 0.0
      %650 = vmatpush.msra.mxu0 0.0
      %651 = vmatpush.msra.mxu0 0.0
      %652 = vmatpush.msra.mxu0 0.0
      %653 = vmatpush.msra.mxu0 0.0
      %654 = vmatpush.msra.mxu0 0.0
      %655 = vmatpush.msra.mxu0 0.0
      %656 = vmatpush.msra.mxu0 0.0
      %657 = vmatpush.msra.mxu0 0.0
      %658 = vmatpush.msra.mxu0 %v213
      %659 = vmatpush.msra.mxu0 %v212
      %660 = vmatpush.msra.mxu0 %v211
      %661 = vmatpush.msra.mxu0 %v210
      %662 = vmatmul.f32.gmra.mxu0 %v644
      %v663 = vpop.f32.mrf.mxu0
      %v664 = vadd.f32 0.0, %v663
      %665 = vdwg.mxu0
      %v666 = vadd.f32 %v643, %v664
      %v667 = vxor.u32 %v666, 2147483648
      %v668 = vmul.f32 %v667, 1.442695
      %v669 = vpow.pop %v668
      %v670 = vadd.f32 %v669, 1.0
      %v671 = vrcp.pop %v670
      %v672 = vmul.f32 %v670, %v671
      %v673 = vsub.f32 1.0, %v672
      %v674 = vmul.f32 %v671, %v673
      %v675 = vadd.f32 %v671, %v674
      %vm676 = vweird.f32 %v670
      %vm677 = vweird.f32 %v671
      %vm678 = vmor %vm676, %vm677
      %v679 = vsel %vm678, %v671, %v675
      %v680 = vand.u32 2147483647, %v670
      %vm681 = vcmp.eq.f32.partialorder %v680, 8.507059e+37
      %v682 = vand.u32 %v670, 2147483648
      %v683 = vor.u32 1.1754944e-38, %v682
      %v684 = vsel %vm681, %v683, %v679
      %v685 = vmul.f32 1.0, %v684
      %v686 = vtanh.pop %v666
      %v687 = vmul.f32 %v685, %v624
      %689 = vrot.lane.b32.xlu0 %v686, 64
      %v690 = vpop.permute.xlu0 %689
      %v692 = vmul.f32 %v685, %v690
      %694 = vrot.lane.b32.xlu0 %v692, 32
      %v695 = vpop.permute.xlu0 %694
      %v697 = vadd.f32 %v687, %v695
      %v698 = vtanh.pop %v697
      %700 = vrot.lane.b32.xlu0 %v698, 64
      %v701 = vpop.permute.xlu0 %700
      %v703 = vmul.f32 %v685, %v701
      %705 = vrot.lane.b32.xlu0 %v703, 32
      %v706 = vpop.permute.xlu0 %705
      %v708 = vsel %vm217, %v706, %v697
      %s709 = scalar_lea.vmem %s193, 56
      %v710 = vld [vmem:[%s709] sm:$0xff]
      %v711 = vsel %vm217, %v706, 0
      %713 = vmatpush.msra.mxu0 0.0
      %714 = vmatpush.msra.mxu0 0.0
      %715 = vmatpush.msra.mxu0 0.0
      %716 = vmatpush.msra.mxu0 0.0
      %717 = vmatpush.msra.mxu0 0.0
      %718 = vmatpush.msra.mxu0 0.0
      %719 = vmatpush.msra.mxu0 0.0
      %720 = vmatpush.msra.mxu0 0.0
      %721 = vmatpush.msra.mxu0 0.0
      %722 = vmatpush.msra.mxu0 0.0
      %723 = vmatpush.msra.mxu0 0.0
      %724 = vmatpush.msra.mxu0 0.0
      %725 = vmatpush.msra.mxu0 %v213
      %726 = vmatpush.msra.mxu0 %v212
      %727 = vmatpush.msra.mxu0 %v211
      %728 = vmatpush.msra.mxu0 %v210
      %729 = vmatmul.f32.gmra.mxu0 %v711
      %v730 = vpop.f32.mrf.mxu0
      %v731 = vadd.f32 0.0, %v730
      %732 = vdwg.mxu0
      %v733 = vadd.f32 %v710, %v731
      %v734 = vxor.u32 %v733, 2147483648
      %v735 = vmul.f32 %v734, 1.442695
      %v736 = vpow.pop %v735
      %v737 = vadd.f32 %v736, 1.0
      %v738 = vrcp.pop %v737
      %v739 = vmul.f32 %v737, %v738
      %v740 = vsub.f32 1.0, %v739
      %v741 = vmul.f32 %v738, %v740
      %v742 = vadd.f32 %v738, %v741
      %vm743 = vweird.f32 %v737
      %vm744 = vweird.f32 %v738
      %vm745 = vmor %vm743, %vm744
      %v746 = vsel %vm745, %v738, %v742
      %v747 = vand.u32 2147483647, %v737
      %vm748 = vcmp.eq.f32.partialorder %v747, 8.507059e+37
      %v749 = vand.u32 %v737, 2147483648
      %v750 = vor.u32 1.1754944e-38, %v749
      %v751 = vsel %vm748, %v750, %v746
      %v752 = vmul.f32 1.0, %v751
      %v753 = vtanh.pop %v733
      %v754 = vmul.f32 %v752, %v697
      %756 = vrot.lane.b32.xlu0 %v753, 64
      %v757 = vpop.permute.xlu0 %756
      %v759 = vmul.f32 %v752, %v757
      %761 = vrot.lane.b32.xlu0 %v759, 32
      %v762 = vpop.permute.xlu0 %761
      %v764 = vadd.f32 %v754, %v762
      %v765 = vtanh.pop %v764
      %767 = vrot.lane.b32.xlu0 %v765, 64
      %v768 = vpop.permute.xlu0 %767
      %v770 = vmul.f32 %v752, %v768
      %772 = vrot.lane.b32.xlu0 %v770, 32
      %v773 = vpop.permute.xlu0 %772
      %v775 = vsel %vm217, %v773, %v764
      %777 = vrot.lane.b32.xlu0 %v775, 64
      %v778 = vpop.permute.xlu0 %777
      %v780 = vsel %vm359, %v708, %v778
      %781 = vst [vmem:[%s199 + $0x18] sm:$0xff] %v780
      %s782 = scalar_lea.vmem %s193, 64
      %v783 = vld [vmem:[%s782] sm:$0xff]
      %v784 = vsel %vm217, %v773, 0
      %786 = vmatpush.msra.mxu0 0.0
      %787 = vmatpush.msra.mxu0 0.0
      %788 = vmatpush.msra.mxu0 0.0
      %789 = vmatpush.msra.mxu0 0.0
      %790 = vmatpush.msra.mxu0 0.0
      %791 = vmatpush.msra.mxu0 0.0
      %792 = vmatpush.msra.mxu0 0.0
      %793 = vmatpush.msra.mxu0 0.0
      %794 = vmatpush.msra.mxu0 0.0
      %795 = vmatpush.msra.mxu0 0.0
      %796 = vmatpush.msra.mxu0 0.0
      %797 = vmatpush.msra.mxu0 0.0
      %798 = vmatpush.msra.mxu0 %v213
      %799 = vmatpush.msra.mxu0 %v212
      %800 = vmatpush.msra.mxu0 %v211
      %801 = vmatpush.msra.mxu0 %v210
      %802 = vmatmul.f32.gmra.mxu0 %v784
      %v803 = vpop.f32.mrf.mxu0
      %v804 = vadd.f32 0.0, %v803
      %805 = vdwg.mxu0
      %v806 = vadd.f32 %v783, %v804
      %v807 = vxor.u32 %v806, 2147483648
      %v808 = vmul.f32 %v807, 1.442695
      %v809 = vpow.pop %v808
      %v810 = vadd.f32 %v809, 1.0
      %v811 = vrcp.pop %v810
      %v812 = vmul.f32 %v810, %v811
      %v813 = vsub.f32 1.0, %v812
      %v814 = vmul.f32 %v811, %v813
      %v815 = vadd.f32 %v811, %v814
      %vm816 = vweird.f32 %v810
      %vm817 = vweird.f32 %v811
      %vm818 = vmor %vm816, %vm817
      %v819 = vsel %vm818, %v811, %v815
      %v820 = vand.u32 2147483647, %v810
      %vm821 = vcmp.eq.f32.partialorder %v820, 8.507059e+37
      %v822 = vand.u32 %v810, 2147483648
      %v823 = vor.u32 1.1754944e-38, %v822
      %v824 = vsel %vm821, %v823, %v819
      %v825 = vmul.f32 1.0, %v824
      %v826 = vtanh.pop %v806
      %v827 = vmul.f32 %v825, %v764
      %829 = vrot.lane.b32.xlu0 %v826, 64
      %v830 = vpop.permute.xlu0 %829
      %v832 = vmul.f32 %v825, %v830
      %834 = vrot.lane.b32.xlu0 %v832, 32
      %v835 = vpop.permute.xlu0 %834
      %v837 = vadd.f32 %v827, %v835
      %v838 = vtanh.pop %v837
      %840 = vrot.lane.b32.xlu0 %v838, 64
      %v841 = vpop.permute.xlu0 %840
      %v843 = vmul.f32 %v825, %v841
      %845 = vrot.lane.b32.xlu0 %v843, 32
      %v846 = vpop.permute.xlu0 %845
      %v848 = vsel %vm217, %v846, %v837
      %s849 = scalar_lea.vmem %s193, 72
      %v850 = vld [vmem:[%s849] sm:$0xff]
      %v851 = vsel %vm217, %v846, 0
      %853 = vmatpush.msra.mxu0 0.0
      %854 = vmatpush.msra.mxu0 0.0
      %855 = vmatpush.msra.mxu0 0.0
      %856 = vmatpush.msra.mxu0 0.0
      %857 = vmatpush.msra.mxu0 0.0
      %858 = vmatpush.msra.mxu0 0.0
      %859 = vmatpush.msra.mxu0 0.0
      %860 = vmatpush.msra.mxu0 0.0
      %861 = vmatpush.msra.mxu0 0.0
      %862 = vmatpush.msra.mxu0 0.0
      %863 = vmatpush.msra.mxu0 0.0
      %864 = vmatpush.msra.mxu0 0.0
      %865 = vmatpush.msra.mxu0 %v213
      %866 = vmatpush.msra.mxu0 %v212
      %867 = vmatpush.msra.mxu0 %v211
      %868 = vmatpush.msra.mxu0 %v210
      %869 = vmatmul.f32.gmra.mxu0 %v851
      %v870 = vpop.f32.mrf.mxu0
      %v871 = vadd.f32 0.0, %v870
      %872 = vdwg.mxu0
      %v873 = vadd.f32 %v850, %v871
      %v874 = vxor.u32 %v873, 2147483648
      %v875 = vmul.f32 %v874, 1.442695
      %v876 = vpow.pop %v875
      %v877 = vadd.f32 %v876, 1.0
      %v878 = vrcp.pop %v877
      %v879 = vmul.f32 %v877, %v878
      %v880 = vsub.f32 1.0, %v879
      %v881 = vmul.f32 %v878, %v880
      %v882 = vadd.f32 %v878, %v881
      %vm883 = vweird.f32 %v877
      %vm884 = vweird.f32 %v878
      %vm885 = vmor %vm883, %vm884
      %v886 = vsel %vm885, %v878, %v882
      %v887 = vand.u32 2147483647, %v877
      %vm888 = vcmp.eq.f32.partialorder %v887, 8.507059e+37
      %v889 = vand.u32 %v877, 2147483648
      %v890 = vor.u32 1.1754944e-38, %v889
      %v891 = vsel %vm888, %v890, %v886
      %v892 = vmul.f32 1.0, %v891
      %v893 = vtanh.pop %v873
      %v894 = vmul.f32 %v892, %v837
      %896 = vrot.lane.b32.xlu0 %v893, 64
      %v897 = vpop.permute.xlu0 %896
      %v899 = vmul.f32 %v892, %v897
      %901 = vrot.lane.b32.xlu0 %v899, 32
      %v902 = vpop.permute.xlu0 %901
      %v904 = vadd.f32 %v894, %v902
      %v905 = vtanh.pop %v904
      %907 = vrot.lane.b32.xlu0 %v905, 64
      %v908 = vpop.permute.xlu0 %907
      %v910 = vmul.f32 %v892, %v908
      %912 = vrot.lane.b32.xlu0 %v910, 32
      %v913 = vpop.permute.xlu0 %912
      %v915 = vsel %vm217, %v913, %v904
      %917 = vrot.lane.b32.xlu0 %v915, 64
      %v918 = vpop.permute.xlu0 %917
      %v920 = vsel %vm359, %v848, %v918
      %921 = vst [vmem:[%s199 + $0x20] sm:$0xff] %v920
      %s922 = scalar_lea.vmem %s193, 80
      %v923 = vld [vmem:[%s922] sm:$0xff]
      %v924 = vsel %vm217, %v913, 0
      %926 = vmatpush.msra.mxu0 0.0
      %927 = vmatpush.msra.mxu0 0.0
      %928 = vmatpush.msra.mxu0 0.0
      %929 = vmatpush.msra.mxu0 0.0
      %930 = vmatpush.msra.mxu0 0.0
      %931 = vmatpush.msra.mxu0 0.0
      %932 = vmatpush.msra.mxu0 0.0
      %933 = vmatpush.msra.mxu0 0.0
      %934 = vmatpush.msra.mxu0 0.0
      %935 = vmatpush.msra.mxu0 0.0
      %936 = vmatpush.msra.mxu0 0.0
      %937 = vmatpush.msra.mxu0 0.0
      %938 = vmatpush.msra.mxu0 %v213
      %939 = vmatpush.msra.mxu0 %v212
      %940 = vmatpush.msra.mxu0 %v211
      %941 = vmatpush.msra.mxu0 %v210
      %942 = vmatmul.f32.gmra.mxu0 %v924
      %v943 = vpop.f32.mrf.mxu0
      %v944 = vadd.f32 0.0, %v943
      %945 = vdwg.mxu0
      %v946 = vadd.f32 %v923, %v944
      %v947 = vxor.u32 %v946, 2147483648
      %v948 = vmul.f32 %v947, 1.442695
      %v949 = vpow.pop %v948
      %v950 = vadd.f32 %v949, 1.0
      %v951 = vrcp.pop %v950
      %v952 = vmul.f32 %v950, %v951
      %v953 = vsub.f32 1.0, %v952
      %v954 = vmul.f32 %v951, %v953
      %v955 = vadd.f32 %v951, %v954
      %vm956 = vweird.f32 %v950
      %vm957 = vweird.f32 %v951
      %vm958 = vmor %vm956, %vm957
      %v959 = vsel %vm958, %v951, %v955
      %v960 = vand.u32 2147483647, %v950
      %vm961 = vcmp.eq.f32.partialorder %v960, 8.507059e+37
      %v962 = vand.u32 %v950, 2147483648
      %v963 = vor.u32 1.1754944e-38, %v962
      %v964 = vsel %vm961, %v963, %v959
      %v965 = vmul.f32 1.0, %v964
      %v966 = vtanh.pop %v946
      %v967 = vmul.f32 %v965, %v904
      %969 = vrot.lane.b32.xlu0 %v966, 64
      %v970 = vpop.permute.xlu0 %969
      %v972 = vmul.f32 %v965, %v970
      %974 = vrot.lane.b32.xlu0 %v972, 32
      %v975 = vpop.permute.xlu0 %974
      %v977 = vadd.f32 %v967, %v975
      %v978 = vtanh.pop %v977
      %980 = vrot.lane.b32.xlu0 %v978, 64
      %v981 = vpop.permute.xlu0 %980
      %v983 = vmul.f32 %v965, %v981
      %985 = vrot.lane.b32.xlu0 %v983, 32
      %v986 = vpop.permute.xlu0 %985
      %v988 = vsel %vm217, %v986, %v977
      %s989 = scalar_lea.vmem %s193, 88
      %v990 = vld [vmem:[%s989] sm:$0xff]
      %v991 = vsel %vm217, %v986, 0
      %993 = vmatpush.msra.mxu0 0.0
      %994 = vmatpush.msra.mxu0 0.0
      %995 = vmatpush.msra.mxu0 0.0
      %996 = vmatpush.msra.mxu0 0.0
      %997 = vmatpush.msra.mxu0 0.0
      %998 = vmatpush.msra.mxu0 0.0
      %999 = vmatpush.msra.mxu0 0.0
      %1000 = vmatpush.msra.mxu0 0.0
      %1001 = vmatpush.msra.mxu0 0.0
      %1002 = vmatpush.msra.mxu0 0.0
      %1003 = vmatpush.msra.mxu0 0.0
      %1004 = vmatpush.msra.mxu0 0.0
      %1005 = vmatpush.msra.mxu0 %v213
      %1006 = vmatpush.msra.mxu0 %v212
      %1007 = vmatpush.msra.mxu0 %v211
      %1008 = vmatpush.msra.mxu0 %v210
      %1009 = vmatmul.f32.gmra.mxu0 %v991
      %v1010 = vpop.f32.mrf.mxu0
      %v1011 = vadd.f32 0.0, %v1010
      %1012 = vdwg.mxu0
      %v1013 = vadd.f32 %v990, %v1011
      %v1014 = vxor.u32 %v1013, 2147483648
      %v1015 = vmul.f32 %v1014, 1.442695
      %v1016 = vpow.pop %v1015
      %v1017 = vadd.f32 %v1016, 1.0
      %v1018 = vrcp.pop %v1017
      %v1019 = vmul.f32 %v1017, %v1018
      %v1020 = vsub.f32 1.0, %v1019
      %v1021 = vmul.f32 %v1018, %v1020
      %v1022 = vadd.f32 %v1018, %v1021
      %vm1023 = vweird.f32 %v1017
      %vm1024 = vweird.f32 %v1018
      %vm1025 = vmor %vm1023, %vm1024
      %v1026 = vsel %vm1025, %v1018, %v1022
      %v1027 = vand.u32 2147483647, %v1017
      %vm1028 = vcmp.eq.f32.partialorder %v1027, 8.507059e+37
      %v1029 = vand.u32 %v1017, 2147483648
      %v1030 = vor.u32 1.1754944e-38, %v1029
      %v1031 = vsel %vm1028, %v1030, %v1026
      %v1032 = vmul.f32 1.0, %v1031
      %v1033 = vtanh.pop %v1013
      %v1034 = vmul.f32 %v1032, %v977
      %1036 = vrot.lane.b32.xlu0 %v1033, 64
      %v1037 = vpop.permute.xlu0 %1036
      %v1039 = vmul.f32 %v1032, %v1037
      %1041 = vrot.lane.b32.xlu0 %v1039, 32
      %v1042 = vpop.permute.xlu0 %1041
      %v1044 = vadd.f32 %v1034, %v1042
      %v1045 = vtanh.pop %v1044
      %1047 = vrot.lane.b32.xlu0 %v1045, 64
      %v1048 = vpop.permute.xlu0 %1047
      %v1050 = vmul.f32 %v1032, %v1048
      %1052 = vrot.lane.b32.xlu0 %v1050, 32
      %v1053 = vpop.permute.xlu0 %1052
      %v1055 = vsel %vm217, %v1053, %v1044
      %1057 = vrot.lane.b32.xlu0 %v1055, 64
      %v1058 = vpop.permute.xlu0 %1057
      %v1060 = vsel %vm359, %v988, %v1058
      %1061 = vst [vmem:[%s199 + $0x28] sm:$0xff] %v1060
      %s1062 = scalar_lea.vmem %s193, 96
      %v1063 = vld [vmem:[%s1062] sm:$0xff]
      %v1064 = vsel %vm217, %v1053, 0
      %1066 = vmatpush.msra.mxu0 0.0
      %1067 = vmatpush.msra.mxu0 0.0
      %1068 = vmatpush.msra.mxu0 0.0
      %1069 = vmatpush.msra.mxu0 0.0
      %1070 = vmatpush.msra.mxu0 0.0
      %1071 = vmatpush.msra.mxu0 0.0
      %1072 = vmatpush.msra.mxu0 0.0
      %1073 = vmatpush.msra.mxu0 0.0
      %1074 = vmatpush.msra.mxu0 0.0
      %1075 = vmatpush.msra.mxu0 0.0
      %1076 = vmatpush.msra.mxu0 0.0
      %1077 = vmatpush.msra.mxu0 0.0
      %1078 = vmatpush.msra.mxu0 %v213
      %1079 = vmatpush.msra.mxu0 %v212
      %1080 = vmatpush.msra.mxu0 %v211
      %1081 = vmatpush.msra.mxu0 %v210
      %1082 = vmatmul.f32.gmra.mxu0 %v1064
      %v1083 = vpop.f32.mrf.mxu0
      %v1084 = vadd.f32 0.0, %v1083
      %1085 = vdwg.mxu0
      %v1086 = vadd.f32 %v1063, %v1084
      %v1087 = vxor.u32 %v1086, 2147483648
      %v1088 = vmul.f32 %v1087, 1.442695
      %v1089 = vpow.pop %v1088
      %v1090 = vadd.f32 %v1089, 1.0
      %v1091 = vrcp.pop %v1090
      %v1092 = vmul.f32 %v1090, %v1091
      %v1093 = vsub.f32 1.0, %v1092
      %v1094 = vmul.f32 %v1091, %v1093
      %v1095 = vadd.f32 %v1091, %v1094
      %vm1096 = vweird.f32 %v1090
      %vm1097 = vweird.f32 %v1091
      %vm1098 = vmor %vm1096, %vm1097
      %v1099 = vsel %vm1098, %v1091, %v1095
      %v1100 = vand.u32 2147483647, %v1090
      %vm1101 = vcmp.eq.f32.partialorder %v1100, 8.507059e+37
      %v1102 = vand.u32 %v1090, 2147483648
      %v1103 = vor.u32 1.1754944e-38, %v1102
      %v1104 = vsel %vm1101, %v1103, %v1099
      %v1105 = vmul.f32 1.0, %v1104
      %v1106 = vtanh.pop %v1086
      %v1107 = vmul.f32 %v1105, %v1044
      %1109 = vrot.lane.b32.xlu0 %v1106, 64
      %v1110 = vpop.permute.xlu0 %1109
      %v1112 = vmul.f32 %v1105, %v1110
      %1114 = vrot.lane.b32.xlu0 %v1112, 32
      %v1115 = vpop.permute.xlu0 %1114
      %v1117 = vadd.f32 %v1107, %v1115
      %v1118 = vtanh.pop %v1117
      %1120 = vrot.lane.b32.xlu0 %v1118, 64
      %v1121 = vpop.permute.xlu0 %1120
      %v1123 = vmul.f32 %v1105, %v1121
      %1125 = vrot.lane.b32.xlu0 %v1123, 32
      %v1126 = vpop.permute.xlu0 %1125
      %v1128 = vsel %vm217, %v1126, %v1117
      %s1129 = scalar_lea.vmem %s193, 104
      %v1130 = vld [vmem:[%s1129] sm:$0xff]
      %v1131 = vsel %vm217, %v1126, 0
      %1133 = vmatpush.msra.mxu0 0.0
      %1134 = vmatpush.msra.mxu0 0.0
      %1135 = vmatpush.msra.mxu0 0.0
      %1136 = vmatpush.msra.mxu0 0.0
      %1137 = vmatpush.msra.mxu0 0.0
      %1138 = vmatpush.msra.mxu0 0.0
      %1139 = vmatpush.msra.mxu0 0.0
      %1140 = vmatpush.msra.mxu0 0.0
      %1141 = vmatpush.msra.mxu0 0.0
      %1142 = vmatpush.msra.mxu0 0.0
      %1143 = vmatpush.msra.mxu0 0.0
      %1144 = vmatpush.msra.mxu0 0.0
      %1145 = vmatpush.msra.mxu0 %v213
      %1146 = vmatpush.msra.mxu0 %v212
      %1147 = vmatpush.msra.mxu0 %v211
      %1148 = vmatpush.msra.mxu0 %v210
      %1149 = vmatmul.f32.gmra.mxu0 %v1131
      %v1150 = vpop.f32.mrf.mxu0
      %v1151 = vadd.f32 0.0, %v1150
      %1152 = vdwg.mxu0
      %v1153 = vadd.f32 %v1130, %v1151
      %v1154 = vxor.u32 %v1153, 2147483648
      %v1155 = vmul.f32 %v1154, 1.442695
      %v1156 = vpow.pop %v1155
      %v1157 = vadd.f32 %v1156, 1.0
      %v1158 = vrcp.pop %v1157
      %v1159 = vmul.f32 %v1157, %v1158
      %v1160 = vsub.f32 1.0, %v1159
      %v1161 = vmul.f32 %v1158, %v1160
      %v1162 = vadd.f32 %v1158, %v1161
      %vm1163 = vweird.f32 %v1157
      %vm1164 = vweird.f32 %v1158
      %vm1165 = vmor %vm1163, %vm1164
      %v1166 = vsel %vm1165, %v1158, %v1162
      %v1167 = vand.u32 2147483647, %v1157
      %vm1168 = vcmp.eq.f32.partialorder %v1167, 8.507059e+37
      %v1169 = vand.u32 %v1157, 2147483648
      %v1170 = vor.u32 1.1754944e-38, %v1169
      %v1171 = vsel %vm1168, %v1170, %v1166
      %v1172 = vmul.f32 1.0, %v1171
      %v1173 = vtanh.pop %v1153
      %v1174 = vmul.f32 %v1172, %v1117
      %1176 = vrot.lane.b32.xlu0 %v1173, 64
      %v1177 = vpop.permute.xlu0 %1176
      %v1179 = vmul.f32 %v1172, %v1177
      %1181 = vrot.lane.b32.xlu0 %v1179, 32
      %v1182 = vpop.permute.xlu0 %1181
      %v1184 = vadd.f32 %v1174, %v1182
      %v1185 = vtanh.pop %v1184
      %1187 = vrot.lane.b32.xlu0 %v1185, 64
      %v1188 = vpop.permute.xlu0 %1187
      %v1190 = vmul.f32 %v1172, %v1188
      %1192 = vrot.lane.b32.xlu0 %v1190, 32
      %v1193 = vpop.permute.xlu0 %1192
      %v1195 = vsel %vm217, %v1193, %v1184
      %1197 = vrot.lane.b32.xlu0 %v1195, 64
      %v1198 = vpop.permute.xlu0 %1197
      %v1200 = vsel %vm359, %v1128, %v1198
      %1201 = vst [vmem:[%s199 + $0x30] sm:$0xff] %v1200
      %s1202 = scalar_lea.vmem %s193, 112
      %v1203 = vld [vmem:[%s1202] sm:$0xff]
      %v1204 = vsel %vm217, %v1193, 0
      %1206 = vmatpush.msra.mxu0 0.0
      %1207 = vmatpush.msra.mxu0 0.0
      %1208 = vmatpush.msra.mxu0 0.0
      %1209 = vmatpush.msra.mxu0 0.0
      %1210 = vmatpush.msra.mxu0 0.0
      %1211 = vmatpush.msra.mxu0 0.0
      %1212 = vmatpush.msra.mxu0 0.0
      %1213 = vmatpush.msra.mxu0 0.0
      %1214 = vmatpush.msra.mxu0 0.0
      %1215 = vmatpush.msra.mxu0 0.0
      %1216 = vmatpush.msra.mxu0 0.0
      %1217 = vmatpush.msra.mxu0 0.0
      %1218 = vmatpush.msra.mxu0 %v213
      %1219 = vmatpush.msra.mxu0 %v212
      %1220 = vmatpush.msra.mxu0 %v211
      %1221 = vmatpush.msra.mxu0 %v210
      %1222 = vmatmul.f32.gmra.mxu0 %v1204
      %v1223 = vpop.f32.mrf.mxu0
      %v1224 = vadd.f32 0.0, %v1223
      %1225 = vdwg.mxu0
      %v1226 = vadd.f32 %v1203, %v1224
      %v1227 = vxor.u32 %v1226, 2147483648
      %v1228 = vmul.f32 %v1227, 1.442695
      %v1229 = vpow.pop %v1228
      %v1230 = vadd.f32 %v1229, 1.0
      %v1231 = vrcp.pop %v1230
      %v1232 = vmul.f32 %v1230, %v1231
      %v1233 = vsub.f32 1.0, %v1232
      %v1234 = vmul.f32 %v1231, %v1233
      %v1235 = vadd.f32 %v1231, %v1234
      %vm1236 = vweird.f32 %v1230
      %vm1237 = vweird.f32 %v1231
      %vm1238 = vmor %vm1236, %vm1237
      %v1239 = vsel %vm1238, %v1231, %v1235
      %v1240 = vand.u32 2147483647, %v1230
      %vm1241 = vcmp.eq.f32.partialorder %v1240, 8.507059e+37
      %v1242 = vand.u32 %v1230, 2147483648
      %v1243 = vor.u32 1.1754944e-38, %v1242
      %v1244 = vsel %vm1241, %v1243, %v1239
      %v1245 = vmul.f32 1.0, %v1244
      %v1246 = vtanh.pop %v1226
      %v1247 = vmul.f32 %v1245, %v1184
      %1249 = vrot.lane.b32.xlu0 %v1246, 64
      %v1250 = vpop.permute.xlu0 %1249
      %v1252 = vmul.f32 %v1245, %v1250
      %1254 = vrot.lane.b32.xlu0 %v1252, 32
      %v1255 = vpop.permute.xlu0 %1254
      %v1257 = vadd.f32 %v1247, %v1255
      %v1258 = vtanh.pop %v1257
      %1260 = vrot.lane.b32.xlu0 %v1258, 64
      %v1261 = vpop.permute.xlu0 %1260
      %v1263 = vmul.f32 %v1245, %v1261
      %1265 = vrot.lane.b32.xlu0 %v1263, 32
      %v1266 = vpop.permute.xlu0 %1265
      %v1268 = vsel %vm217, %v1266, %v1257
      %s1269 = scalar_lea.vmem %s193, 120
      %v1270 = vld [vmem:[%s1269] sm:$0xff]
      %v1271 = vsel %vm217, %v1266, 0
      %1273 = vmatpush.msra.mxu0 0.0
      %1274 = vmatpush.msra.mxu0 0.0
      %1275 = vmatpush.msra.mxu0 0.0
      %1276 = vmatpush.msra.mxu0 0.0
      %1277 = vmatpush.msra.mxu0 0.0
      %1278 = vmatpush.msra.mxu0 0.0
      %1279 = vmatpush.msra.mxu0 0.0
      %1280 = vmatpush.msra.mxu0 0.0
      %1281 = vmatpush.msra.mxu0 0.0
      %1282 = vmatpush.msra.mxu0 0.0
      %1283 = vmatpush.msra.mxu0 0.0
      %1284 = vmatpush.msra.mxu0 0.0
      %1285 = vmatpush.msra.mxu0 %v213
      %1286 = vmatpush.msra.mxu0 %v212
      %1287 = vmatpush.msra.mxu0 %v211
      %1288 = vmatpush.msra.mxu0 %v210
      %1289 = vmatmul.f32.gmra.mxu0 %v1271
      %v1290 = vpop.f32.mrf.mxu0
      %v1291 = vadd.f32 0.0, %v1290
      %1292 = vdwg.mxu0
      %v1293 = vadd.f32 %v1270, %v1291
      %v1294 = vxor.u32 %v1293, 2147483648
      %v1295 = vmul.f32 %v1294, 1.442695
      %v1296 = vpow.pop %v1295
      %v1297 = vadd.f32 %v1296, 1.0
      %v1298 = vrcp.pop %v1297
      %v1299 = vmul.f32 %v1297, %v1298
      %v1300 = vsub.f32 1.0, %v1299
      %v1301 = vmul.f32 %v1298, %v1300
      %v1302 = vadd.f32 %v1298, %v1301
      %vm1303 = vweird.f32 %v1297
      %vm1304 = vweird.f32 %v1298
      %vm1305 = vmor %vm1303, %vm1304
      %v1306 = vsel %vm1305, %v1298, %v1302
      %v1307 = vand.u32 2147483647, %v1297
      %vm1308 = vcmp.eq.f32.partialorder %v1307, 8.507059e+37
      %v1309 = vand.u32 %v1297, 2147483648
      %v1310 = vor.u32 1.1754944e-38, %v1309
      %v1311 = vsel %vm1308, %v1310, %v1306
      %v1312 = vmul.f32 1.0, %v1311
      %v1313 = vtanh.pop %v1293
      %v1314 = vmul.f32 %v1312, %v1257
      %1316 = vrot.lane.b32.xlu0 %v1313, 64
      %v1317 = vpop.permute.xlu0 %1316
      %v1319 = vmul.f32 %v1312, %v1317
      %1321 = vrot.lane.b32.xlu0 %v1319, 32
      %v1322 = vpop.permute.xlu0 %1321
      %v1324 = vadd.f32 %v1314, %v1322
      %v1325 = vtanh.pop %v1324
      %1327 = vrot.lane.b32.xlu0 %v1325, 64
      %v1328 = vpop.permute.xlu0 %1327
      %v1330 = vmul.f32 %v1312, %v1328
      %1332 = vrot.lane.b32.xlu0 %v1330, 32
      %v1333 = vpop.permute.xlu0 %1332
      %v1335 = vsel %vm217, %v1333, %v1324
      %1337 = vrot.lane.b32.xlu0 %v1335, 64
      %v1338 = vpop.permute.xlu0 %1337
      %v1340 = vsel %vm359, %v1268, %v1338
      %1341 = vst [vmem:[%s199 + $0x38] sm:$0xff] %v1340
      %s1342 = scalar_lea.vmem %s193, 128
      %v1343 = vld [vmem:[%s1342] sm:$0xff]
      %v1344 = vsel %vm217, %v1333, 0
      %1346 = vmatpush.msra.mxu0 0.0
      %1347 = vmatpush.msra.mxu0 0.0
      %1348 = vmatpush.msra.mxu0 0.0
      %1349 = vmatpush.msra.mxu0 0.0
      %1350 = vmatpush.msra.mxu0 0.0
      %1351 = vmatpush.msra.mxu0 0.0
      %1352 = vmatpush.msra.mxu0 0.0
      %1353 = vmatpush.msra.mxu0 0.0
      %1354 = vmatpush.msra.mxu0 0.0
      %1355 = vmatpush.msra.mxu0 0.0
      %1356 = vmatpush.msra.mxu0 0.0
      %1357 = vmatpush.msra.mxu0 0.0
      %1358 = vmatpush.msra.mxu0 %v213
      %1359 = vmatpush.msra.mxu0 %v212
      %1360 = vmatpush.msra.mxu0 %v211
      %1361 = vmatpush.msra.mxu0 %v210
      %1362 = vmatmul.f32.gmra.mxu0 %v1344
      %v1363 = vpop.f32.mrf.mxu0
      %v1364 = vadd.f32 0.0, %v1363
      %1365 = vdwg.mxu0
      %v1366 = vadd.f32 %v1343, %v1364
      %v1367 = vxor.u32 %v1366, 2147483648
      %v1368 = vmul.f32 %v1367, 1.442695
      %v1369 = vpow.pop %v1368
      %v1370 = vadd.f32 %v1369, 1.0
      %v1371 = vrcp.pop %v1370
      %v1372 = vmul.f32 %v1370, %v1371
      %v1373 = vsub.f32 1.0, %v1372
      %v1374 = vmul.f32 %v1371, %v1373
      %v1375 = vadd.f32 %v1371, %v1374
      %vm1376 = vweird.f32 %v1370
      %vm1377 = vweird.f32 %v1371
      %vm1378 = vmor %vm1376, %vm1377
      %v1379 = vsel %vm1378, %v1371, %v1375
      %v1380 = vand.u32 2147483647, %v1370
      %vm1381 = vcmp.eq.f32.partialorder %v1380, 8.507059e+37
      %v1382 = vand.u32 %v1370, 2147483648
      %v1383 = vor.u32 1.1754944e-38, %v1382
      %v1384 = vsel %vm1381, %v1383, %v1379
      %v1385 = vmul.f32 1.0, %v1384
      %v1386 = vtanh.pop %v1366
      %v1387 = vmul.f32 %v1385, %v1324
      %1389 = vrot.lane.b32.xlu0 %v1386, 64
      %v1390 = vpop.permute.xlu0 %1389
      %v1392 = vmul.f32 %v1385, %v1390
      %1394 = vrot.lane.b32.xlu0 %v1392, 32
      %v1395 = vpop.permute.xlu0 %1394
      %v1397 = vadd.f32 %v1387, %v1395
      %v1398 = vtanh.pop %v1397
      %1400 = vrot.lane.b32.xlu0 %v1398, 64
      %v1401 = vpop.permute.xlu0 %1400
      %v1403 = vmul.f32 %v1385, %v1401
      %1405 = vrot.lane.b32.xlu0 %v1403, 32
      %v1406 = vpop.permute.xlu0 %1405
      %v1408 = vsel %vm217, %v1406, %v1397
      %s1409 = scalar_lea.vmem %s193, 136
      %v1410 = vld [vmem:[%s1409] sm:$0xff]
      %v1411 = vsel %vm217, %v1406, 0
      %1413 = vmatpush.msra.mxu0 0.0
      %1414 = vmatpush.msra.mxu0 0.0
      %1415 = vmatpush.msra.mxu0 0.0
      %1416 = vmatpush.msra.mxu0 0.0
      %1417 = vmatpush.msra.mxu0 0.0
      %1418 = vmatpush.msra.mxu0 0.0
      %1419 = vmatpush.msra.mxu0 0.0
      %1420 = vmatpush.msra.mxu0 0.0
      %1421 = vmatpush.msra.mxu0 0.0
      %1422 = vmatpush.msra.mxu0 0.0
      %1423 = vmatpush.msra.mxu0 0.0
      %1424 = vmatpush.msra.mxu0 0.0
      %1425 = vmatpush.msra.mxu0 %v213
      %1426 = vmatpush.msra.mxu0 %v212
      %1427 = vmatpush.msra.mxu0 %v211
      %1428 = vmatpush.msra.mxu0 %v210
      %1429 = vmatmul.f32.gmra.mxu0 %v1411
      %v1430 = vpop.f32.mrf.mxu0
      %v1431 = vadd.f32 0.0, %v1430
      %1432 = vdwg.mxu0
      %v1433 = vadd.f32 %v1410, %v1431
      %v1434 = vxor.u32 %v1433, 2147483648
      %v1435 = vmul.f32 %v1434, 1.442695
      %v1436 = vpow.pop %v1435
      %v1437 = vadd.f32 %v1436, 1.0
      %v1438 = vrcp.pop %v1437
      %v1439 = vmul.f32 %v1437, %v1438
      %v1440 = vsub.f32 1.0, %v1439
      %v1441 = vmul.f32 %v1438, %v1440
      %v1442 = vadd.f32 %v1438, %v1441
      %vm1443 = vweird.f32 %v1437
      %vm1444 = vweird.f32 %v1438
      %vm1445 = vmor %vm1443, %vm1444
      %v1446 = vsel %vm1445, %v1438, %v1442
      %v1447 = vand.u32 2147483647, %v1437
      %vm1448 = vcmp.eq.f32.partialorder %v1447, 8.507059e+37
      %v1449 = vand.u32 %v1437, 2147483648
      %v1450 = vor.u32 1.1754944e-38, %v1449
      %v1451 = vsel %vm1448, %v1450, %v1446
      %v1452 = vmul.f32 1.0, %v1451
      %v1453 = vtanh.pop %v1433
      %v1454 = vmul.f32 %v1452, %v1397
      %1456 = vrot.lane.b32.xlu0 %v1453, 64
      %v1457 = vpop.permute.xlu0 %1456
      %v1459 = vmul.f32 %v1452, %v1457
      %1461 = vrot.lane.b32.xlu0 %v1459, 32
      %v1462 = vpop.permute.xlu0 %1461
      %v1464 = vadd.f32 %v1454, %v1462
      %v1465 = vtanh.pop %v1464
      %1467 = vrot.lane.b32.xlu0 %v1465, 64
      %v1468 = vpop.permute.xlu0 %1467
      %v1470 = vmul.f32 %v1452, %v1468
      %1472 = vrot.lane.b32.xlu0 %v1470, 32
      %v1473 = vpop.permute.xlu0 %1472
      %v1475 = vsel %vm217, %v1473, %v1464
      %1477 = vrot.lane.b32.xlu0 %v1475, 64
      %v1478 = vpop.permute.xlu0 %1477
      %v1480 = vsel %vm359, %v1408, %v1478
      %1481 = vst [vmem:[%s199 + $0x40] sm:$0xff] %v1480
      %s1482 = scalar_lea.vmem %s193, 144
      %v1483 = vld [vmem:[%s1482] sm:$0xff]
      %v1484 = vsel %vm217, %v1473, 0
      %1486 = vmatpush.msra.mxu0 0.0
      %1487 = vmatpush.msra.mxu0 0.0
      %1488 = vmatpush.msra.mxu0 0.0
      %1489 = vmatpush.msra.mxu0 0.0
      %1490 = vmatpush.msra.mxu0 0.0
      %1491 = vmatpush.msra.mxu0 0.0
      %1492 = vmatpush.msra.mxu0 0.0
      %1493 = vmatpush.msra.mxu0 0.0
      %1494 = vmatpush.msra.mxu0 0.0
      %1495 = vmatpush.msra.mxu0 0.0
      %1496 = vmatpush.msra.mxu0 0.0
      %1497 = vmatpush.msra.mxu0 0.0
      %1498 = vmatpush.msra.mxu0 %v213
      %1499 = vmatpush.msra.mxu0 %v212
      %1500 = vmatpush.msra.mxu0 %v211
      %1501 = vmatpush.msra.mxu0 %v210
      %1502 = vmatmul.f32.gmra.mxu0 %v1484
      %v1503 = vpop.f32.mrf.mxu0
      %v1504 = vadd.f32 0.0, %v1503
      %1505 = vdwg.mxu0
      %v1506 = vadd.f32 %v1483, %v1504
      %v1507 = vxor.u32 %v1506, 2147483648
      %v1508 = vmul.f32 %v1507, 1.442695
      %v1509 = vpow.pop %v1508
      %v1510 = vadd.f32 %v1509, 1.0
      %v1511 = vrcp.pop %v1510
      %v1512 = vmul.f32 %v1510, %v1511
      %v1513 = vsub.f32 1.0, %v1512
      %v1514 = vmul.f32 %v1511, %v1513
      %v1515 = vadd.f32 %v1511, %v1514
      %vm1516 = vweird.f32 %v1510
      %vm1517 = vweird.f32 %v1511
      %vm1518 = vmor %vm1516, %vm1517
      %v1519 = vsel %vm1518, %v1511, %v1515
      %v1520 = vand.u32 2147483647, %v1510
      %vm1521 = vcmp.eq.f32.partialorder %v1520, 8.507059e+37
      %v1522 = vand.u32 %v1510, 2147483648
      %v1523 = vor.u32 1.1754944e-38, %v1522
      %v1524 = vsel %vm1521, %v1523, %v1519
      %v1525 = vmul.f32 1.0, %v1524
      %v1526 = vtanh.pop %v1506
      %v1527 = vmul.f32 %v1525, %v1464
      %1529 = vrot.lane.b32.xlu0 %v1526, 64
      %v1530 = vpop.permute.xlu0 %1529
      %v1532 = vmul.f32 %v1525, %v1530
      %1534 = vrot.lane.b32.xlu0 %v1532, 32
      %v1535 = vpop.permute.xlu0 %1534
      %v1537 = vadd.f32 %v1527, %v1535
      %v1538 = vtanh.pop %v1537
      %1540 = vrot.lane.b32.xlu0 %v1538, 64
      %v1541 = vpop.permute.xlu0 %1540
      %v1543 = vmul.f32 %v1525, %v1541
      %1545 = vrot.lane.b32.xlu0 %v1543, 32
      %v1546 = vpop.permute.xlu0 %1545
      %v1548 = vsel %vm217, %v1546, %v1537
      %s1549 = scalar_lea.vmem %s193, 152
      %v1550 = vld [vmem:[%s1549] sm:$0xff]
      %v1551 = vsel %vm217, %v1546, 0
      %1553 = vmatpush.msra.mxu0 0.0
      %1554 = vmatpush.msra.mxu0 0.0
      %1555 = vmatpush.msra.mxu0 0.0
      %1556 = vmatpush.msra.mxu0 0.0
      %1557 = vmatpush.msra.mxu0 0.0
      %1558 = vmatpush.msra.mxu0 0.0
      %1559 = vmatpush.msra.mxu0 0.0
      %1560 = vmatpush.msra.mxu0 0.0
      %1561 = vmatpush.msra.mxu0 0.0
      %1562 = vmatpush.msra.mxu0 0.0
      %1563 = vmatpush.msra.mxu0 0.0
      %1564 = vmatpush.msra.mxu0 0.0
      %1565 = vmatpush.msra.mxu0 %v213
      %1566 = vmatpush.msra.mxu0 %v212
      %1567 = vmatpush.msra.mxu0 %v211
      %1568 = vmatpush.msra.mxu0 %v210
      %1569 = vmatmul.f32.gmra.mxu0 %v1551
      %v1570 = vpop.f32.mrf.mxu0
      %v1571 = vadd.f32 0.0, %v1570
      %1572 = vdwg.mxu0
      %v1573 = vadd.f32 %v1550, %v1571
      %v1574 = vxor.u32 %v1573, 2147483648
      %v1575 = vmul.f32 %v1574, 1.442695
      %v1576 = vpow.pop %v1575
      %v1577 = vadd.f32 %v1576, 1.0
      %v1578 = vrcp.pop %v1577
      %v1579 = vmul.f32 %v1577, %v1578
      %v1580 = vsub.f32 1.0, %v1579
      %v1581 = vmul.f32 %v1578, %v1580
      %v1582 = vadd.f32 %v1578, %v1581
      %vm1583 = vweird.f32 %v1577
      %vm1584 = vweird.f32 %v1578
      %vm1585 = vmor %vm1583, %vm1584
      %v1586 = vsel %vm1585, %v1578, %v1582
      %v1587 = vand.u32 2147483647, %v1577
      %vm1588 = vcmp.eq.f32.partialorder %v1587, 8.507059e+37
      %v1589 = vand.u32 %v1577, 2147483648
      %v1590 = vor.u32 1.1754944e-38, %v1589
      %v1591 = vsel %vm1588, %v1590, %v1586
      %v1592 = vmul.f32 1.0, %v1591
      %v1593 = vtanh.pop %v1573
      %v1594 = vmul.f32 %v1592, %v1537
      %1596 = vrot.lane.b32.xlu0 %v1593, 64
      %v1597 = vpop.permute.xlu0 %1596
      %v1599 = vmul.f32 %v1592, %v1597
      %1601 = vrot.lane.b32.xlu0 %v1599, 32
      %v1602 = vpop.permute.xlu0 %1601
      %v1604 = vadd.f32 %v1594, %v1602
      %v1605 = vtanh.pop %v1604
      %1607 = vrot.lane.b32.xlu0 %v1605, 64
      %v1608 = vpop.permute.xlu0 %1607
      %v1610 = vmul.f32 %v1592, %v1608
      %1612 = vrot.lane.b32.xlu0 %v1610, 32
      %v1613 = vpop.permute.xlu0 %1612
      %v1615 = vsel %vm217, %v1613, %v1604
      %1617 = vrot.lane.b32.xlu0 %v1615, 64
      %v1618 = vpop.permute.xlu0 %1617
      %v1620 = vsel %vm359, %v1548, %v1618
      %1621 = vst [vmem:[%s199 + $0x48] sm:$0xff] %v1620
      %s1622 = scalar_lea.vmem %s193, 160
      %v1623 = vld [vmem:[%s1622] sm:$0xff]
      %v1624 = vsel %vm217, %v1613, 0
      %1626 = vmatpush.msra.mxu0 0.0
      %1627 = vmatpush.msra.mxu0 0.0
      %1628 = vmatpush.msra.mxu0 0.0
      %1629 = vmatpush.msra.mxu0 0.0
      %1630 = vmatpush.msra.mxu0 0.0
      %1631 = vmatpush.msra.mxu0 0.0
      %1632 = vmatpush.msra.mxu0 0.0
      %1633 = vmatpush.msra.mxu0 0.0
      %1634 = vmatpush.msra.mxu0 0.0
      %1635 = vmatpush.msra.mxu0 0.0
      %1636 = vmatpush.msra.mxu0 0.0
      %1637 = vmatpush.msra.mxu0 0.0
      %1638 = vmatpush.msra.mxu0 %v213
      %1639 = vmatpush.msra.mxu0 %v212
      %1640 = vmatpush.msra.mxu0 %v211
      %1641 = vmatpush.msra.mxu0 %v210
      %1642 = vmatmul.f32.gmra.mxu0 %v1624
      %v1643 = vpop.f32.mrf.mxu0
      %v1644 = vadd.f32 0.0, %v1643
      %1645 = vdwg.mxu0
      %v1646 = vadd.f32 %v1623, %v1644
      %v1647 = vxor.u32 %v1646, 2147483648
      %v1648 = vmul.f32 %v1647, 1.442695
      %v1649 = vpow.pop %v1648
      %v1650 = vadd.f32 %v1649, 1.0
      %v1651 = vrcp.pop %v1650
      %v1652 = vmul.f32 %v1650, %v1651
      %v1653 = vsub.f32 1.0, %v1652
      %v1654 = vmul.f32 %v1651, %v1653
      %v1655 = vadd.f32 %v1651, %v1654
      %vm1656 = vweird.f32 %v1650
      %vm1657 = vweird.f32 %v1651
      %vm1658 = vmor %vm1656, %vm1657
      %v1659 = vsel %vm1658, %v1651, %v1655
      %v1660 = vand.u32 2147483647, %v1650
      %vm1661 = vcmp.eq.f32.partialorder %v1660, 8.507059e+37
      %v1662 = vand.u32 %v1650, 2147483648
      %v1663 = vor.u32 1.1754944e-38, %v1662
      %v1664 = vsel %vm1661, %v1663, %v1659
      %v1665 = vmul.f32 1.0, %v1664
      %v1666 = vtanh.pop %v1646
      %v1667 = vmul.f32 %v1665, %v1604
      %1669 = vrot.lane.b32.xlu0 %v1666, 64
      %v1670 = vpop.permute.xlu0 %1669
      %v1672 = vmul.f32 %v1665, %v1670
      %1674 = vrot.lane.b32.xlu0 %v1672, 32
      %v1675 = vpop.permute.xlu0 %1674
      %v1677 = vadd.f32 %v1667, %v1675
      %v1678 = vtanh.pop %v1677
      %1680 = vrot.lane.b32.xlu0 %v1678, 64
      %v1681 = vpop.permute.xlu0 %1680
      %v1683 = vmul.f32 %v1665, %v1681
      %1685 = vrot.lane.b32.xlu0 %v1683, 32
      %v1686 = vpop.permute.xlu0 %1685
      %v1688 = vsel %vm217, %v1686, %v1677
      %s1689 = scalar_lea.vmem %s193, 168
      %v1690 = vld [vmem:[%s1689] sm:$0xff]
      %v1691 = vsel %vm217, %v1686, 0
      %1693 = vmatpush.msra.mxu0 0.0
      %1694 = vmatpush.msra.mxu0 0.0
      %1695 = vmatpush.msra.mxu0 0.0
      %1696 = vmatpush.msra.mxu0 0.0
      %1697 = vmatpush.msra.mxu0 0.0
      %1698 = vmatpush.msra.mxu0 0.0
      %1699 = vmatpush.msra.mxu0 0.0
      %1700 = vmatpush.msra.mxu0 0.0
      %1701 = vmatpush.msra.mxu0 0.0
      %1702 = vmatpush.msra.mxu0 0.0
      %1703 = vmatpush.msra.mxu0 0.0
      %1704 = vmatpush.msra.mxu0 0.0
      %1705 = vmatpush.msra.mxu0 %v213
      %1706 = vmatpush.msra.mxu0 %v212
      %1707 = vmatpush.msra.mxu0 %v211
      %1708 = vmatpush.msra.mxu0 %v210
      %1709 = vmatmul.f32.gmra.mxu0 %v1691
      %v1710 = vpop.f32.mrf.mxu0
      %v1711 = vadd.f32 0.0, %v1710
      %1712 = vdwg.mxu0
      %v1713 = vadd.f32 %v1690, %v1711
      %v1714 = vxor.u32 %v1713, 2147483648
      %v1715 = vmul.f32 %v1714, 1.442695
      %v1716 = vpow.pop %v1715
      %v1717 = vadd.f32 %v1716, 1.0
      %v1718 = vrcp.pop %v1717
      %v1719 = vmul.f32 %v1717, %v1718
      %v1720 = vsub.f32 1.0, %v1719
      %v1721 = vmul.f32 %v1718, %v1720
      %v1722 = vadd.f32 %v1718, %v1721
      %vm1723 = vweird.f32 %v1717
      %vm1724 = vweird.f32 %v1718
      %vm1725 = vmor %vm1723, %vm1724
      %v1726 = vsel %vm1725, %v1718, %v1722
      %v1727 = vand.u32 2147483647, %v1717
      %vm1728 = vcmp.eq.f32.partialorder %v1727, 8.507059e+37
      %v1729 = vand.u32 %v1717, 2147483648
      %v1730 = vor.u32 1.1754944e-38, %v1729
      %v1731 = vsel %vm1728, %v1730, %v1726
      %v1732 = vmul.f32 1.0, %v1731
      %v1733 = vtanh.pop %v1713
      %v1734 = vmul.f32 %v1732, %v1677
      %1736 = vrot.lane.b32.xlu0 %v1733, 64
      %v1737 = vpop.permute.xlu0 %1736
      %v1739 = vmul.f32 %v1732, %v1737
      %1741 = vrot.lane.b32.xlu0 %v1739, 32
      %v1742 = vpop.permute.xlu0 %1741
      %v1744 = vadd.f32 %v1734, %v1742
      %v1745 = vtanh.pop %v1744
      %1747 = vrot.lane.b32.xlu0 %v1745, 64
      %v1748 = vpop.permute.xlu0 %1747
      %v1750 = vmul.f32 %v1732, %v1748
      %1752 = vrot.lane.b32.xlu0 %v1750, 32
      %v1753 = vpop.permute.xlu0 %1752
      %v1755 = vsel %vm217, %v1753, %v1744
      %1757 = vrot.lane.b32.xlu0 %v1755, 64
      %v1758 = vpop.permute.xlu0 %1757
      %v1760 = vsel %vm359, %v1688, %v1758
      %1761 = vst [vmem:[%s199 + $0x50] sm:$0xff] %v1760
      %s1762 = scalar_lea.vmem %s193, 176
      %v1763 = vld [vmem:[%s1762] sm:$0xff]
      %v1764 = vsel %vm217, %v1753, 0
      %1766 = vmatpush.msra.mxu0 0.0
      %1767 = vmatpush.msra.mxu0 0.0
      %1768 = vmatpush.msra.mxu0 0.0
      %1769 = vmatpush.msra.mxu0 0.0
      %1770 = vmatpush.msra.mxu0 0.0
      %1771 = vmatpush.msra.mxu0 0.0
      %1772 = vmatpush.msra.mxu0 0.0
      %1773 = vmatpush.msra.mxu0 0.0
      %1774 = vmatpush.msra.mxu0 0.0
      %1775 = vmatpush.msra.mxu0 0.0
      %1776 = vmatpush.msra.mxu0 0.0
      %1777 = vmatpush.msra.mxu0 0.0
      %1778 = vmatpush.msra.mxu0 %v213
      %1779 = vmatpush.msra.mxu0 %v212
      %1780 = vmatpush.msra.mxu0 %v211
      %1781 = vmatpush.msra.mxu0 %v210
      %1782 = vmatmul.f32.gmra.mxu0 %v1764
      %v1783 = vpop.f32.mrf.mxu0
      %v1784 = vadd.f32 0.0, %v1783
      %1785 = vdwg.mxu0
      %v1786 = vadd.f32 %v1763, %v1784
      %v1787 = vxor.u32 %v1786, 2147483648
      %v1788 = vmul.f32 %v1787, 1.442695
      %v1789 = vpow.pop %v1788
      %v1790 = vadd.f32 %v1789, 1.0
      %v1791 = vrcp.pop %v1790
      %v1792 = vmul.f32 %v1790, %v1791
      %v1793 = vsub.f32 1.0, %v1792
      %v1794 = vmul.f32 %v1791, %v1793
      %v1795 = vadd.f32 %v1791, %v1794
      %vm1796 = vweird.f32 %v1790
      %vm1797 = vweird.f32 %v1791
      %vm1798 = vmor %vm1796, %vm1797
      %v1799 = vsel %vm1798, %v1791, %v1795
      %v1800 = vand.u32 2147483647, %v1790
      %vm1801 = vcmp.eq.f32.partialorder %v1800, 8.507059e+37
      %v1802 = vand.u32 %v1790, 2147483648
      %v1803 = vor.u32 1.1754944e-38, %v1802
      %v1804 = vsel %vm1801, %v1803, %v1799
      %v1805 = vmul.f32 1.0, %v1804
      %v1806 = vtanh.pop %v1786
      %v1807 = vmul.f32 %v1805, %v1744
      %1809 = vrot.lane.b32.xlu0 %v1806, 64
      %v1810 = vpop.permute.xlu0 %1809
      %v1812 = vmul.f32 %v1805, %v1810
      %1814 = vrot.lane.b32.xlu0 %v1812, 32
      %v1815 = vpop.permute.xlu0 %1814
      %v1817 = vadd.f32 %v1807, %v1815
      %v1818 = vtanh.pop %v1817
      %1820 = vrot.lane.b32.xlu0 %v1818, 64
      %v1821 = vpop.permute.xlu0 %1820
      %v1823 = vmul.f32 %v1805, %v1821
      %1825 = vrot.lane.b32.xlu0 %v1823, 32
      %v1826 = vpop.permute.xlu0 %1825
      %v1828 = vsel %vm217, %v1826, %v1817
      %s1829 = scalar_lea.vmem %s193, 184
      %v1830 = vld [vmem:[%s1829] sm:$0xff]
      %v1831 = vsel %vm217, %v1826, 0
      %1833 = vmatpush.msra.mxu0 0.0
      %1834 = vmatpush.msra.mxu0 0.0
      %1835 = vmatpush.msra.mxu0 0.0
      %1836 = vmatpush.msra.mxu0 0.0
      %1837 = vmatpush.msra.mxu0 0.0
      %1838 = vmatpush.msra.mxu0 0.0
      %1839 = vmatpush.msra.mxu0 0.0
      %1840 = vmatpush.msra.mxu0 0.0
      %1841 = vmatpush.msra.mxu0 0.0
      %1842 = vmatpush.msra.mxu0 0.0
      %1843 = vmatpush.msra.mxu0 0.0
      %1844 = vmatpush.msra.mxu0 0.0
      %1845 = vmatpush.msra.mxu0 %v213
      %1846 = vmatpush.msra.mxu0 %v212
      %1847 = vmatpush.msra.mxu0 %v211
      %1848 = vmatpush.msra.mxu0 %v210
      %1849 = vmatmul.f32.gmra.mxu0 %v1831
      %v1850 = vpop.f32.mrf.mxu0
      %v1851 = vadd.f32 0.0, %v1850
      %1852 = vdwg.mxu0
      %v1853 = vadd.f32 %v1830, %v1851
      %v1854 = vxor.u32 %v1853, 2147483648
      %v1855 = vmul.f32 %v1854, 1.442695
      %v1856 = vpow.pop %v1855
      %v1857 = vadd.f32 %v1856, 1.0
      %v1858 = vrcp.pop %v1857
      %v1859 = vmul.f32 %v1857, %v1858
      %v1860 = vsub.f32 1.0, %v1859
      %v1861 = vmul.f32 %v1858, %v1860
      %v1862 = vadd.f32 %v1858, %v1861
      %vm1863 = vweird.f32 %v1857
      %vm1864 = vweird.f32 %v1858
      %vm1865 = vmor %vm1863, %vm1864
      %v1866 = vsel %vm1865, %v1858, %v1862
      %v1867 = vand.u32 2147483647, %v1857
      %vm1868 = vcmp.eq.f32.partialorder %v1867, 8.507059e+37
      %v1869 = vand.u32 %v1857, 2147483648
      %v1870 = vor.u32 1.1754944e-38, %v1869
      %v1871 = vsel %vm1868, %v1870, %v1866
      %v1872 = vmul.f32 1.0, %v1871
      %v1873 = vtanh.pop %v1853
      %v1874 = vmul.f32 %v1872, %v1817
      %1876 = vrot.lane.b32.xlu0 %v1873, 64
      %v1877 = vpop.permute.xlu0 %1876
      %v1879 = vmul.f32 %v1872, %v1877
      %1881 = vrot.lane.b32.xlu0 %v1879, 32
      %v1882 = vpop.permute.xlu0 %1881
      %v1884 = vadd.f32 %v1874, %v1882
      %v1885 = vtanh.pop %v1884
      %1887 = vrot.lane.b32.xlu0 %v1885, 64
      %v1888 = vpop.permute.xlu0 %1887
      %v1890 = vmul.f32 %v1872, %v1888
      %1892 = vrot.lane.b32.xlu0 %v1890, 32
      %v1893 = vpop.permute.xlu0 %1892
      %v1895 = vsel %vm217, %v1893, %v1884
      %1897 = vrot.lane.b32.xlu0 %v1895, 64
      %v1898 = vpop.permute.xlu0 %1897
      %v1900 = vsel %vm359, %v1828, %v1898
      %1901 = vst [vmem:[%s199 + $0x58] sm:$0xff] %v1900
      %s1902 = scalar_lea.vmem %s193, 192
      %v1903 = vld [vmem:[%s1902] sm:$0xff]
      %v1904 = vsel %vm217, %v1893, 0
      %1906 = vmatpush.msra.mxu0 0.0
      %1907 = vmatpush.msra.mxu0 0.0
      %1908 = vmatpush.msra.mxu0 0.0
      %1909 = vmatpush.msra.mxu0 0.0
      %1910 = vmatpush.msra.mxu0 0.0
      %1911 = vmatpush.msra.mxu0 0.0
      %1912 = vmatpush.msra.mxu0 0.0
      %1913 = vmatpush.msra.mxu0 0.0
      %1914 = vmatpush.msra.mxu0 0.0
      %1915 = vmatpush.msra.mxu0 0.0
      %1916 = vmatpush.msra.mxu0 0.0
      %1917 = vmatpush.msra.mxu0 0.0
      %1918 = vmatpush.msra.mxu0 %v213
      %1919 = vmatpush.msra.mxu0 %v212
      %1920 = vmatpush.msra.mxu0 %v211
      %1921 = vmatpush.msra.mxu0 %v210
      %1922 = vmatmul.f32.gmra.mxu0 %v1904
      %v1923 = vpop.f32.mrf.mxu0
      %v1924 = vadd.f32 0.0, %v1923
      %1925 = vdwg.mxu0
      %v1926 = vadd.f32 %v1903, %v1924
      %v1927 = vxor.u32 %v1926, 2147483648
      %v1928 = vmul.f32 %v1927, 1.442695
      %v1929 = vpow.pop %v1928
      %v1930 = vadd.f32 %v1929, 1.0
      %v1931 = vrcp.pop %v1930
      %v1932 = vmul.f32 %v1930, %v1931
      %v1933 = vsub.f32 1.0, %v1932
      %v1934 = vmul.f32 %v1931, %v1933
      %v1935 = vadd.f32 %v1931, %v1934
      %vm1936 = vweird.f32 %v1930
      %vm1937 = vweird.f32 %v1931
      %vm1938 = vmor %vm1936, %vm1937
      %v1939 = vsel %vm1938, %v1931, %v1935
      %v1940 = vand.u32 2147483647, %v1930
      %vm1941 = vcmp.eq.f32.partialorder %v1940, 8.507059e+37
      %v1942 = vand.u32 %v1930, 2147483648
      %v1943 = vor.u32 1.1754944e-38, %v1942
      %v1944 = vsel %vm1941, %v1943, %v1939
      %v1945 = vmul.f32 1.0, %v1944
      %v1946 = vtanh.pop %v1926
      %v1947 = vmul.f32 %v1945, %v1884
      %1949 = vrot.lane.b32.xlu0 %v1946, 64
      %v1950 = vpop.permute.xlu0 %1949
      %v1952 = vmul.f32 %v1945, %v1950
      %1954 = vrot.lane.b32.xlu0 %v1952, 32
      %v1955 = vpop.permute.xlu0 %1954
      %v1957 = vadd.f32 %v1947, %v1955
      %v1958 = vtanh.pop %v1957
      %1960 = vrot.lane.b32.xlu0 %v1958, 64
      %v1961 = vpop.permute.xlu0 %1960
      %v1963 = vmul.f32 %v1945, %v1961
      %1965 = vrot.lane.b32.xlu0 %v1963, 32
      %v1966 = vpop.permute.xlu0 %1965
      %v1968 = vsel %vm217, %v1966, %v1957
      %s1969 = scalar_lea.vmem %s193, 200
      %v1970 = vld [vmem:[%s1969] sm:$0xff]
      %v1971 = vsel %vm217, %v1966, 0
      %1973 = vmatpush.msra.mxu0 0.0
      %1974 = vmatpush.msra.mxu0 0.0
      %1975 = vmatpush.msra.mxu0 0.0
      %1976 = vmatpush.msra.mxu0 0.0
      %1977 = vmatpush.msra.mxu0 0.0
      %1978 = vmatpush.msra.mxu0 0.0
      %1979 = vmatpush.msra.mxu0 0.0
      %1980 = vmatpush.msra.mxu0 0.0
      %1981 = vmatpush.msra.mxu0 0.0
      %1982 = vmatpush.msra.mxu0 0.0
      %1983 = vmatpush.msra.mxu0 0.0
      %1984 = vmatpush.msra.mxu0 0.0
      %1985 = vmatpush.msra.mxu0 %v213
      %1986 = vmatpush.msra.mxu0 %v212
      %1987 = vmatpush.msra.mxu0 %v211
      %1988 = vmatpush.msra.mxu0 %v210
      %1989 = vmatmul.f32.gmra.mxu0 %v1971
      %v1990 = vpop.f32.mrf.mxu0
      %v1991 = vadd.f32 0.0, %v1990
      %1992 = vdwg.mxu0
      %v1993 = vadd.f32 %v1970, %v1991
      %v1994 = vxor.u32 %v1993, 2147483648
      %v1995 = vmul.f32 %v1994, 1.442695
      %v1996 = vpow.pop %v1995
      %v1997 = vadd.f32 %v1996, 1.0
      %v1998 = vrcp.pop %v1997
      %v1999 = vmul.f32 %v1997, %v1998
      %v2000 = vsub.f32 1.0, %v1999
      %v2001 = vmul.f32 %v1998, %v2000
      %v2002 = vadd.f32 %v1998, %v2001
      %vm2003 = vweird.f32 %v1997
      %vm2004 = vweird.f32 %v1998
      %vm2005 = vmor %vm2003, %vm2004
      %v2006 = vsel %vm2005, %v1998, %v2002
      %v2007 = vand.u32 2147483647, %v1997
      %vm2008 = vcmp.eq.f32.partialorder %v2007, 8.507059e+37
      %v2009 = vand.u32 %v1997, 2147483648
      %v2010 = vor.u32 1.1754944e-38, %v2009
      %v2011 = vsel %vm2008, %v2010, %v2006
      %v2012 = vmul.f32 1.0, %v2011
      %v2013 = vtanh.pop %v1993
      %v2014 = vmul.f32 %v2012, %v1957
      %2016 = vrot.lane.b32.xlu0 %v2013, 64
      %v2017 = vpop.permute.xlu0 %2016
      %v2019 = vmul.f32 %v2012, %v2017
      %2021 = vrot.lane.b32.xlu0 %v2019, 32
      %v2022 = vpop.permute.xlu0 %2021
      %v2024 = vadd.f32 %v2014, %v2022
      %v2025 = vtanh.pop %v2024
      %2027 = vrot.lane.b32.xlu0 %v2025, 64
      %v2028 = vpop.permute.xlu0 %2027
      %v2030 = vmul.f32 %v2012, %v2028
      %2032 = vrot.lane.b32.xlu0 %v2030, 32
      %v2033 = vpop.permute.xlu0 %2032
      %v2035 = vsel %vm217, %v2033, %v2024
      %2037 = vrot.lane.b32.xlu0 %v2035, 64
      %v2038 = vpop.permute.xlu0 %2037
      %v2040 = vsel %vm359, %v1968, %v2038
      %2041 = vst [vmem:[%s199 + $0x60] sm:$0xff] %v2040
      %s2042 = scalar_lea.vmem %s193, 208
      %v2043 = vld [vmem:[%s2042] sm:$0xff]
      %v2044 = vsel %vm217, %v2033, 0
      %2046 = vmatpush.msra.mxu0 0.0
      %2047 = vmatpush.msra.mxu0 0.0
      %2048 = vmatpush.msra.mxu0 0.0
      %2049 = vmatpush.msra.mxu0 0.0
      %2050 = vmatpush.msra.mxu0 0.0
      %2051 = vmatpush.msra.mxu0 0.0
      %2052 = vmatpush.msra.mxu0 0.0
      %2053 = vmatpush.msra.mxu0 0.0
      %2054 = vmatpush.msra.mxu0 0.0
      %2055 = vmatpush.msra.mxu0 0.0
      %2056 = vmatpush.msra.mxu0 0.0
      %2057 = vmatpush.msra.mxu0 0.0
      %2058 = vmatpush.msra.mxu0 %v213
      %2059 = vmatpush.msra.mxu0 %v212
      %2060 = vmatpush.msra.mxu0 %v211
      %2061 = vmatpush.msra.mxu0 %v210
      %2062 = vmatmul.f32.gmra.mxu0 %v2044
      %v2063 = vpop.f32.mrf.mxu0
      %v2064 = vadd.f32 0.0, %v2063
      %2065 = vdwg.mxu0
      %v2066 = vadd.f32 %v2043, %v2064
      %v2067 = vxor.u32 %v2066, 2147483648
      %v2068 = vmul.f32 %v2067, 1.442695
      %v2069 = vpow.pop %v2068
      %v2070 = vadd.f32 %v2069, 1.0
      %v2071 = vrcp.pop %v2070
      %v2072 = vmul.f32 %v2070, %v2071
      %v2073 = vsub.f32 1.0, %v2072
      %v2074 = vmul.f32 %v2071, %v2073
      %v2075 = vadd.f32 %v2071, %v2074
      %vm2076 = vweird.f32 %v2070
      %vm2077 = vweird.f32 %v2071
      %vm2078 = vmor %vm2076, %vm2077
      %v2079 = vsel %vm2078, %v2071, %v2075
      %v2080 = vand.u32 2147483647, %v2070
      %vm2081 = vcmp.eq.f32.partialorder %v2080, 8.507059e+37
      %v2082 = vand.u32 %v2070, 2147483648
      %v2083 = vor.u32 1.1754944e-38, %v2082
      %v2084 = vsel %vm2081, %v2083, %v2079
      %v2085 = vmul.f32 1.0, %v2084
      %v2086 = vtanh.pop %v2066
      %v2087 = vmul.f32 %v2085, %v2024
      %2089 = vrot.lane.b32.xlu0 %v2086, 64
      %v2090 = vpop.permute.xlu0 %2089
      %v2092 = vmul.f32 %v2085, %v2090
      %2094 = vrot.lane.b32.xlu0 %v2092, 32
      %v2095 = vpop.permute.xlu0 %2094
      %v2097 = vadd.f32 %v2087, %v2095
      %v2098 = vtanh.pop %v2097
      %2100 = vrot.lane.b32.xlu0 %v2098, 64
      %v2101 = vpop.permute.xlu0 %2100
      %v2103 = vmul.f32 %v2085, %v2101
      %2105 = vrot.lane.b32.xlu0 %v2103, 32
      %v2106 = vpop.permute.xlu0 %2105
      %v2108 = vsel %vm217, %v2106, %v2097
      %s2109 = scalar_lea.vmem %s193, 216
      %v2110 = vld [vmem:[%s2109] sm:$0xff]
      %v2111 = vsel %vm217, %v2106, 0
      %2113 = vmatpush.msra.mxu0 0.0
      %2114 = vmatpush.msra.mxu0 0.0
      %2115 = vmatpush.msra.mxu0 0.0
      %2116 = vmatpush.msra.mxu0 0.0
      %2117 = vmatpush.msra.mxu0 0.0
      %2118 = vmatpush.msra.mxu0 0.0
      %2119 = vmatpush.msra.mxu0 0.0
      %2120 = vmatpush.msra.mxu0 0.0
      %2121 = vmatpush.msra.mxu0 0.0
      %2122 = vmatpush.msra.mxu0 0.0
      %2123 = vmatpush.msra.mxu0 0.0
      %2124 = vmatpush.msra.mxu0 0.0
      %2125 = vmatpush.msra.mxu0 %v213
      %2126 = vmatpush.msra.mxu0 %v212
      %2127 = vmatpush.msra.mxu0 %v211
      %2128 = vmatpush.msra.mxu0 %v210
      %2129 = vmatmul.f32.gmra.mxu0 %v2111
      %v2130 = vpop.f32.mrf.mxu0
      %v2131 = vadd.f32 0.0, %v2130
      %2132 = vdwg.mxu0
      %v2133 = vadd.f32 %v2110, %v2131
      %v2134 = vxor.u32 %v2133, 2147483648
      %v2135 = vmul.f32 %v2134, 1.442695
      %v2136 = vpow.pop %v2135
      %v2137 = vadd.f32 %v2136, 1.0
      %v2138 = vrcp.pop %v2137
      %v2139 = vmul.f32 %v2137, %v2138
      %v2140 = vsub.f32 1.0, %v2139
      %v2141 = vmul.f32 %v2138, %v2140
      %v2142 = vadd.f32 %v2138, %v2141
      %vm2143 = vweird.f32 %v2137
      %vm2144 = vweird.f32 %v2138
      %vm2145 = vmor %vm2143, %vm2144
      %v2146 = vsel %vm2145, %v2138, %v2142
      %v2147 = vand.u32 2147483647, %v2137
      %vm2148 = vcmp.eq.f32.partialorder %v2147, 8.507059e+37
      %v2149 = vand.u32 %v2137, 2147483648
      %v2150 = vor.u32 1.1754944e-38, %v2149
      %v2151 = vsel %vm2148, %v2150, %v2146
      %v2152 = vmul.f32 1.0, %v2151
      %v2153 = vtanh.pop %v2133
      %v2154 = vmul.f32 %v2152, %v2097
      %2156 = vrot.lane.b32.xlu0 %v2153, 64
      %v2157 = vpop.permute.xlu0 %2156
      %v2159 = vmul.f32 %v2152, %v2157
      %2161 = vrot.lane.b32.xlu0 %v2159, 32
      %v2162 = vpop.permute.xlu0 %2161
      %v2164 = vadd.f32 %v2154, %v2162
      %v2165 = vtanh.pop %v2164
      %2167 = vrot.lane.b32.xlu0 %v2165, 64
      %v2168 = vpop.permute.xlu0 %2167
      %v2170 = vmul.f32 %v2152, %v2168
      %2172 = vrot.lane.b32.xlu0 %v2170, 32
      %v2173 = vpop.permute.xlu0 %2172
      %v2175 = vsel %vm217, %v2173, %v2164
      %2177 = vrot.lane.b32.xlu0 %v2175, 64
      %v2178 = vpop.permute.xlu0 %2177
      %v2180 = vsel %vm359, %v2108, %v2178
      %2181 = vst [vmem:[%s199 + $0x68] sm:$0xff] %v2180
      %s2182 = scalar_lea.vmem %s193, 224
      %v2183 = vld [vmem:[%s2182] sm:$0xff]
      %v2184 = vsel %vm217, %v2173, 0
      %2186 = vmatpush.msra.mxu0 0.0
      %2187 = vmatpush.msra.mxu0 0.0
      %2188 = vmatpush.msra.mxu0 0.0
      %2189 = vmatpush.msra.mxu0 0.0
      %2190 = vmatpush.msra.mxu0 0.0
      %2191 = vmatpush.msra.mxu0 0.0
      %2192 = vmatpush.msra.mxu0 0.0
      %2193 = vmatpush.msra.mxu0 0.0
      %2194 = vmatpush.msra.mxu0 0.0
      %2195 = vmatpush.msra.mxu0 0.0
      %2196 = vmatpush.msra.mxu0 0.0
      %2197 = vmatpush.msra.mxu0 0.0
      %2198 = vmatpush.msra.mxu0 %v213
      %2199 = vmatpush.msra.mxu0 %v212
      %2200 = vmatpush.msra.mxu0 %v211
      %2201 = vmatpush.msra.mxu0 %v210
      %2202 = vmatmul.f32.gmra.mxu0 %v2184
      %v2203 = vpop.f32.mrf.mxu0
      %v2204 = vadd.f32 0.0, %v2203
      %2205 = vdwg.mxu0
      %v2206 = vadd.f32 %v2183, %v2204
      %v2207 = vxor.u32 %v2206, 2147483648
      %v2208 = vmul.f32 %v2207, 1.442695
      %v2209 = vpow.pop %v2208
      %v2210 = vadd.f32 %v2209, 1.0
      %v2211 = vrcp.pop %v2210
      %v2212 = vmul.f32 %v2210, %v2211
      %v2213 = vsub.f32 1.0, %v2212
      %v2214 = vmul.f32 %v2211, %v2213
      %v2215 = vadd.f32 %v2211, %v2214
      %vm2216 = vweird.f32 %v2210
      %vm2217 = vweird.f32 %v2211
      %vm2218 = vmor %vm2216, %vm2217
      %v2219 = vsel %vm2218, %v2211, %v2215
      %v2220 = vand.u32 2147483647, %v2210
      %vm2221 = vcmp.eq.f32.partialorder %v2220, 8.507059e+37
      %v2222 = vand.u32 %v2210, 2147483648
      %v2223 = vor.u32 1.1754944e-38, %v2222
      %v2224 = vsel %vm2221, %v2223, %v2219
      %v2225 = vmul.f32 1.0, %v2224
      %v2226 = vtanh.pop %v2206
      %v2227 = vmul.f32 %v2225, %v2164
      %2229 = vrot.lane.b32.xlu0 %v2226, 64
      %v2230 = vpop.permute.xlu0 %2229
      %v2232 = vmul.f32 %v2225, %v2230
      %2234 = vrot.lane.b32.xlu0 %v2232, 32
      %v2235 = vpop.permute.xlu0 %2234
      %v2237 = vadd.f32 %v2227, %v2235
      %v2238 = vtanh.pop %v2237
      %2240 = vrot.lane.b32.xlu0 %v2238, 64
      %v2241 = vpop.permute.xlu0 %2240
      %v2243 = vmul.f32 %v2225, %v2241
      %2245 = vrot.lane.b32.xlu0 %v2243, 32
      %v2246 = vpop.permute.xlu0 %2245
      %v2248 = vsel %vm217, %v2246, %v2237
      %s2249 = scalar_lea.vmem %s193, 232
      %v2250 = vld [vmem:[%s2249] sm:$0xff]
      %v2251 = vsel %vm217, %v2246, 0
      %2253 = vmatpush.msra.mxu0 0.0
      %2254 = vmatpush.msra.mxu0 0.0
      %2255 = vmatpush.msra.mxu0 0.0
      %2256 = vmatpush.msra.mxu0 0.0
      %2257 = vmatpush.msra.mxu0 0.0
      %2258 = vmatpush.msra.mxu0 0.0
      %2259 = vmatpush.msra.mxu0 0.0
      %2260 = vmatpush.msra.mxu0 0.0
      %2261 = vmatpush.msra.mxu0 0.0
      %2262 = vmatpush.msra.mxu0 0.0
      %2263 = vmatpush.msra.mxu0 0.0
      %2264 = vmatpush.msra.mxu0 0.0
      %2265 = vmatpush.msra.mxu0 %v213
      %2266 = vmatpush.msra.mxu0 %v212
      %2267 = vmatpush.msra.mxu0 %v211
      %2268 = vmatpush.msra.mxu0 %v210
      %2269 = vmatmul.f32.gmra.mxu0 %v2251
      %v2270 = vpop.f32.mrf.mxu0
      %v2271 = vadd.f32 0.0, %v2270
      %2272 = vdwg.mxu0
      %v2273 = vadd.f32 %v2250, %v2271
      %v2274 = vxor.u32 %v2273, 2147483648
      %v2275 = vmul.f32 %v2274, 1.442695
      %v2276 = vpow.pop %v2275
      %v2277 = vadd.f32 %v2276, 1.0
      %v2278 = vrcp.pop %v2277
      %v2279 = vmul.f32 %v2277, %v2278
      %v2280 = vsub.f32 1.0, %v2279
      %v2281 = vmul.f32 %v2278, %v2280
      %v2282 = vadd.f32 %v2278, %v2281
      %vm2283 = vweird.f32 %v2277
      %vm2284 = vweird.f32 %v2278
      %vm2285 = vmor %vm2283, %vm2284
      %v2286 = vsel %vm2285, %v2278, %v2282
      %v2287 = vand.u32 2147483647, %v2277
      %vm2288 = vcmp.eq.f32.partialorder %v2287, 8.507059e+37
      %v2289 = vand.u32 %v2277, 2147483648
      %v2290 = vor.u32 1.1754944e-38, %v2289
      %v2291 = vsel %vm2288, %v2290, %v2286
      %v2292 = vmul.f32 1.0, %v2291
      %v2293 = vtanh.pop %v2273
      %v2294 = vmul.f32 %v2292, %v2237
      %2296 = vrot.lane.b32.xlu0 %v2293, 64
      %v2297 = vpop.permute.xlu0 %2296
      %v2299 = vmul.f32 %v2292, %v2297
      %2301 = vrot.lane.b32.xlu0 %v2299, 32
      %v2302 = vpop.permute.xlu0 %2301
      %v2304 = vadd.f32 %v2294, %v2302
      %v2305 = vtanh.pop %v2304
      %2307 = vrot.lane.b32.xlu0 %v2305, 64
      %v2308 = vpop.permute.xlu0 %2307
      %v2310 = vmul.f32 %v2292, %v2308
      %2312 = vrot.lane.b32.xlu0 %v2310, 32
      %v2313 = vpop.permute.xlu0 %2312
      %v2315 = vsel %vm217, %v2313, %v2304
      %2317 = vrot.lane.b32.xlu0 %v2315, 64
      %v2318 = vpop.permute.xlu0 %2317
      %v2320 = vsel %vm359, %v2248, %v2318
      %2321 = vst [vmem:[%s199 + $0x70] sm:$0xff] %v2320
      %s2322 = scalar_lea.vmem %s193, 240
      %v2323 = vld [vmem:[%s2322] sm:$0xff]
      %v2324 = vsel %vm217, %v2313, 0
      %2326 = vmatpush.msra.mxu0 0.0
      %2327 = vmatpush.msra.mxu0 0.0
      %2328 = vmatpush.msra.mxu0 0.0
      %2329 = vmatpush.msra.mxu0 0.0
      %2330 = vmatpush.msra.mxu0 0.0
      %2331 = vmatpush.msra.mxu0 0.0
      %2332 = vmatpush.msra.mxu0 0.0
      %2333 = vmatpush.msra.mxu0 0.0
      %2334 = vmatpush.msra.mxu0 0.0
      %2335 = vmatpush.msra.mxu0 0.0
      %2336 = vmatpush.msra.mxu0 0.0
      %2337 = vmatpush.msra.mxu0 0.0
      %2338 = vmatpush.msra.mxu0 %v213
      %2339 = vmatpush.msra.mxu0 %v212
      %2340 = vmatpush.msra.mxu0 %v211
      %2341 = vmatpush.msra.mxu0 %v210
      %2342 = vmatmul.f32.gmra.mxu0 %v2324
      %v2343 = vpop.f32.mrf.mxu0
      %v2344 = vadd.f32 0.0, %v2343
      %2345 = vdwg.mxu0
      %v2346 = vadd.f32 %v2323, %v2344
      %v2347 = vxor.u32 %v2346, 2147483648
      %v2348 = vmul.f32 %v2347, 1.442695
      %v2349 = vpow.pop %v2348
      %v2350 = vadd.f32 %v2349, 1.0
      %v2351 = vrcp.pop %v2350
      %v2352 = vmul.f32 %v2350, %v2351
      %v2353 = vsub.f32 1.0, %v2352
      %v2354 = vmul.f32 %v2351, %v2353
      %v2355 = vadd.f32 %v2351, %v2354
      %vm2356 = vweird.f32 %v2350
      %vm2357 = vweird.f32 %v2351
      %vm2358 = vmor %vm2356, %vm2357
      %v2359 = vsel %vm2358, %v2351, %v2355
      %v2360 = vand.u32 2147483647, %v2350
      %vm2361 = vcmp.eq.f32.partialorder %v2360, 8.507059e+37
      %v2362 = vand.u32 %v2350, 2147483648
      %v2363 = vor.u32 1.1754944e-38, %v2362
      %v2364 = vsel %vm2361, %v2363, %v2359
      %v2365 = vmul.f32 1.0, %v2364
      %v2366 = vtanh.pop %v2346
      %v2367 = vmul.f32 %v2365, %v2304
      %2369 = vrot.lane.b32.xlu0 %v2366, 64
      %v2370 = vpop.permute.xlu0 %2369
      %v2372 = vmul.f32 %v2365, %v2370
      %2374 = vrot.lane.b32.xlu0 %v2372, 32
      %v2375 = vpop.permute.xlu0 %2374
      %v2377 = vadd.f32 %v2367, %v2375
      %v2378 = vtanh.pop %v2377
      %2380 = vrot.lane.b32.xlu0 %v2378, 64
      %v2381 = vpop.permute.xlu0 %2380
      %v2383 = vmul.f32 %v2365, %v2381
      %2385 = vrot.lane.b32.xlu0 %v2383, 32
      %v2386 = vpop.permute.xlu0 %2385
      %v2388 = vsel %vm217, %v2386, %v2377
      %s2389 = scalar_lea.vmem %s193, 248
      %v2390 = vld [vmem:[%s2389] sm:$0xff]
      %v2391 = vsel %vm217, %v2386, 0
      %2393 = vmatpush.msra.mxu0 0.0
      %2394 = vmatpush.msra.mxu0 0.0
      %2395 = vmatpush.msra.mxu0 0.0
      %2396 = vmatpush.msra.mxu0 0.0
      %2397 = vmatpush.msra.mxu0 0.0
      %2398 = vmatpush.msra.mxu0 0.0
      %2399 = vmatpush.msra.mxu0 0.0
      %2400 = vmatpush.msra.mxu0 0.0
      %2401 = vmatpush.msra.mxu0 0.0
      %2402 = vmatpush.msra.mxu0 0.0
      %2403 = vmatpush.msra.mxu0 0.0
      %2404 = vmatpush.msra.mxu0 0.0
      %2405 = vmatpush.msra.mxu0 %v213
      %2406 = vmatpush.msra.mxu0 %v212
      %2407 = vmatpush.msra.mxu0 %v211
      %2408 = vmatpush.msra.mxu0 %v210
      %2409 = vmatmul.f32.gmra.mxu0 %v2391
      %v2410 = vpop.f32.mrf.mxu0
      %v2411 = vadd.f32 0.0, %v2410
      %2412 = vdwg.mxu0
      %v2413 = vadd.f32 %v2390, %v2411
      %v2414 = vxor.u32 %v2413, 2147483648
      %v2415 = vmul.f32 %v2414, 1.442695
      %v2416 = vpow.pop %v2415
      %v2417 = vadd.f32 %v2416, 1.0
      %v2418 = vrcp.pop %v2417
      %v2419 = vmul.f32 %v2417, %v2418
      %v2420 = vsub.f32 1.0, %v2419
      %v2421 = vmul.f32 %v2418, %v2420
      %v2422 = vadd.f32 %v2418, %v2421
      %vm2423 = vweird.f32 %v2417
      %vm2424 = vweird.f32 %v2418
      %vm2425 = vmor %vm2423, %vm2424
      %v2426 = vsel %vm2425, %v2418, %v2422
      %v2427 = vand.u32 2147483647, %v2417
      %vm2428 = vcmp.eq.f32.partialorder %v2427, 8.507059e+37
      %v2429 = vand.u32 %v2417, 2147483648
      %v2430 = vor.u32 1.1754944e-38, %v2429
      %v2431 = vsel %vm2428, %v2430, %v2426
      %v2432 = vmul.f32 1.0, %v2431
      %v2433 = vtanh.pop %v2413
      %v2434 = vmul.f32 %v2432, %v2377
      %2436 = vrot.lane.b32.xlu0 %v2433, 64
      %v2437 = vpop.permute.xlu0 %2436
      %v2439 = vmul.f32 %v2432, %v2437
      %2441 = vrot.lane.b32.xlu0 %v2439, 32
      %v2442 = vpop.permute.xlu0 %2441
      %v2444 = vadd.f32 %v2434, %v2442
      %v2445 = vtanh.pop %v2444
      %2447 = vrot.lane.b32.xlu0 %v2445, 64
      %v2448 = vpop.permute.xlu0 %2447
      %v2450 = vmul.f32 %v2432, %v2448
      %2452 = vrot.lane.b32.xlu0 %v2450, 32
      %v2453 = vpop.permute.xlu0 %2452
      %v2455 = vsel %vm217, %v2453, %v2444
      %2457 = vrot.lane.b32.xlu0 %v2455, 64
      %v2458 = vpop.permute.xlu0 %2457
      %v2460 = vsel %vm359, %v2388, %v2458
      %2461 = vst [vmem:[%s199 + $0x78] sm:$0xff] %v2460
      %2462 = vst.msk [vmem:[#allocation2] sm:$0xff] %vm217, %v2453
      %2464 = vrot.lane.b32.xlu0 %v2444, 96
      %v2465 = vpop.permute.xlu0 %2464
      %2467 = vst.msk [vmem:[#allocation3] sm:$0xff] %vm217, %v2465
      %s2468 = smul.u32 16, %s15
      %p2469 = scmp.lt.s32.totalorder %s2468, 31
      %s2470 = scalar_select %p2469, %s2468, 31
      %s2471 = smul.addr %s2470, 8
      %s2472 = scalar_lea.vmem %s4, %s2471
      // Predicated region
      $region41: #{lstm_pallas.1} parent=35 // pred_check
        %p2473 = pneg %p122
      $region42: #{lstm_pallas.1} parent=35 // pred_check_branch
        %2475 = sbr.rel (%p2473) target = $region44
      $region43: #{lstm_pallas.1} parent=35 // pred_region
        %s2476 = smul.u32 16, %s15
      $region44: #{lstm_pallas.1} parent=35 // pred_fallthru
        _
    $region36: #{lstm_pallas.1} parent=5 // pred_fallthru
      _
    %p2477 = scmp.le.s32.totalorder 2, %s10
    // Predicated region
    $region45: #{lstm_pallas.1} parent=5 // pred_check
      %p2478 = pneg %p2477
    $region46: #{lstm_pallas.1} parent=5 // pred_check_branch
      %2480 = sbr.rel (%p2478) target = $region48
    $region47: #{lstm_pallas.1} parent=5 // pred_region
      %s2481 = ssub.s32 %s10, 2
      // Predicated region
      $region49: #{lstm_pallas.1} parent=47 // pred_check
        %p2482 = pneg %p128
      $region50: #{lstm_pallas.1} parent=47 // pred_check_branch
        %2484 = sbr.rel (%p2482) target = $region52
      $region51: #{lstm_pallas.1} parent=47 // pred_region
        %s2485 = smul.u32 16, %s16
        %p2486 = scmp.lt.s32.totalorder %s2485, 31
        %s2487 = scalar_select %p2486, %s2485, 31
        %s2488 = smul.addr %s2487, 8
        %s2489 = scalar_lea.vmem %s4, %s2488
      $region52: #{lstm_pallas.1} parent=47 // pred_fallthru
        _
    $region48: #{lstm_pallas.1} parent=5 // pred_fallthru
      _
  $region6: #{lstm_pallas.1} parent=0 // loop_footer
    %s14 = sadd.s32 1, %s10
  $region7: #{lstm_pallas.1} parent=0 // loop_footer_branch
    %9 = sbr.rel target = $region3
  $region8: #{lstm_pallas.1} parent=0 // loop_exit
    _

</llo_original>
